<compile_context>
chip_gen: v5e
topology: v5e:2x2
jax: 0.10.0
libtpu: 0.0.40
codegen_flags: <defaults>
</compile_context>

<pallas_src>
import functools

import jax
import jax.numpy as jnp
import numpy as np
from jax.experimental import pallas as pl
from jax.experimental.pallas import tpu as pltpu


# ----------------------------------------------------------------------------
# Pallas kernel: WB windows' full attention per grid step.
# ----------------------------------------------------------------------------
def _window_attn_kernel(*refs, num_heads, head_dim, has_mask):
    if has_mask:
        (x_ref, bias_ref, wqkv_ref, bqkv_ref,
         wp_ref, bp_ref, mask_ref, o_ref) = refs
    else:
        (x_ref, bias_ref, wqkv_ref, bqkv_ref,
         wp_ref, bp_ref, o_ref) = refs
        mask_ref = None

    WB, N, Cp = x_ref.shape
    H, hd = num_heads, head_dim
    C = H * hd

    # Collapse windows into rows: (WB*N, Cp).  N is a multiple of 8 for these
    # window sizes, so this is a layout-preserving reshape.  Cp is lane-dense.
    x2 = x_ref[...].reshape(WB * N, Cp)

    # Fused QKV projection: ONE MXU push, M = WB*N, K = Cp, N_out = 3*C.
    # Scale is pre-folded into the Q columns / Q bias.
    qkv = jnp.dot(x2, wqkv_ref[...], preferred_element_type=jnp.float32)
    qkv = qkv + bqkv_ref[...]                                     # (WB*N, 3C) f32

    # Materialize the broadcast mask ONCE per grid step (not per head).
    if has_mask:
        Mw = mask_ref.shape[0]                                    # nW (resident) or WB
        mask_full = jnp.broadcast_to(
            mask_ref[...].astype(jnp.float32)[None],
            (WB // Mw, Mw, N, N)).reshape(WB, N, N)

    acc = None
    for h in range(H):                                            # static unroll, H small
        q = qkv[:, h * hd:(h + 1) * hd]
        k = qkv[:, C + h * hd:C + (h + 1) * hd]
        v = qkv[:, 2 * C + h * hd:2 * C + (h + 1) * hd]
        q3 = q.astype(x2.dtype).reshape(WB, N, hd)
        k3 = k.astype(x2.dtype).reshape(WB, N, hd)
        v3 = v.astype(x2.dtype).reshape(WB, N, hd)

        # Batched scores over all WB windows at once.
        s = jnp.einsum('bnd,bmd->bnm', q3, k3,
                       preferred_element_type=jnp.float32)        # (WB, N, N) f32
        s = s + bias_ref[h].astype(jnp.float32)                   # rel-pos bias
        if has_mask:
            s = s + mask_full                                     # same-shape add

        # Softmax in f32; reciprocal on the EUP slot.
        s = s - jnp.max(s, axis=-1, keepdims=True)
        e = jnp.exp(s)
        inv = pl.reciprocal(jnp.sum(e, axis=-1, keepdims=True), approx=True)
        p = (e * inv).astype(x2.dtype)

        o3 = jnp.einsum('bnm,bmd->bnd', p, v3,
                        preferred_element_type=jnp.float32)       # (WB, N, hd)

        # Output projection accumulated over heads (replaces concat + proj).
        part = jnp.dot(o3.astype(x2.dtype).reshape(WB * N, hd), wp_ref[h],
                       preferred_element_type=jnp.float32)        # (WB*N, Cp)
        acc = part if acc is None else acc + part

    out = acc + bp_ref[...]                                       # (+ proj bias once)
    o_ref[...] = out.reshape(WB, N, Cp).astype(o_ref.dtype)


# ----------------------------------------------------------------------------
# Relative position index (reproduces the PyTorch __init__ exactly, including
# its skipped stride factor on coord 1).
# ----------------------------------------------------------------------------
def _relative_position_index(window_size):
    Wt, Wh, Ww = window_size
    coords = np.stack(np.meshgrid(np.arange(Wt), np.arange(Wh), np.arange(Ww),
                                  indexing="ij"))                    # (3, Wt, Wh, Ww)
    coords_flatten = coords.reshape(3, -1)                           # (3, N)
    rel = coords_flatten[:, :, None] - coords_flatten[:, None, :]    # (3, N, N)
    rel = rel.transpose(1, 2, 0).copy()                              # (N, N, 3)
    rel[:, :, 0] += Wt - 1
    rel[:, :, 1] += Wh - 1
    rel[:, :, 2] += Ww - 1
    rel[:, :, 0] *= (2 * Wh - 1) * (2 * Ww - 1)
    return rel.sum(-1)                                               # (N, N) int


def _relative_position_bias(rpb_table, window_size, num_heads):
    Wt, Wh, Ww = window_size
    N = Wt * Wh * Ww
    idx = jnp.asarray(_relative_position_index(window_size).reshape(-1))
    bias = rpb_table[idx].reshape(N, N, num_heads)
    return jnp.transpose(bias, (2, 0, 1))                            # (H, N, N)


# ----------------------------------------------------------------------------
# One-time parameter transform (fold scale, fuse+pad QKV, split proj heads,
# gather rel-pos bias).  Do this once at param-build time, NOT per forward call.
# ----------------------------------------------------------------------------
def prepare_window_attention_params(params, window_size, num_heads,
                                    dtype=jnp.float32, lane_pad=128):
    C = params["wqkv"].shape[0]
    H = num_heads
    hd = C // H
    scale = hd ** (-0.5)
    Cp = max(lane_pad, -(-C // lane_pad) * lane_pad)        # pad channels to 128 lanes

    wqkv = jnp.asarray(params["wqkv"], jnp.float32)         # (C, 3C), cols = [Q|K|V]
    bqkv = jnp.asarray(params["bqkv"], jnp.float32).reshape(1, 3 * C)

    # Fold the 1/sqrt(hd) scale into the Q columns / Q bias.
    col_scale = jnp.concatenate([jnp.full((C,), scale, jnp.float32),
                                 jnp.ones((2 * C,), jnp.float32)])
    wqkv = wqkv * col_scale[None, :]
    bqkv = bqkv * col_scale[None, :]

    # Zero-pad the contraction dim C -> Cp so the streamed x blocks are lane-dense.
    wqkv_p = jnp.zeros((Cp, 3 * C), jnp.float32).at[:C, :].set(wqkv)

    # Proj weight rows grouped by head, output dim padded C -> Cp (lane-dense store).
    wproj = jnp.asarray(params["wproj"], jnp.float32)       # (C, C) pre-transposed
    wproj_p = jnp.zeros((H, hd, Cp), jnp.float32).at[:, :, :C].set(
        wproj.reshape(H, hd, C))
    bproj_p = jnp.zeros((1, Cp), jnp.float32).at[0, :C].set(
        jnp.asarray(params["bproj"], jnp.float32))

    return {
        "num_heads": H, "head_dim": hd, "dim": C, "padded_dim": Cp,
        # MXU operands in `dtype` (pass bf16 here for v6e/v7x MXU feeding).
        "wqkv": wqkv_p.astype(dtype),
        "wproj": wproj_p.astype(dtype),
        # Biases stay f32 (added post-MXU; softmax math is f32).
        "bqkv": bqkv,
        "bproj": bproj_p,
        "bias": _relative_position_bias(
            jnp.asarray(params["rpb_table"], jnp.float32),
            window_size, H).astype(dtype),
    }


# ----------------------------------------------------------------------------
# Window-block (WB) selection: as many windows per grid step as the VMEM budget
# allows, while (a) keeping the grid >= 2 steps when possible (v7x dual-TC,
# DMA/compute overlap) and (b) staying mask-compatible.
# ----------------------------------------------------------------------------
def _choose_window_block(B_, nW, N, C, Cp, hd, itemsize,
                         budget_bytes=20 << 20, min_grid_steps=2):
    per_win = (
        2 * 2 * N * Cp * itemsize      # streamed x + out blocks, double-buffered
        + N * 3 * C * 4                # fused qkv activation (f32)
        + 3 * N * hd * itemsize        # per-head q/k/v slices
        + 4 * N * N * 4                # scores / exp / probs + broadcast mask (f32)
        + N * Cp * 4                   # proj accumulator (f32)
    )
    cap = max(1, budget_bytes // per_win)
    cap = min(cap, max(1, B_ // min_grid_steps))

    candidates = [d for d in range(B_, 0, -1) if B_ % d == 0]

    def mask_ok(wb):
        return nW is None or wb % nW == 0 or nW % wb == 0

    for wb in candidates:                       # largest budget-respecting block
        if wb <= cap and mask_ok(wb):
            return wb
    for wb in reversed(candidates):             # fallback: smallest compatible block
        if mask_ok(wb):
            return wb
    return B_


# ----------------------------------------------------------------------------
# Wrapper: builds specs / grid, calls pallas_call, strips the channel pad.
# ----------------------------------------------------------------------------
def window_attention(x, kparams, mask=None, *, window_block=None,
                     vmem_limit_bytes=48 << 20):
    B_, N, C = x.shape
    H = kparams["num_heads"]
    hd = kparams["head_dim"]
    Cp = kparams["padded_dim"]
    assert C == kparams["dim"]

    w_dtype = kparams["wqkv"].dtype
    itemsize = jnp.dtype(w_dtype).itemsize

    nW = None if mask is None else mask.shape[0]
    if mask is not None:
        assert B_ % nW == 0, \
            "x's leading axis must be (batch, window) flattened window-minor"

    WB = window_block or _choose_window_block(B_, nW, N, C, Cp, hd, itemsize)
    assert B_ % WB == 0
    if mask is not None:
        assert WB % nW == 0 or nW % WB == 0, \
            "window_block must be a multiple or a divisor of the number of windows"
    grid = (B_ // WB,)

    # Lane-dense input: cast to the MXU dtype and zero-pad channels to Cp.
    xk = x.astype(w_dtype)
    if Cp != C:
        xk = jnp.pad(xk, ((0, 0), (0, 0), (0, Cp - C)))

    const3 = lambda b: (0, 0, 0)
    const2 = lambda b: (0, 0)

    in_specs = [
        pl.BlockSpec((WB, N, Cp), lambda b: (b, 0, 0)),        # x (streamed, lane-dense)
        pl.BlockSpec(kparams["bias"].shape, const3),           # rel-pos bias (resident)
        pl.BlockSpec(kparams["wqkv"].shape, const2),           # fused qkv weight (Cp, 3C)
        pl.BlockSpec(kparams["bqkv"].shape, const2),           # fused qkv bias (1, 3C)
        pl.BlockSpec(kparams["wproj"].shape, const3),          # proj weight (H, hd, Cp)
        pl.BlockSpec(kparams["bproj"].shape, const2),          # proj bias (1, Cp)
    ]
    args = [xk, kparams["bias"], kparams["wqkv"], kparams["bqkv"],
            kparams["wproj"], kparams["bproj"]]

    has_mask = mask is not None
    if has_mask:
        mask_f = mask.astype(jnp.float32)                      # (nW, N, N), untiled
        if WB % nW == 0:
            # Resident full mask; kernel broadcasts it over WB // nW window groups.
            in_specs.append(pl.BlockSpec((nW, N, N), const3))
        else:
            # WB divides nW: stream the matching (WB, N, N) mask slice per step.
            in_specs.append(pl.BlockSpec((WB, N, N),
                                         lambda b: (b % (nW // WB), 0, 0)))
        args.append(mask_f)

    # Advisory cost estimate for XLA's scheduler.
    flops = (B_ * N * 2 * Cp * 3 * C            # fused qkv
             + B_ * H * N * N * 2 * hd * 2      # scores + probs @ v
             + B_ * N * 2 * C * Cp)             # output projection
    transcendentals = B_ * H * N * (N + 1)      # exp + reciprocal
    wbytes = sum(int(kparams[k].size) * jnp.dtype(kparams[k].dtype).itemsize
                 for k in ("wqkv", "bqkv", "wproj", "bproj", "bias"))
    bytes_accessed = (2 * B_ * N * Cp * itemsize + wbytes
                      + (int(mask.size) * 4 if has_mask else 0))

    kernel = functools.partial(_window_attn_kernel, num_heads=H, head_dim=hd,
                               has_mask=has_mask)

    out = pl.pallas_call(
        kernel,
        out_shape=jax.ShapeDtypeStruct((B_, N, Cp), x.dtype),
        grid=grid,
        in_specs=in_specs,
        out_specs=pl.BlockSpec((WB, N, Cp), lambda b: (b, 0, 0)),
        compiler_params=pltpu.CompilerParams(
            dimension_semantics=("parallel",),                 # windows independent
            vmem_limit_bytes=int(vmem_limit_bytes)),
        cost_estimate=pl.CostEstimate(
            flops=int(flops), transcendentals=int(transcendentals),
            bytes_accessed=int(bytes_accessed)),
    )(*args)

    if Cp != C:
        out = out[:, :, :C]                                    # strip the channel pad
    return out


# ----------------------------------------------------------------------------
# Pure-JAX reference (mirrors the PyTorch forward) for correctness checks.
# ----------------------------------------------------------------------------
def window_attention_ref(x, params, window_size, num_heads, mask=None):
    B_, N, C = x.shape
    hd = C // num_heads
    scale = hd ** (-0.5)

    qkv = x @ params["wqkv"] + params["bqkv"]                     # (B_, N, 3C)
    qkv = qkv.reshape(B_, N, 3, num_heads, hd).transpose(2, 0, 3, 1, 4)
    q, k, v = qkv[0], qkv[1], qkv[2]                              # (B_, H, N, hd)
    q = q * scale
    attn = jnp.einsum("bhnd,bhmd->bhnm", q, k)

    rel_idx = jnp.asarray(_relative_position_index(window_size).reshape(-1))
    bias = params["rpb_table"][rel_idx].reshape(N, N, num_heads)
    attn = attn + jnp.transpose(bias, (2, 0, 1))[None]            # (1, H, N, N)
    if mask is not None:
        nW = mask.shape[0]
        attn = attn.reshape(B_ // nW, nW, num_heads, N, N) + mask[None, :, None]
        attn = attn.reshape(B_, num_heads, N, N)
    attn = jax.nn.softmax(attn, axis=-1)
    out = jnp.einsum("bhnm,bhmd->bhnd", attn, v)
    out = out.transpose(0, 2, 1, 3).reshape(B_, N, C)
    return out @ params["wproj"] + params["bproj"]


# ----------------------------------------------------------------------------
# Deterministic parameter init + demo run.
# ----------------------------------------------------------------------------
def make_params(key, dim, window_size, num_heads):
    Wt, Wh, Ww = window_size
    table_len = (2 * Wt - 1) * (2 * Wh - 1) * (2 * Ww - 1)
    k1, k2, k3, k4, k5 = jax.random.split(key, 5)
    return {
        # trunc_normal(std=0.02) approximated by normal * 0.02
        "rpb_table": 0.02 * jax.random.normal(k1, (table_len, num_heads), jnp.float32),
        # weights stored (in, out): equivalent to PyTorch Linear weight transposed
        "wqkv":  0.05 * jax.random.normal(k2, (dim, 3 * dim), jnp.float32),
        "bqkv":  0.05 * jax.random.normal(k3, (3 * dim,), jnp.float32),
        "wproj": 0.05 * jax.random.normal(k4, (dim, dim), jnp.float32),
        "bproj": 0.05 * jax.random.normal(k5, (dim,), jnp.float32),
    }


if __name__ == "__main__":
    # window_size = (2, 4, 4) -> N = 32 tokens/window; dim = 32, H = 4 -> hd = 8.
    # B_ = batch * num_windows = 2 * 4 = 8 windows total.
    window_size = (2, 4, 4)
    dim = 32
    num_heads = 4
    nW = 4
    batch = 2
    B_ = batch * nW
    N = window_size[0] * window_size[1] * window_size[2]

    key = jax.random.PRNGKey(0)
    kx, kp, km = jax.random.split(key, 3)
    x = jax.random.normal(kx, (B_, N, dim), jnp.float32)
    params = make_params(kp, dim, window_size, num_heads)
    # dtype=jnp.bfloat16 here doubles MXU rate on v6e/v7x; keep f32 for exact check.
    kparams = prepare_window_attention_params(params, window_size, num_heads,
                                              dtype=jnp.float32)

    # --- W-MSA path (mask=None); dropout probs are 0.0 -> identity ---
    out = jax.block_until_ready(window_attention(x, kparams, mask=None))
    ref = window_attention_ref(x, params, window_size, num_heads, mask=None)
    np.testing.assert_allclose(np.asarray(out), np.asarray(ref), rtol=2e-3, atol=2e-3)

    # --- SW-MSA path (additive 0/-100 mask, shape (nW, N, N)) ---
    mask = jnp.where(jax.random.bernoulli(km, 0.5, (nW, N, N)),
                     0.0, -100.0).astype(jnp.float32)
    out_m = jax.block_until_ready(window_attention(x, kparams, mask=mask))
    ref_m = window_attention_ref(x, params, window_size, num_heads, mask=mask)
    np.testing.assert_allclose(np.asarray(out_m), np.asarray(ref_m),
                               rtol=2e-3, atol=2e-3)

    print("KERNEL_OK")
</pallas_src>

<mosaic_0001>
module attributes {stable_mosaic.version = 11 : i64} {
  func.func @_window_attn_kernel(%arg0: i32, %arg1: memref<4x32x128xf32, #tpu.memory_space<vmem>>, %arg2: memref<4x32x32xf32, #tpu.memory_space<vmem>>, %arg3: memref<128x96xf32, #tpu.memory_space<vmem>>, %arg4: memref<1x96xf32, #tpu.memory_space<vmem>>, %arg5: memref<4x8x128xf32, #tpu.memory_space<vmem>>, %arg6: memref<1x128xf32, #tpu.memory_space<vmem>>, %arg7: memref<4x32x128xf32, #tpu.memory_space<vmem>>) attributes {dimension_semantics = [#tpu.dimension_semantics<parallel>], iteration_bounds = array<i64: 2>, scalar_prefetch = 0 : i64, scratch_operands = 0 : i64, tpu.core_type = #tpu.core_type<tc>, window_params = [{transform_indices = @transform_0, window_bounds = array<i64: 4, 32, 128>}, {pipeline_mode = #tpu.pipeline_mode<synchronous>, transform_indices = @transform_1, window_bounds = array<i64: 4, 32, 32>}, {pipeline_mode = #tpu.pipeline_mode<synchronous>, transform_indices = @transform_2, window_bounds = array<i64: 128, 96>}, {pipeline_mode = #tpu.pipeline_mode<synchronous>, transform_indices = @transform_3, window_bounds = array<i64: 1, 96>}, {pipeline_mode = #tpu.pipeline_mode<synchronous>, transform_indices = @transform_4, window_bounds = array<i64: 4, 8, 128>}, {pipeline_mode = #tpu.pipeline_mode<synchronous>, transform_indices = @transform_5, window_bounds = array<i64: 1, 128>}, {transform_indices = @transform_6, window_bounds = array<i64: 4, 32, 128>}]} {
    %c0 = arith.constant 0 : index
    %c0_0 = arith.constant 0 : index
    %c0_1 = arith.constant 0 : index
    %0 = vector.load %arg1[%c0, %c0_0, %c0_1] : memref<4x32x128xf32, #tpu.memory_space<vmem>>, vector<4x32x128xf32>
    %1 = vector.shape_cast %0 : vector<4x32x128xf32> to vector<128x128xf32>
    %c0_2 = arith.constant 0 : index
    %c0_3 = arith.constant 0 : index
    %2 = vector.load %arg3[%c0_2, %c0_3] : memref<128x96xf32, #tpu.memory_space<vmem>>, vector<128x96xf32>
    %cst = arith.constant dense<0.000000e+00> : vector<128x96xf32>
    %3 = tpu.matmul %1, %2, %cst {dimension_numbers = #tpu.dot_dimension_numbers<[1], [0], [0], [1], [0, 0, 1, 1], [], []>} : vector<128x128xf32>, vector<128x96xf32>, vector<128x96xf32> -> vector<128x96xf32>
    %c0_4 = arith.constant 0 : index
    %c0_5 = arith.constant 0 : index
    %4 = vector.load %arg4[%c0_4, %c0_5] : memref<1x96xf32, #tpu.memory_space<vmem>>, vector<1x96xf32>
    %5 = vector.broadcast %4 : vector<1x96xf32> to vector<128x96xf32>
    %6 = arith.addf %3, %5 : vector<128x96xf32>
    %7 = vector.extract_strided_slice %6 {offsets = [0, 0], sizes = [128, 8], strides = [1, 1]} : vector<128x96xf32> to vector<128x8xf32>
    %8 = vector.extract_strided_slice %6 {offsets = [0, 32], sizes = [128, 8], strides = [1, 1]} : vector<128x96xf32> to vector<128x8xf32>
    %9 = vector.extract_strided_slice %6 {offsets = [0, 64], sizes = [128, 8], strides = [1, 1]} : vector<128x96xf32> to vector<128x8xf32>
    %10 = vector.shape_cast %7 : vector<128x8xf32> to vector<4x32x8xf32>
    %11 = vector.shape_cast %8 : vector<128x8xf32> to vector<4x32x8xf32>
    %12 = vector.shape_cast %9 : vector<128x8xf32> to vector<4x32x8xf32>
    "tpu.trace_start"() <{level = 10 : i32, message = "bnd,bmd->bnm"}> : () -> ()
    %cst_6 = arith.constant dense<0.000000e+00> : vector<4x32x32xf32>
    %13 = tpu.matmul %10, %11, %cst_6 {dimension_numbers = #tpu.dot_dimension_numbers<[2], [2], [1], [1], [0, 0, 0, 1, 1, 1], [0], [0]>} : vector<4x32x8xf32>, vector<4x32x8xf32>, vector<4x32x32xf32> -> vector<4x32x32xf32>
    "tpu.trace_stop"() : () -> ()
    %c0_7 = arith.constant 0 : index
    %c0_8 = arith.constant 0 : index
    %c0_9 = arith.constant 0 : index
    %14 = vector.load %arg2[%c0_7, %c0_8, %c0_9] : memref<4x32x32xf32, #tpu.memory_space<vmem>>, vector<1x32x32xf32>
    %15 = vector.shape_cast %14 : vector<1x32x32xf32> to vector<32x32xf32>
    %16 = vector.shape_cast %15 : vector<32x32xf32> to vector<1x32x32xf32>
    %17 = vector.broadcast %16 : vector<1x32x32xf32> to vector<4x32x32xf32>
    %18 = arith.addf %13, %17 : vector<4x32x32xf32>
    %cst_10 = arith.constant dense<0xFF800000> : vector<4x32xf32>
    %19 = vector.multi_reduction <maximumf>, %18, %cst_10 [2] : vector<4x32x32xf32> to vector<4x32xf32>
    %20 = vector.shape_cast %19 : vector<4x32xf32> to vector<4x32x1xf32>
    %21 = vector.broadcast %20 : vector<4x32x1xf32> to vector<4x32x32xf32>
    %22 = arith.subf %18, %21 : vector<4x32x32xf32>
    %23 = math.exp %22 : vector<4x32x32xf32>
    %cst_11 = arith.constant dense<0.000000e+00> : vector<4x32xf32>
    %24 = vector.multi_reduction <add>, %23, %cst_11 [2] : vector<4x32x32xf32> to vector<4x32xf32>
    %25 = vector.shape_cast %24 : vector<4x32xf32> to vector<4x32x1xf32>
    %26 = tpu.reciprocal %25 {approx = true} : vector<4x32x1xf32> -> vector<4x32x1xf32>
    %27 = vector.broadcast %26 : vector<4x32x1xf32> to vector<4x32x32xf32>
    %28 = arith.mulf %23, %27 : vector<4x32x32xf32>
    "tpu.trace_start"() <{level = 10 : i32, message = "bnm,bmd->bnd"}> : () -> ()
    %cst_12 = arith.constant dense<0.000000e+00> : vector<4x32x8xf32>
    %29 = tpu.matmul %28, %12, %cst_12 {dimension_numbers = #tpu.dot_dimension_numbers<[2], [1], [1], [2], [0, 0, 0, 1, 1, 2], [0], [0]>} : vector<4x32x32xf32>, vector<4x32x8xf32>, vector<4x32x8xf32> -> vector<4x32x8xf32>
    "tpu.trace_stop"() : () -> ()
    %30 = vector.shape_cast %29 : vector<4x32x8xf32> to vector<128x8xf32>
    %c0_13 = arith.constant 0 : index
    %c0_14 = arith.constant 0 : index
    %c0_15 = arith.constant 0 : index
    %31 = vector.load %arg5[%c0_13, %c0_14, %c0_15] : memref<4x8x128xf32, #tpu.memory_space<vmem>>, vector<1x8x128xf32>
    %32 = vector.shape_cast %31 : vector<1x8x128xf32> to vector<8x128xf32>
    %cst_16 = arith.constant dense<0.000000e+00> : vector<128x128xf32>
    %33 = tpu.matmul %30, %32, %cst_16 {dimension_numbers = #tpu.dot_dimension_numbers<[1], [0], [0], [1], [0, 0, 1, 1], [], []>} : vector<128x8xf32>, vector<8x128xf32>, vector<128x128xf32> -> vector<128x128xf32>
    %34 = vector.extract_strided_slice %6 {offsets = [0, 8], sizes = [128, 8], strides = [1, 1]} : vector<128x96xf32> to vector<128x8xf32>
    %35 = vector.extract_strided_slice %6 {offsets = [0, 40], sizes = [128, 8], strides = [1, 1]} : vector<128x96xf32> to vector<128x8xf32>
    %36 = vector.extract_strided_slice %6 {offsets = [0, 72], sizes = [128, 8], strides = [1, 1]} : vector<128x96xf32> to vector<128x8xf32>
    %37 = vector.shape_cast %34 : vector<128x8xf32> to vector<4x32x8xf32>
    %38 = vector.shape_cast %35 : vector<128x8xf32> to vector<4x32x8xf32>
    %39 = vector.shape_cast %36 : vector<128x8xf32> to vector<4x32x8xf32>
    "tpu.trace_start"() <{level = 10 : i32, message = "bnd,bmd->bnm"}> : () -> ()
    %cst_17 = arith.constant dense<0.000000e+00> : vector<4x32x32xf32>
    %40 = tpu.matmul %37, %38, %cst_17 {dimension_numbers = #tpu.dot_dimension_numbers<[2], [2], [1], [1], [0, 0, 0, 1, 1, 1], [0], [0]>} : vector<4x32x8xf32>, vector<4x32x8xf32>, vector<4x32x32xf32> -> vector<4x32x32xf32>
    "tpu.trace_stop"() : () -> ()
    %c1 = arith.constant 1 : index
    %c0_18 = arith.constant 0 : index
    %c0_19 = arith.constant 0 : index
    %41 = vector.load %arg2[%c1, %c0_18, %c0_19] : memref<4x32x32xf32, #tpu.memory_space<vmem>>, vector<1x32x32xf32>
    %42 = vector.shape_cast %41 : vector<1x32x32xf32> to vector<32x32xf32>
    %43 = vector.shape_cast %42 : vector<32x32xf32> to vector<1x32x32xf32>
    %44 = vector.broadcast %43 : vector<1x32x32xf32> to vector<4x32x32xf32>
    %45 = arith.addf %40, %44 : vector<4x32x32xf32>
    %cst_20 = arith.constant dense<0xFF800000> : vector<4x32xf32>
    %46 = vector.multi_reduction <maximumf>, %45, %cst_20 [2] : vector<4x32x32xf32> to vector<4x32xf32>
    %47 = vector.shape_cast %46 : vector<4x32xf32> to vector<4x32x1xf32>
    %48 = vector.broadcast %47 : vector<4x32x1xf32> to vector<4x32x32xf32>
    %49 = arith.subf %45, %48 : vector<4x32x32xf32>
    %50 = math.exp %49 : vector<4x32x32xf32>
    %cst_21 = arith.constant dense<0.000000e+00> : vector<4x32xf32>
    %51 = vector.multi_reduction <add>, %50, %cst_21 [2] : vector<4x32x32xf32> to vector<4x32xf32>
    %52 = vector.shape_cast %51 : vector<4x32xf32> to vector<4x32x1xf32>
    %53 = tpu.reciprocal %52 {approx = true} : vector<4x32x1xf32> -> vector<4x32x1xf32>
    %54 = vector.broadcast %53 : vector<4x32x1xf32> to vector<4x32x32xf32>
    %55 = arith.mulf %50, %54 : vector<4x32x32xf32>
    "tpu.trace_start"() <{level = 10 : i32, message = "bnm,bmd->bnd"}> : () -> ()
    %cst_22 = arith.constant dense<0.000000e+00> : vector<4x32x8xf32>
    %56 = tpu.matmul %55, %39, %cst_22 {dimension_numbers = #tpu.dot_dimension_numbers<[2], [1], [1], [2], [0, 0, 0, 1, 1, 2], [0], [0]>} : vector<4x32x32xf32>, vector<4x32x8xf32>, vector<4x32x8xf32> -> vector<4x32x8xf32>
    "tpu.trace_stop"() : () -> ()
    %57 = vector.shape_cast %56 : vector<4x32x8xf32> to vector<128x8xf32>
    %c1_23 = arith.constant 1 : index
    %c0_24 = arith.constant 0 : index
    %c0_25 = arith.constant 0 : index
    %58 = vector.load %arg5[%c1_23, %c0_24, %c0_25] : memref<4x8x128xf32, #tpu.memory_space<vmem>>, vector<1x8x128xf32>
    %59 = vector.shape_cast %58 : vector<1x8x128xf32> to vector<8x128xf32>
    %cst_26 = arith.constant dense<0.000000e+00> : vector<128x128xf32>
    %60 = tpu.matmul %57, %59, %cst_26 {dimension_numbers = #tpu.dot_dimension_numbers<[1], [0], [0], [1], [0, 0, 1, 1], [], []>} : vector<128x8xf32>, vector<8x128xf32>, vector<128x128xf32> -> vector<128x128xf32>
    %61 = arith.addf %33, %60 : vector<128x128xf32>
    %62 = vector.extract_strided_slice %6 {offsets = [0, 16], sizes = [128, 8], strides = [1, 1]} : vector<128x96xf32> to vector<128x8xf32>
    %63 = vector.extract_strided_slice %6 {offsets = [0, 48], sizes = [128, 8], strides = [1, 1]} : vector<128x96xf32> to vector<128x8xf32>
    %64 = vector.extract_strided_slice %6 {offsets = [0, 80], sizes = [128, 8], strides = [1, 1]} : vector<128x96xf32> to vector<128x8xf32>
    %65 = vector.shape_cast %62 : vector<128x8xf32> to vector<4x32x8xf32>
    %66 = vector.shape_cast %63 : vector<128x8xf32> to vector<4x32x8xf32>
    %67 = vector.shape_cast %64 : vector<128x8xf32> to vector<4x32x8xf32>
    "tpu.trace_start"() <{level = 10 : i32, message = "bnd,bmd->bnm"}> : () -> ()
    %cst_27 = arith.constant dense<0.000000e+00> : vector<4x32x32xf32>
    %68 = tpu.matmul %65, %66, %cst_27 {dimension_numbers = #tpu.dot_dimension_numbers<[2], [2], [1], [1], [0, 0, 0, 1, 1, 1], [0], [0]>} : vector<4x32x8xf32>, vector<4x32x8xf32>, vector<4x32x32xf32> -> vector<4x32x32xf32>
    "tpu.trace_stop"() : () -> ()
    %c2 = arith.constant 2 : index
    %c0_28 = arith.constant 0 : index
    %c0_29 = arith.constant 0 : index
    %69 = vector.load %arg2[%c2, %c0_28, %c0_29] : memref<4x32x32xf32, #tpu.memory_space<vmem>>, vector<1x32x32xf32>
    %70 = vector.shape_cast %69 : vector<1x32x32xf32> to vector<32x32xf32>
    %71 = vector.shape_cast %70 : vector<32x32xf32> to vector<1x32x32xf32>
    %72 = vector.broadcast %71 : vector<1x32x32xf32> to vector<4x32x32xf32>
    %73 = arith.addf %68, %72 : vector<4x32x32xf32>
    %cst_30 = arith.constant dense<0xFF800000> : vector<4x32xf32>
    %74 = vector.multi_reduction <maximumf>, %73, %cst_30 [2] : vector<4x32x32xf32> to vector<4x32xf32>
    %75 = vector.shape_cast %74 : vector<4x32xf32> to vector<4x32x1xf32>
    %76 = vector.broadcast %75 : vector<4x32x1xf32> to vector<4x32x32xf32>
    %77 = arith.subf %73, %76 : vector<4x32x32xf32>
    %78 = math.exp %77 : vector<4x32x32xf32>
    %cst_31 = arith.constant dense<0.000000e+00> : vector<4x32xf32>
    %79 = vector.multi_reduction <add>, %78, %cst_31 [2] : vector<4x32x32xf32> to vector<4x32xf32>
    %80 = vector.shape_cast %79 : vector<4x32xf32> to vector<4x32x1xf32>
    %81 = tpu.reciprocal %80 {approx = true} : vector<4x32x1xf32> -> vector<4x32x1xf32>
    %82 = vector.broadcast %81 : vector<4x32x1xf32> to vector<4x32x32xf32>
    %83 = arith.mulf %78, %82 : vector<4x32x32xf32>
    "tpu.trace_start"() <{level = 10 : i32, message = "bnm,bmd->bnd"}> : () -> ()
    %cst_32 = arith.constant dense<0.000000e+00> : vector<4x32x8xf32>
    %84 = tpu.matmul %83, %67, %cst_32 {dimension_numbers = #tpu.dot_dimension_numbers<[2], [1], [1], [2], [0, 0, 0, 1, 1, 2], [0], [0]>} : vector<4x32x32xf32>, vector<4x32x8xf32>, vector<4x32x8xf32> -> vector<4x32x8xf32>
    "tpu.trace_stop"() : () -> ()
    %85 = vector.shape_cast %84 : vector<4x32x8xf32> to vector<128x8xf32>
    %c2_33 = arith.constant 2 : index
    %c0_34 = arith.constant 0 : index
    %c0_35 = arith.constant 0 : index
    %86 = vector.load %arg5[%c2_33, %c0_34, %c0_35] : memref<4x8x128xf32, #tpu.memory_space<vmem>>, vector<1x8x128xf32>
    %87 = vector.shape_cast %86 : vector<1x8x128xf32> to vector<8x128xf32>
    %cst_36 = arith.constant dense<0.000000e+00> : vector<128x128xf32>
    %88 = tpu.matmul %85, %87, %cst_36 {dimension_numbers = #tpu.dot_dimension_numbers<[1], [0], [0], [1], [0, 0, 1, 1], [], []>} : vector<128x8xf32>, vector<8x128xf32>, vector<128x128xf32> -> vector<128x128xf32>
    %89 = arith.addf %61, %88 : vector<128x128xf32>
    %90 = vector.extract_strided_slice %6 {offsets = [0, 24], sizes = [128, 8], strides = [1, 1]} : vector<128x96xf32> to vector<128x8xf32>
    %91 = vector.extract_strided_slice %6 {offsets = [0, 56], sizes = [128, 8], strides = [1, 1]} : vector<128x96xf32> to vector<128x8xf32>
    %92 = vector.extract_strided_slice %6 {offsets = [0, 88], sizes = [128, 8], strides = [1, 1]} : vector<128x96xf32> to vector<128x8xf32>
    %93 = vector.shape_cast %90 : vector<128x8xf32> to vector<4x32x8xf32>
    %94 = vector.shape_cast %91 : vector<128x8xf32> to vector<4x32x8xf32>
    %95 = vector.shape_cast %92 : vector<128x8xf32> to vector<4x32x8xf32>
    "tpu.trace_start"() <{level = 10 : i32, message = "bnd,bmd->bnm"}> : () -> ()
    %cst_37 = arith.constant dense<0.000000e+00> : vector<4x32x32xf32>
    %96 = tpu.matmul %93, %94, %cst_37 {dimension_numbers = #tpu.dot_dimension_numbers<[2], [2], [1], [1], [0, 0, 0, 1, 1, 1], [0], [0]>} : vector<4x32x8xf32>, vector<4x32x8xf32>, vector<4x32x32xf32> -> vector<4x32x32xf32>
    "tpu.trace_stop"() : () -> ()
    %c3 = arith.constant 3 : index
    %c0_38 = arith.constant 0 : index
    %c0_39 = arith.constant 0 : index
    %97 = vector.load %arg2[%c3, %c0_38, %c0_39] : memref<4x32x32xf32, #tpu.memory_space<vmem>>, vector<1x32x32xf32>
    %98 = vector.shape_cast %97 : vector<1x32x32xf32> to vector<32x32xf32>
    %99 = vector.shape_cast %98 : vector<32x32xf32> to vector<1x32x32xf32>
    %100 = vector.broadcast %99 : vector<1x32x32xf32> to vector<4x32x32xf32>
    %101 = arith.addf %96, %100 : vector<4x32x32xf32>
    %cst_40 = arith.constant dense<0xFF800000> : vector<4x32xf32>
    %102 = vector.multi_reduction <maximumf>, %101, %cst_40 [2] : vector<4x32x32xf32> to vector<4x32xf32>
    %103 = vector.shape_cast %102 : vector<4x32xf32> to vector<4x32x1xf32>
    %104 = vector.broadcast %103 : vector<4x32x1xf32> to vector<4x32x32xf32>
    %105 = arith.subf %101, %104 : vector<4x32x32xf32>
    %106 = math.exp %105 : vector<4x32x32xf32>
    %cst_41 = arith.constant dense<0.000000e+00> : vector<4x32xf32>
    %107 = vector.multi_reduction <add>, %106, %cst_41 [2] : vector<4x32x32xf32> to vector<4x32xf32>
    %108 = vector.shape_cast %107 : vector<4x32xf32> to vector<4x32x1xf32>
    %109 = tpu.reciprocal %108 {approx = true} : vector<4x32x1xf32> -> vector<4x32x1xf32>
    %110 = vector.broadcast %109 : vector<4x32x1xf32> to vector<4x32x32xf32>
    %111 = arith.mulf %106, %110 : vector<4x32x32xf32>
    "tpu.trace_start"() <{level = 10 : i32, message = "bnm,bmd->bnd"}> : () -> ()
    %cst_42 = arith.constant dense<0.000000e+00> : vector<4x32x8xf32>
    %112 = tpu.matmul %111, %95, %cst_42 {dimension_numbers = #tpu.dot_dimension_numbers<[2], [1], [1], [2], [0, 0, 0, 1, 1, 2], [0], [0]>} : vector<4x32x32xf32>, vector<4x32x8xf32>, vector<4x32x8xf32> -> vector<4x32x8xf32>
    "tpu.trace_stop"() : () -> ()
    %113 = vector.shape_cast %112 : vector<4x32x8xf32> to vector<128x8xf32>
    %c3_43 = arith.constant 3 : index
    %c0_44 = arith.constant 0 : index
    %c0_45 = arith.constant 0 : index
    %114 = vector.load %arg5[%c3_43, %c0_44, %c0_45] : memref<4x8x128xf32, #tpu.memory_space<vmem>>, vector<1x8x128xf32>
    %115 = vector.shape_cast %114 : vector<1x8x128xf32> to vector<8x128xf32>
    %cst_46 = arith.constant dense<0.000000e+00> : vector<128x128xf32>
    %116 = tpu.matmul %113, %115, %cst_46 {dimension_numbers = #tpu.dot_dimension_numbers<[1], [0], [0], [1], [0, 0, 1, 1], [], []>} : vector<128x8xf32>, vector<8x128xf32>, vector<128x128xf32> -> vector<128x128xf32>
    %117 = arith.addf %89, %116 : vector<128x128xf32>
    %c0_47 = arith.constant 0 : index
    %c0_48 = arith.constant 0 : index
    %118 = vector.load %arg6[%c0_47, %c0_48] : memref<1x128xf32, #tpu.memory_space<vmem>>, vector<1x128xf32>
    %119 = vector.broadcast %118 : vector<1x128xf32> to vector<128x128xf32>
    %120 = arith.addf %117, %119 : vector<128x128xf32>
    %121 = vector.shape_cast %120 : vector<128x128xf32> to vector<4x32x128xf32>
    %c0_49 = arith.constant 0 : index
    %c0_50 = arith.constant 0 : index
    %c0_51 = arith.constant 0 : index
    %122 = vector.load %arg7[%c0_49, %c0_50, %c0_51] : memref<4x32x128xf32, #tpu.memory_space<vmem>>, vector<4x32x128xf32>
    tpu.vector_store %arg7[%c0_49, %c0_50, %c0_51], %121 {strides = array<i32>} : memref<4x32x128xf32, #tpu.memory_space<vmem>>, vector<4x32x128xf32>,
    return
  }
  func.func @transform_0(%arg0: i32) -> (i32, i32, i32) {
    %c0_i32 = arith.constant 0 : i32
    %c0_i32_0 = arith.constant 0 : i32
    %c0_i32_1 = arith.constant 0 : i32
    return %arg0, %c0_i32, %c0_i32_0 : i32, i32, i32
  }
  func.func @transform_1(%arg0: i32) -> (i32, i32, i32) {
    %c0_i32 = arith.constant 0 : i32
    %c0_i32_0 = arith.constant 0 : i32
    %c0_i32_1 = arith.constant 0 : i32
    %c0_i32_2 = arith.constant 0 : i32
    return %c0_i32, %c0_i32_0, %c0_i32_1 : i32, i32, i32
  }
  func.func @transform_2(%arg0: i32) -> (i32, i32) {
    %c0_i32 = arith.constant 0 : i32
    %c0_i32_0 = arith.constant 0 : i32
    %c0_i32_1 = arith.constant 0 : i32
    return %c0_i32, %c0_i32_0 : i32, i32
  }
  func.func @transform_3(%arg0: i32) -> (i32, i32) {
    %c0_i32 = arith.constant 0 : i32
    %c0_i32_0 = arith.constant 0 : i32
    %c0_i32_1 = arith.constant 0 : i32
    return %c0_i32, %c0_i32_0 : i32, i32
  }
  func.func @transform_4(%arg0: i32) -> (i32, i32, i32) {
    %c0_i32 = arith.constant 0 : i32
    %c0_i32_0 = arith.constant 0 : i32
    %c0_i32_1 = arith.constant 0 : i32
    %c0_i32_2 = arith.constant 0 : i32
    return %c0_i32, %c0_i32_0, %c0_i32_1 : i32, i32, i32
  }
  func.func @transform_5(%arg0: i32) -> (i32, i32) {
    %c0_i32 = arith.constant 0 : i32
    %c0_i32_0 = arith.constant 0 : i32
    %c0_i32_1 = arith.constant 0 : i32
    return %c0_i32, %c0_i32_0 : i32, i32
  }
  func.func @transform_6(%arg0: i32) -> (i32, i32, i32) {
    %c0_i32 = arith.constant 0 : i32
    %c0_i32_0 = arith.constant 0 : i32
    %c0_i32_1 = arith.constant 0 : i32
    return %arg0, %c0_i32, %c0_i32_0 : i32, i32, i32
  }
}

</mosaic_0001>

<llo_original>
// kernel: tpu_custom_call.1
$region0: #{tpu_custom_call.1}
  #allocation0 [shape = 'u32[]', space=smem, size = 0x4, offset = 0x4, fixed_abs, tag = 'smem constant byte address 0x4 - core index']
  #allocation1 [shape = 'u32[72,128]{1,0:T(1,128)}', space=vmem, size = 0x9000, scoped, tag = 'internal scratch']
  %s0 = inlined_call_operand.hbm [shape: f32[8,32,128], index: 0, kind: input, shape index: {}]
  %s1 = inlined_call_operand.vmem [shape: f32[4,32,32], index: 1, kind: input, shape index: {}]
  %s2 = inlined_call_operand.vmem [shape: f32[128,96], index: 2, kind: input, shape index: {}]
  %s3 = inlined_call_operand.vmem [shape: f32[1,96], index: 3, kind: input, shape index: {}]
  %s4 = inlined_call_operand.vmem [shape: f32[4,8,128], index: 4, kind: input, shape index: {}]
  %s5 = inlined_call_operand.vmem [shape: f32[1,128], index: 5, kind: input, shape index: {}]
  %s6 = inlined_call_operand.hbm [shape: f32[8,32,128], index: 6, kind: output, shape index: {}]
  %s7 = sld [smem:[#allocation0]]
  $region61: #{tpu_custom_call.1} parent=0
    _
  %s9 = ssub.s32 1, %s7
  %s10 = scalar_select 0, %s9, %s7
  $region1: #{tpu_custom_call.1} parent=0
    #allocation2 [shape = 'u8[131072]{0}', space=vmem, size = 0x20000, scoped, tag = 'input window, operand 0']
    #allocation3 [shape = 's32[2]{0}', space=sflag, size = 0x8, scoped, tag = 'scoped memory for tpu_custom_call.1']
    #allocation4 [shape = 's32[2]{0}', space=sflag, size = 0x8, scoped, tag = 'scoped memory for tpu_custom_call.1']
    #allocation5 [shape = 'u8[131072]{0}', space=vmem, size = 0x20000, scoped, tag = 'output window, operand 0']
    %11 = vsyncpa [#allocation3], 0
    %s12 = scalar_lea.sflag [#allocation3], 1
    %13 = vsyncpa %s12, 0
    %14 = vsyncpa [#allocation4], 0
    %s15 = scalar_lea.sflag [#allocation4], 1
    %16 = vsyncpa %s15, 0
    loop: start=0, step=1, limit=4
    $region2: #{tpu_custom_call.1} parent=1 // loop_pre_header
      _
    $region3: #{tpu_custom_call.1} parent=1 // loop_header
      %s18 = sphi 0, %s22
      %p19 = scmp.ge.s32.totalorder %s18, 4
      %s28 = sphi 0, %s30
      %s31 = sphi 0, %s28
      %s32 = sphi 0, %s31
      %s48 = sphi 0, %s32
      %s52 = sphi 0, %s52
      %s54 = sphi 0, %s52
      %s55 = sphi 0, %s54
      %s69 = sphi 0, %s55
      %s73 = sphi 0, %s73
      %s75 = sphi 0, %s73
      %s76 = sphi 0, %s75
      %s90 = sphi 0, %s76
      %s94 = sphi 0, %s94
      %s96 = sphi 0, %s94
      %s97 = sphi 0, %s96
      %s111 = sphi 0, %s97
      %s115 = sphi 0, %s115
      %s117 = sphi 0, %s115
      %s118 = sphi 0, %s117
      %s132 = sphi 0, %s118
      %s136 = sphi 0, %s136
      %s138 = sphi 0, %s136
      %s139 = sphi 0, %s138
      %s153 = sphi 0, %s139
      %s159 = sphi 0, %s161
      %s162 = sphi 0, %s159
      %s163 = sphi 0, %s162
      %s179 = sphi 0, %s163
    $region4: #{tpu_custom_call.1} parent=1 // loop_header_branch
      %21 = sbr.rel (%p19) target = $region8
    $region5: #{tpu_custom_call.1} parent=1 // loop_body
      %s23 = ssub.s32 %s18, 1
      %s24 = ssub.s32 %s18, 2
      %s25 = sadd.s32 %s18, 1
      %s26 = ssub.s32 %s18, %s25
      %p27 = scmp.eq.s32.totalorder %s26, 0
      %s29 = sadd.s32 %s28, 1
      %s30 = scalar_select %p27, %s28, %s29
      %p33 = pneg %p27
      %p34 = scmp.eq.s32.totalorder %s18, 1
      %p35 = por %p33, %p34
      %p36 = scmp.ne.s32.totalorder %s28, %s31
      %p37 = scmp.eq.s32.totalorder %s18, 0
      %p38 = por %p36, %p37
      %p39 = scmp.ne.s32.totalorder %s28, %s31
      %p40 = scmp.eq.s32.totalorder %s23, 1
      %p41 = por %p39, %p40
      %p42 = scmp.ne.s32.totalorder %s31, %s32
      %p43 = scmp.eq.s32.totalorder %s23, 0
      %p44 = por %p42, %p43
      %p45 = scmp.ne.s32.totalorder %s31, %s32
      %p46 = scmp.eq.s32.totalorder %s24, 1
      %p47 = por %p45, %p46
      %p49 = scmp.ne.s32.totalorder %s32, %s48
      %p50 = scmp.eq.s32.totalorder %s24, 0
      %p51 = por %p49, %p50
      %s53 = sadd.s32 %s52, 1
      %p56 = scmp.eq.s32.totalorder %s18, 1
      %p57 = scmp.ne.s32.totalorder %s52, %s54
      %p58 = scmp.eq.s32.totalorder %s18, 0
      %p59 = por %p57, %p58
      %p60 = scmp.ne.s32.totalorder %s52, %s54
      %p61 = scmp.eq.s32.totalorder %s23, 1
      %p62 = por %p60, %p61
      %p63 = scmp.ne.s32.totalorder %s54, %s55
      %p64 = scmp.eq.s32.totalorder %s23, 0
      %p65 = por %p63, %p64
      %p66 = scmp.ne.s32.totalorder %s54, %s55
      %p67 = scmp.eq.s32.totalorder %s24, 1
      %p68 = por %p66, %p67
      %p70 = scmp.ne.s32.totalorder %s55, %s69
      %p71 = scmp.eq.s32.totalorder %s24, 0
      %p72 = por %p70, %p71
      %s74 = sadd.s32 %s73, 1
      %p77 = scmp.eq.s32.totalorder %s18, 1
      %p78 = scmp.ne.s32.totalorder %s73, %s75
      %p79 = scmp.eq.s32.totalorder %s18, 0
      %p80 = por %p78, %p79
      %p81 = scmp.ne.s32.totalorder %s73, %s75
      %p82 = scmp.eq.s32.totalorder %s23, 1
      %p83 = por %p81, %p82
      %p84 = scmp.ne.s32.totalorder %s75, %s76
      %p85 = scmp.eq.s32.totalorder %s23, 0
      %p86 = por %p84, %p85
      %p87 = scmp.ne.s32.totalorder %s75, %s76
      %p88 = scmp.eq.s32.totalorder %s24, 1
      %p89 = por %p87, %p88
      %p91 = scmp.ne.s32.totalorder %s76, %s90
      %p92 = scmp.eq.s32.totalorder %s24, 0
      %p93 = por %p91, %p92
      %s95 = sadd.s32 %s94, 1
      %p98 = scmp.eq.s32.totalorder %s18, 1
      %p99 = scmp.ne.s32.totalorder %s94, %s96
      %p100 = scmp.eq.s32.totalorder %s18, 0
      %p101 = por %p99, %p100
      %p102 = scmp.ne.s32.totalorder %s94, %s96
      %p103 = scmp.eq.s32.totalorder %s23, 1
      %p104 = por %p102, %p103
      %p105 = scmp.ne.s32.totalorder %s96, %s97
      %p106 = scmp.eq.s32.totalorder %s23, 0
      %p107 = por %p105, %p106
      %p108 = scmp.ne.s32.totalorder %s96, %s97
      %p109 = scmp.eq.s32.totalorder %s24, 1
      %p110 = por %p108, %p109
      %p112 = scmp.ne.s32.totalorder %s97, %s111
      %p113 = scmp.eq.s32.totalorder %s24, 0
      %p114 = por %p112, %p113
      %s116 = sadd.s32 %s115, 1
      %p119 = scmp.eq.s32.totalorder %s18, 1
      %p120 = scmp.ne.s32.totalorder %s115, %s117
      %p121 = scmp.eq.s32.totalorder %s18, 0
      %p122 = por %p120, %p121
      %p123 = scmp.ne.s32.totalorder %s115, %s117
      %p124 = scmp.eq.s32.totalorder %s23, 1
      %p125 = por %p123, %p124
      %p126 = scmp.ne.s32.totalorder %s117, %s118
      %p127 = scmp.eq.s32.totalorder %s23, 0
      %p128 = por %p126, %p127
      %p129 = scmp.ne.s32.totalorder %s117, %s118
      %p130 = scmp.eq.s32.totalorder %s24, 1
      %p131 = por %p129, %p130
      %p133 = scmp.ne.s32.totalorder %s118, %s132
      %p134 = scmp.eq.s32.totalorder %s24, 0
      %p135 = por %p133, %p134
      %s137 = sadd.s32 %s136, 1
      %p140 = scmp.eq.s32.totalorder %s18, 1
      %p141 = scmp.ne.s32.totalorder %s136, %s138
      %p142 = scmp.eq.s32.totalorder %s18, 0
      %p143 = por %p141, %p142
      %p144 = scmp.ne.s32.totalorder %s136, %s138
      %p145 = scmp.eq.s32.totalorder %s23, 1
      %p146 = por %p144, %p145
      %p147 = scmp.ne.s32.totalorder %s138, %s139
      %p148 = scmp.eq.s32.totalorder %s23, 0
      %p149 = por %p147, %p148
      %p150 = scmp.ne.s32.totalorder %s138, %s139
      %p151 = scmp.eq.s32.totalorder %s24, 1
      %p152 = por %p150, %p151
      %p154 = scmp.ne.s32.totalorder %s139, %s153
      %p155 = scmp.eq.s32.totalorder %s24, 0
      %p156 = por %p154, %p155
      %s157 = ssub.s32 %s18, %s25
      %p158 = scmp.eq.s32.totalorder %s157, 0
      %s160 = sadd.s32 %s159, 1
      %s161 = scalar_select %p158, %s159, %s160
      %p164 = pneg %p158
      %p165 = scmp.eq.s32.totalorder %s18, 1
      %p166 = por %p164, %p165
      %p167 = scmp.ne.s32.totalorder %s159, %s162
      %p168 = scmp.eq.s32.totalorder %s18, 0
      %p169 = por %p167, %p168
      %p170 = scmp.ne.s32.totalorder %s159, %s162
      %p171 = scmp.eq.s32.totalorder %s23, 1
      %p172 = por %p170, %p171
      %p173 = scmp.ne.s32.totalorder %s162, %s163
      %p174 = scmp.eq.s32.totalorder %s23, 0
      %p175 = por %p173, %p174
      %p176 = scmp.ne.s32.totalorder %s162, %s163
      %p177 = scmp.eq.s32.totalorder %s24, 1
      %p178 = por %p176, %p177
      %p180 = scmp.ne.s32.totalorder %s163, %s179
      %p181 = scmp.eq.s32.totalorder %s24, 0
      %p182 = por %p180, %p181
      %p183 = scmp.le.s32.totalorder 1, %s18
      %p184 = scmp.lt.s32.totalorder %s18, 3
      %p185 = pnand %p183, %p184
      %p186 = pneg %p185
      // Predicated region
      $region9: #{tpu_custom_call.1} parent=5 // pred_check
        _
      $region10: #{tpu_custom_call.1} parent=5 // pred_check_branch
        %188 = sbr.rel (%p185) target = $region12
      $region11: #{tpu_custom_call.1} parent=5 // pred_region
        %s189 = ssub.s32 %s18, 1
        // Predicated region
        $region13: #{tpu_custom_call.1} parent=11 // pred_check
          %p190 = pneg %p65
        $region14: #{tpu_custom_call.1} parent=11 // pred_check_branch
          %192 = sbr.rel (%p190) target = $region16
        $region15: #{tpu_custom_call.1} parent=11 // pred_region
          _
        $region16: #{tpu_custom_call.1} parent=11 // pred_fallthru
          _
        // Predicated region
        $region17: #{tpu_custom_call.1} parent=11 // pred_check
          %p193 = pneg %p86
        $region18: #{tpu_custom_call.1} parent=11 // pred_check_branch
          %195 = sbr.rel (%p193) target = $region20
        $region19: #{tpu_custom_call.1} parent=11 // pred_region
          _
        $region20: #{tpu_custom_call.1} parent=11 // pred_fallthru
          _
        // Predicated region
        $region21: #{tpu_custom_call.1} parent=11 // pred_check
          %p196 = pneg %p107
        $region22: #{tpu_custom_call.1} parent=11 // pred_check_branch
          %198 = sbr.rel (%p196) target = $region24
        $region23: #{tpu_custom_call.1} parent=11 // pred_region
          _
        $region24: #{tpu_custom_call.1} parent=11 // pred_fallthru
          _
        // Predicated region
        $region25: #{tpu_custom_call.1} parent=11 // pred_check
          %p199 = pneg %p128
        $region26: #{tpu_custom_call.1} parent=11 // pred_check_branch
          %201 = sbr.rel (%p199) target = $region28
        $region27: #{tpu_custom_call.1} parent=11 // pred_region
          _
        $region28: #{tpu_custom_call.1} parent=11 // pred_fallthru
          _
        // Predicated region
        $region29: #{tpu_custom_call.1} parent=11 // pred_check
          %p202 = pneg %p149
        $region30: #{tpu_custom_call.1} parent=11 // pred_check_branch
          %204 = sbr.rel (%p202) target = $region32
        $region31: #{tpu_custom_call.1} parent=11 // pred_region
          _
        $region32: #{tpu_custom_call.1} parent=11 // pred_fallthru
          _
      $region12: #{tpu_custom_call.1} parent=5 // pred_fallthru
        _
      %p205 = scmp.lt.s32.totalorder %s18, 2
      // Predicated region
      $region33: #{tpu_custom_call.1} parent=5 // pred_check
        %p206 = pneg %p205
      $region34: #{tpu_custom_call.1} parent=5 // pred_check_branch
        %208 = sbr.rel (%p206) target = $region36
      $region35: #{tpu_custom_call.1} parent=5 // pred_region
        // Predicated region
        $region37: #{tpu_custom_call.1} parent=35 // pred_check
          %p209 = pneg %p38
        $region38: #{tpu_custom_call.1} parent=35 // pred_check_branch
          %211 = sbr.rel (%p209) target = $region40
        $region39: #{tpu_custom_call.1} parent=35 // pred_region
          %s212 = sand.u32 %s28, 1
          %s213 = scalar_lea.sflag [#allocation3], %s212
          %s214 = sand.u32 %s28, 1
          %s215 = smul.addr %s214, 128
          %s216 = scalar_lea.vmem [#allocation2], %s215
          %s217 = smul.u32 4, %s18
          %219 = vsyncadd %s213, 0
          %s220 = smul.addr %s217, 4
          %s221 = smul.addr %s220, 8
          %s222 = scalar_lea.hbm %s0, %s221
          %s223 = sshll.u32 %s222, 4
          %s224 = int_to_ptr.hbm [resolvable:$true] %s223
          %s225 = sshll.u32 %s216, 4
          %s226 = int_to_ptr.vmem [resolvable:$true] %s225
          %231 = dma.hbm_to_vmem [thread:$0]  %s224, 2048, %s226, %s213, 128, 128, 8
        $region40: #{tpu_custom_call.1} parent=35 // pred_fallthru
          _
      $region36: #{tpu_custom_call.1} parent=5 // pred_fallthru
        _
      %p232 = scmp.le.s32.totalorder 1, %s18
      %p233 = scmp.lt.s32.totalorder %s18, 3
      %p234 = pnand %p232, %p233
      %p235 = pneg %p234
      // Predicated region
      $region41: #{tpu_custom_call.1} parent=5 // pred_check
        _
      $region42: #{tpu_custom_call.1} parent=5 // pred_check_branch
        %237 = sbr.rel (%p234) target = $region44
      $region43: #{tpu_custom_call.1} parent=5 // pred_region
        %s238 = ssub.s32 %s18, 1
        %s239 = sand.u32 %s31, 1
        %s240 = scalar_lea.sflag [#allocation3], %s239
        %s241 = sand.u32 %s31, 1
        %s242 = smul.addr %s241, 128
        %s243 = scalar_lea.vmem [#allocation2], %s242
        // Predicated region
        $region45: #{tpu_custom_call.1} parent=43 // pred_check
          %p244 = pneg %p44
        $region46: #{tpu_custom_call.1} parent=43 // pred_check_branch
          %246 = sbr.rel (%p244) target = $region48
        $region47: #{tpu_custom_call.1} parent=43 // pred_region
          %248 = dma.done %s240, 2048
        $region48: #{tpu_custom_call.1} parent=43 // pred_fallthru
          _
        %s249 = sand.u32 %s31, 1
        %s250 = scalar_lea.sflag [#allocation3], %s249
        %s251 = sand.u32 %s31, 1
        %s252 = smul.addr %s251, 128
        %s253 = scalar_lea.vmem [#allocation2], %s252
        %p254 = pneg %p44
        %p255 = pneg %p41
        %p256 = pneg %p65
        %p257 = pneg %p62
        %p258 = pneg %p86
        %p259 = pneg %p83
        %p260 = pneg %p107
        %p261 = pneg %p104
        %p262 = pneg %p128
        %p263 = pneg %p125
        %p264 = pneg %p149
        %p265 = pneg %p146
        %p266 = pneg %p175
        %p267 = pneg %p172
        %s268 = sand.u32 %s162, 1
        %s269 = scalar_lea.sflag [#allocation4], %s268
        %s270 = sand.u32 %s162, 1
        %s271 = smul.addr %s270, 128
        %s272 = scalar_lea.vmem [#allocation5], %s271
        %s273 = smul.u32 4, %s23
        %s274 = smul.u32 4, %s23
        %v275 = vld [vmem:[%s243] sm:$0xff]
        %v276 = vld [vmem:[%s243 + $0x8] sm:$0xff]
        %v277 = vld [vmem:[%s243 + $0x10] sm:$0xff]
        %v278 = vld [vmem:[%s243 + $0x18] sm:$0xff]
        %v279 = vld [vmem:[%s243 + $0x20] sm:$0xff]
        %v280 = vld [vmem:[%s243 + $0x28] sm:$0xff]
        %v281 = vld [vmem:[%s243 + $0x30] sm:$0xff]
        %v282 = vld [vmem:[%s243 + $0x38] sm:$0xff]
        %v283 = vld [vmem:[%s243 + $0x40] sm:$0xff]
        %v284 = vld [vmem:[%s243 + $0x48] sm:$0xff]
        %v285 = vld [vmem:[%s243 + $0x50] sm:$0xff]
        %v286 = vld [vmem:[%s243 + $0x58] sm:$0xff]
        %v287 = vld [vmem:[%s243 + $0x60] sm:$0xff]
        %v288 = vld [vmem:[%s243 + $0x68] sm:$0xff]
        %v289 = vld [vmem:[%s243 + $0x70] sm:$0xff]
        %v290 = vld [vmem:[%s243 + $0x78] sm:$0xff]
        %v291 = vld [vmem:[%s2] sm:$0xff]
        %v292 = vld [vmem:[%s2 + $0x8] sm:$0xff]
        %v293 = vld [vmem:[%s2 + $0x10] sm:$0xff]
        %v294 = vld [vmem:[%s2 + $0x18] sm:$0xff]
        %v295 = vld [vmem:[%s2 + $0x20] sm:$0xff]
        %v296 = vld [vmem:[%s2 + $0x28] sm:$0xff]
        %v297 = vld [vmem:[%s2 + $0x30] sm:$0xff]
        %v298 = vld [vmem:[%s2 + $0x38] sm:$0xff]
        %v299 = vld [vmem:[%s2 + $0x40] sm:$0xff]
        %v300 = vld [vmem:[%s2 + $0x48] sm:$0xff]
        %v301 = vld [vmem:[%s2 + $0x50] sm:$0xff]
        %v302 = vld [vmem:[%s2 + $0x58] sm:$0xff]
        %v303 = vld [vmem:[%s2 + $0x60] sm:$0xff]
        %v304 = vld [vmem:[%s2 + $0x68] sm:$0xff]
        %v305 = vld [vmem:[%s2 + $0x70] sm:$0xff]
        %v306 = vld [vmem:[%s2 + $0x78] sm:$0xff]
        %v307 = vld [vmem:[%s3] sm:$0x1]
        %v309 = vperm.slane %v307, 0
        %311 = vmatpush.msra.mxu0 %v306
        %312 = vmatpush.msra.mxu0 %v305
        %313 = vmatpush.msra.mxu0 %v304
        %314 = vmatpush.msra.mxu0 %v303
        %315 = vmatpush.msra.mxu0 %v302
        %316 = vmatpush.msra.mxu0 %v301
        %317 = vmatpush.msra.mxu0 %v300
        %318 = vmatpush.msra.mxu0 %v299
        %319 = vmatpush.msra.mxu0 %v298
        %320 = vmatpush.msra.mxu0 %v297
        %321 = vmatpush.msra.mxu0 %v296
        %322 = vmatpush.msra.mxu0 %v295
        %323 = vmatpush.msra.mxu0 %v294
        %324 = vmatpush.msra.mxu0 %v293
        %325 = vmatpush.msra.mxu0 %v292
        %326 = vmatpush.msra.mxu0 %v291
        %327 = vmatmul.f32.gmra.mxu0 %v275
        %v328 = vpop.f32.mrf.mxu0
        %v329 = vadd.f32 %v309, %v328
        %330 = vmatmul.f32.gmra.mxu0 %v276
        %v331 = vpop.f32.mrf.mxu0
        %v332 = vadd.f32 %v309, %v331
        %333 = vmatmul.f32.gmra.mxu0 %v277
        %v334 = vpop.f32.mrf.mxu0
        %v335 = vadd.f32 %v309, %v334
        %336 = vmatmul.f32.gmra.mxu0 %v278
        %v337 = vpop.f32.mrf.mxu0
        %v338 = vadd.f32 %v309, %v337
        %339 = vmatmul.f32.gmra.mxu0 %v279
        %v340 = vpop.f32.mrf.mxu0
        %v341 = vadd.f32 %v309, %v340
        %342 = vmatmul.f32.gmra.mxu0 %v280
        %v343 = vpop.f32.mrf.mxu0
        %v344 = vadd.f32 %v309, %v343
        %345 = vmatmul.f32.gmra.mxu0 %v281
        %v346 = vpop.f32.mrf.mxu0
        %v347 = vadd.f32 %v309, %v346
        %348 = vmatmul.f32.gmra.mxu0 %v282
        %v349 = vpop.f32.mrf.mxu0
        %v350 = vadd.f32 %v309, %v349
        %351 = vmatmul.f32.gmra.mxu0 %v283
        %v352 = vpop.f32.mrf.mxu0
        %v353 = vadd.f32 %v309, %v352
        %354 = vmatmul.f32.gmra.mxu0 %v284
        %v355 = vpop.f32.mrf.mxu0
        %v356 = vadd.f32 %v309, %v355
        %357 = vmatmul.f32.gmra.mxu0 %v285
        %v358 = vpop.f32.mrf.mxu0
        %v359 = vadd.f32 %v309, %v358
        %360 = vmatmul.f32.gmra.mxu0 %v286
        %v361 = vpop.f32.mrf.mxu0
        %v362 = vadd.f32 %v309, %v361
        %363 = vmatmul.f32.gmra.mxu0 %v287
        %v364 = vpop.f32.mrf.mxu0
        %v365 = vadd.f32 %v309, %v364
        %366 = vmatmul.f32.gmra.mxu0 %v288
        %v367 = vpop.f32.mrf.mxu0
        %v368 = vadd.f32 %v309, %v367
        %369 = vmatmul.f32.gmra.mxu0 %v289
        %v370 = vpop.f32.mrf.mxu0
        %v371 = vadd.f32 %v309, %v370
        %372 = vmatmul.f32.gmra.mxu0 %v290
        %v373 = vpop.f32.mrf.mxu0
        %v374 = vadd.f32 %v309, %v373
        %375 = vdwg.mxu0
        %v376 = vld [vmem:[%s1] sm:$0xff]
        %v377 = vld [vmem:[%s1 + $0x8] sm:$0xff]
        %v378 = vld [vmem:[%s1 + $0x10] sm:$0xff]
        %v379 = vld [vmem:[%s1 + $0x18] sm:$0xff]
        %384 = vrot.lane.b32.xlu0 %v329, 96
        %v385 = vpop.permute.xlu0 %384
        %386 = vrot.lane.b32.xlu0 %v332, 96
        %v387 = vpop.permute.xlu0 %386
        %388 = vrot.lane.b32.xlu0 %v335, 96
        %v389 = vpop.permute.xlu0 %388
        %390 = vrot.lane.b32.xlu0 %v338, 96
        %v391 = vpop.permute.xlu0 %390
        %vm392 = vcmask 64512
        %v393 = vsel %vm392, %v329, 0
        %v395 = vsel %vm392, %v332, 0
        %v397 = vsel %vm392, %v335, 0
        %v399 = vsel %vm392, %v338, 0
        %v401 = vsel %vm392, %v385, 0
        %v403 = vsel %vm392, %v387, 0
        %v405 = vsel %vm392, %v389, 0
        %v407 = vsel %vm392, %v391, 0
        %409 = vmatpush.xpose.msra.mxu0 0.0
        %410 = vmatpush.xpose.msra.mxu0 0.0
        %411 = vmatpush.xpose.msra.mxu0 0.0
        %412 = vmatpush.xpose.msra.mxu0 0.0
        %413 = vmatpush.xpose.msra.mxu0 0.0
        %414 = vmatpush.xpose.msra.mxu0 0.0
        %415 = vmatpush.xpose.msra.mxu0 0.0
        %416 = vmatpush.xpose.msra.mxu0 0.0
        %417 = vmatpush.xpose.msra.mxu0 0.0
        %418 = vmatpush.xpose.msra.mxu0 0.0
        %419 = vmatpush.xpose.msra.mxu0 0.0
        %420 = vmatpush.xpose.msra.mxu0 0.0
        %421 = vmatpush.xpose.msra.mxu0 %v407
        %422 = vmatpush.xpose.msra.mxu0 %v405
        %423 = vmatpush.xpose.msra.mxu0 %v403
        %424 = vmatpush.xpose.msra.mxu0 %v401
        %425 = vmatmul.f32.gmra.mxu0 %v393
        %v426 = vpop.f32.mrf.mxu0
        %v427 = vadd.f32 %v376, %v426
        %428 = vmatmul.f32.gmra.mxu0 %v395
        %v429 = vpop.f32.mrf.mxu0
        %v430 = vadd.f32 %v377, %v429
        %431 = vmatmul.f32.gmra.mxu0 %v397
        %v432 = vpop.f32.mrf.mxu0
        %v433 = vadd.f32 %v378, %v432
        %434 = vmatmul.f32.gmra.mxu0 %v399
        %v435 = vpop.f32.mrf.mxu0
        %v436 = vadd.f32 %v379, %v435
        %437 = vdwg.mxu0
        %442 = vrot.lane.b32.xlu0 %v341, 96
        %v443 = vpop.permute.xlu0 %442
        %444 = vrot.lane.b32.xlu0 %v344, 96
        %v445 = vpop.permute.xlu0 %444
        %446 = vrot.lane.b32.xlu0 %v347, 96
        %v447 = vpop.permute.xlu0 %446
        %448 = vrot.lane.b32.xlu0 %v350, 96
        %v449 = vpop.permute.xlu0 %448
        %v450 = vsel %vm392, %v341, 0
        %v452 = vsel %vm392, %v344, 0
        %v454 = vsel %vm392, %v347, 0
        %v456 = vsel %vm392, %v350, 0
        %v458 = vsel %vm392, %v443, 0
        %v460 = vsel %vm392, %v445, 0
        %v462 = vsel %vm392, %v447, 0
        %v464 = vsel %vm392, %v449, 0
        %466 = vmatpush.xpose.msra.mxu0 0.0
        %467 = vmatpush.xpose.msra.mxu0 0.0
        %468 = vmatpush.xpose.msra.mxu0 0.0
        %469 = vmatpush.xpose.msra.mxu0 0.0
        %470 = vmatpush.xpose.msra.mxu0 0.0
        %471 = vmatpush.xpose.msra.mxu0 0.0
        %472 = vmatpush.xpose.msra.mxu0 0.0
        %473 = vmatpush.xpose.msra.mxu0 0.0
        %474 = vmatpush.xpose.msra.mxu0 0.0
        %475 = vmatpush.xpose.msra.mxu0 0.0
        %476 = vmatpush.xpose.msra.mxu0 0.0
        %477 = vmatpush.xpose.msra.mxu0 0.0
        %478 = vmatpush.xpose.msra.mxu0 %v464
        %479 = vmatpush.xpose.msra.mxu0 %v462
        %480 = vmatpush.xpose.msra.mxu0 %v460
        %481 = vmatpush.xpose.msra.mxu0 %v458
        %482 = vmatmul.f32.gmra.mxu0 %v450
        %v483 = vpop.f32.mrf.mxu0
        %v484 = vadd.f32 %v376, %v483
        %485 = vmatmul.f32.gmra.mxu0 %v452
        %v486 = vpop.f32.mrf.mxu0
        %v487 = vadd.f32 %v377, %v486
        %488 = vmatmul.f32.gmra.mxu0 %v454
        %v489 = vpop.f32.mrf.mxu0
        %v490 = vadd.f32 %v378, %v489
        %491 = vmatmul.f32.gmra.mxu0 %v456
        %v492 = vpop.f32.mrf.mxu0
        %v493 = vadd.f32 %v379, %v492
        %494 = vdwg.mxu0
        %499 = vrot.lane.b32.xlu0 %v353, 96
        %v500 = vpop.permute.xlu0 %499
        %501 = vrot.lane.b32.xlu0 %v356, 96
        %v502 = vpop.permute.xlu0 %501
        %503 = vrot.lane.b32.xlu0 %v359, 96
        %v504 = vpop.permute.xlu0 %503
        %505 = vrot.lane.b32.xlu0 %v362, 96
        %v506 = vpop.permute.xlu0 %505
        %v507 = vsel %vm392, %v353, 0
        %v509 = vsel %vm392, %v356, 0
        %v511 = vsel %vm392, %v359, 0
        %v513 = vsel %vm392, %v362, 0
        %v515 = vsel %vm392, %v500, 0
        %v517 = vsel %vm392, %v502, 0
        %v519 = vsel %vm392, %v504, 0
        %v521 = vsel %vm392, %v506, 0
        %523 = vmatpush.xpose.msra.mxu0 0.0
        %524 = vmatpush.xpose.msra.mxu0 0.0
        %525 = vmatpush.xpose.msra.mxu0 0.0
        %526 = vmatpush.xpose.msra.mxu0 0.0
        %527 = vmatpush.xpose.msra.mxu0 0.0
        %528 = vmatpush.xpose.msra.mxu0 0.0
        %529 = vmatpush.xpose.msra.mxu0 0.0
        %530 = vmatpush.xpose.msra.mxu0 0.0
        %531 = vmatpush.xpose.msra.mxu0 0.0
        %532 = vmatpush.xpose.msra.mxu0 0.0
        %533 = vmatpush.xpose.msra.mxu0 0.0
        %534 = vmatpush.xpose.msra.mxu0 0.0
        %535 = vmatpush.xpose.msra.mxu0 %v521
        %536 = vmatpush.xpose.msra.mxu0 %v519
        %537 = vmatpush.xpose.msra.mxu0 %v517
        %538 = vmatpush.xpose.msra.mxu0 %v515
        %539 = vmatmul.f32.gmra.mxu0 %v507
        %v540 = vpop.f32.mrf.mxu0
        %v541 = vadd.f32 %v376, %v540
        %542 = vmatmul.f32.gmra.mxu0 %v509
        %v543 = vpop.f32.mrf.mxu0
        %v544 = vadd.f32 %v377, %v543
        %545 = vmatmul.f32.gmra.mxu0 %v511
        %v546 = vpop.f32.mrf.mxu0
        %v547 = vadd.f32 %v378, %v546
        %548 = vmatmul.f32.gmra.mxu0 %v513
        %v549 = vpop.f32.mrf.mxu0
        %v550 = vadd.f32 %v379, %v549
        %551 = vdwg.mxu0
        %556 = vrot.lane.b32.xlu0 %v365, 96
        %v557 = vpop.permute.xlu0 %556
        %558 = vrot.lane.b32.xlu0 %v368, 96
        %v559 = vpop.permute.xlu0 %558
        %560 = vrot.lane.b32.xlu0 %v371, 96
        %v561 = vpop.permute.xlu0 %560
        %562 = vrot.lane.b32.xlu0 %v374, 96
        %v563 = vpop.permute.xlu0 %562
        %v564 = vsel %vm392, %v365, 0
        %v566 = vsel %vm392, %v368, 0
        %v568 = vsel %vm392, %v371, 0
        %v570 = vsel %vm392, %v374, 0
        %v572 = vsel %vm392, %v557, 0
        %v574 = vsel %vm392, %v559, 0
        %v576 = vsel %vm392, %v561, 0
        %v578 = vsel %vm392, %v563, 0
        %580 = vmatpush.xpose.msra.mxu0 0.0
        %581 = vmatpush.xpose.msra.mxu0 0.0
        %582 = vmatpush.xpose.msra.mxu0 0.0
        %583 = vmatpush.xpose.msra.mxu0 0.0
        %584 = vmatpush.xpose.msra.mxu0 0.0
        %585 = vmatpush.xpose.msra.mxu0 0.0
        %586 = vmatpush.xpose.msra.mxu0 0.0
        %587 = vmatpush.xpose.msra.mxu0 0.0
        %588 = vmatpush.xpose.msra.mxu0 0.0
        %589 = vmatpush.xpose.msra.mxu0 0.0
        %590 = vmatpush.xpose.msra.mxu0 0.0
        %591 = vmatpush.xpose.msra.mxu0 0.0
        %592 = vmatpush.xpose.msra.mxu0 %v578
        %593 = vmatpush.xpose.msra.mxu0 %v576
        %594 = vmatpush.xpose.msra.mxu0 %v574
        %595 = vmatpush.xpose.msra.mxu0 %v572
        %596 = vmatmul.f32.gmra.mxu0 %v564
        %v597 = vpop.f32.mrf.mxu0
        %v598 = vadd.f32 %v376, %v597
        %599 = vmatmul.f32.gmra.mxu0 %v566
        %v600 = vpop.f32.mrf.mxu0
        %v601 = vadd.f32 %v377, %v600
        %602 = vmatmul.f32.gmra.mxu0 %v568
        %v603 = vpop.f32.mrf.mxu0
        %v604 = vadd.f32 %v378, %v603
        %605 = vmatmul.f32.gmra.mxu0 %v570
        %v606 = vpop.f32.mrf.mxu0
        %v607 = vadd.f32 %v379, %v606
        %608 = vdwg.mxu0
        %vm609 = vcmask 261120
        %v610 = vsel %vm609, %v427, -inf
        %611 = vmax.xlane.f32.xlu0 %v610
        %v612 = vpop.xlane.xlu0 %611
        %v613 = vsel %vm609, %v430, -inf
        %614 = vmax.xlane.f32.xlu0 %v613
        %v615 = vpop.xlane.xlu0 %614
        %v616 = vsel %vm609, %v433, -inf
        %617 = vmax.xlane.f32.xlu0 %v616
        %v618 = vpop.xlane.xlu0 %617
        %v619 = vsel %vm609, %v436, -inf
        %620 = vmax.xlane.f32.xlu0 %v619
        %v621 = vpop.xlane.xlu0 %620
        %v622 = vsel %vm609, %v484, -inf
        %623 = vmax.xlane.f32.xlu0 %v622
        %v624 = vpop.xlane.xlu0 %623
        %v625 = vsel %vm609, %v487, -inf
        %626 = vmax.xlane.f32.xlu0 %v625
        %v627 = vpop.xlane.xlu0 %626
        %v628 = vsel %vm609, %v490, -inf
        %629 = vmax.xlane.f32.xlu0 %v628
        %v630 = vpop.xlane.xlu0 %629
        %v631 = vsel %vm609, %v493, -inf
        %632 = vmax.xlane.f32.xlu0 %v631
        %v633 = vpop.xlane.xlu0 %632
        %v634 = vsel %vm609, %v541, -inf
        %635 = vmax.xlane.f32.xlu0 %v634
        %v636 = vpop.xlane.xlu0 %635
        %v637 = vsel %vm609, %v544, -inf
        %638 = vmax.xlane.f32.xlu0 %v637
        %v639 = vpop.xlane.xlu0 %638
        %v640 = vsel %vm609, %v547, -inf
        %641 = vmax.xlane.f32.xlu0 %v640
        %v642 = vpop.xlane.xlu0 %641
        %v643 = vsel %vm609, %v550, -inf
        %644 = vmax.xlane.f32.xlu0 %v643
        %v645 = vpop.xlane.xlu0 %644
        %v646 = vsel %vm609, %v598, -inf
        %647 = vmax.xlane.f32.xlu0 %v646
        %v648 = vpop.xlane.xlu0 %647
        %v649 = vsel %vm609, %v601, -inf
        %650 = vmax.xlane.f32.xlu0 %v649
        %v651 = vpop.xlane.xlu0 %650
        %v652 = vsel %vm609, %v604, -inf
        %653 = vmax.xlane.f32.xlu0 %v652
        %v654 = vpop.xlane.xlu0 %653
        %v655 = vsel %vm609, %v607, -inf
        %656 = vmax.xlane.f32.xlu0 %v655
        %v657 = vpop.xlane.xlu0 %656
        %v658 = vsub.f32 %v427, %v612
        %v659 = vsub.f32 %v430, %v615
        %v660 = vsub.f32 %v433, %v618
        %v661 = vsub.f32 %v436, %v621
        %v662 = vsub.f32 %v484, %v624
        %v663 = vsub.f32 %v487, %v627
        %v664 = vsub.f32 %v490, %v630
        %v665 = vsub.f32 %v493, %v633
        %v666 = vsub.f32 %v541, %v636
        %v667 = vsub.f32 %v544, %v639
        %v668 = vsub.f32 %v547, %v642
        %v669 = vsub.f32 %v550, %v645
        %v670 = vsub.f32 %v598, %v648
        %v671 = vsub.f32 %v601, %v651
        %v672 = vsub.f32 %v604, %v654
        %v673 = vsub.f32 %v607, %v657
        %v674 = vmul.f32 %v658, 1.442695
        %v675 = vpow.pop %v674
        %v676 = vmul.f32 %v659, 1.442695
        %v677 = vpow.pop %v676
        %v678 = vmul.f32 %v660, 1.442695
        %v679 = vpow.pop %v678
        %v680 = vmul.f32 %v661, 1.442695
        %v681 = vpow.pop %v680
        %v682 = vmul.f32 %v662, 1.442695
        %v683 = vpow.pop %v682
        %v684 = vmul.f32 %v663, 1.442695
        %v685 = vpow.pop %v684
        %v686 = vmul.f32 %v664, 1.442695
        %v687 = vpow.pop %v686
        %v688 = vmul.f32 %v665, 1.442695
        %v689 = vpow.pop %v688
        %v690 = vmul.f32 %v666, 1.442695
        %v691 = vpow.pop %v690
        %v692 = vmul.f32 %v667, 1.442695
        %v693 = vpow.pop %v692
        %v694 = vmul.f32 %v668, 1.442695
        %v695 = vpow.pop %v694
        %v696 = vmul.f32 %v669, 1.442695
        %v697 = vpow.pop %v696
        %v698 = vmul.f32 %v670, 1.442695
        %v699 = vpow.pop %v698
        %v700 = vmul.f32 %v671, 1.442695
        %v701 = vpow.pop %v700
        %v702 = vmul.f32 %v672, 1.442695
        %v703 = vpow.pop %v702
        %v704 = vmul.f32 %v673, 1.442695
        %v705 = vpow.pop %v704
        %v706 = vsel %vm609, %v675, 0.0
        %707 = vadd.xlane.f32.xlu0 %v706
        %v708 = vpop.xlane.xlu0 %707
        %v709 = vsel %vm609, %v677, 0.0
        %710 = vadd.xlane.f32.xlu0 %v709
        %v711 = vpop.xlane.xlu0 %710
        %v712 = vsel %vm609, %v679, 0.0
        %713 = vadd.xlane.f32.xlu0 %v712
        %v714 = vpop.xlane.xlu0 %713
        %v715 = vsel %vm609, %v681, 0.0
        %716 = vadd.xlane.f32.xlu0 %v715
        %v717 = vpop.xlane.xlu0 %716
        %v718 = vsel %vm609, %v683, 0.0
        %719 = vadd.xlane.f32.xlu0 %v718
        %v720 = vpop.xlane.xlu0 %719
        %v721 = vsel %vm609, %v685, 0.0
        %722 = vadd.xlane.f32.xlu0 %v721
        %v723 = vpop.xlane.xlu0 %722
        %v724 = vsel %vm609, %v687, 0.0
        %725 = vadd.xlane.f32.xlu0 %v724
        %v726 = vpop.xlane.xlu0 %725
        %v727 = vsel %vm609, %v689, 0.0
        %728 = vadd.xlane.f32.xlu0 %v727
        %v729 = vpop.xlane.xlu0 %728
        %v730 = vsel %vm609, %v691, 0.0
        %731 = vadd.xlane.f32.xlu0 %v730
        %v732 = vpop.xlane.xlu0 %731
        %v733 = vsel %vm609, %v693, 0.0
        %734 = vadd.xlane.f32.xlu0 %v733
        %v735 = vpop.xlane.xlu0 %734
        %v736 = vsel %vm609, %v695, 0.0
        %737 = vadd.xlane.f32.xlu0 %v736
        %v738 = vpop.xlane.xlu0 %737
        %v739 = vsel %vm609, %v697, 0.0
        %740 = vadd.xlane.f32.xlu0 %v739
        %v741 = vpop.xlane.xlu0 %740
        %v742 = vsel %vm609, %v699, 0.0
        %743 = vadd.xlane.f32.xlu0 %v742
        %v744 = vpop.xlane.xlu0 %743
        %v745 = vsel %vm609, %v701, 0.0
        %746 = vadd.xlane.f32.xlu0 %v745
        %v747 = vpop.xlane.xlu0 %746
        %v748 = vsel %vm609, %v703, 0.0
        %749 = vadd.xlane.f32.xlu0 %v748
        %v750 = vpop.xlane.xlu0 %749
        %v751 = vsel %vm609, %v705, 0.0
        %752 = vadd.xlane.f32.xlu0 %v751
        %v753 = vpop.xlane.xlu0 %752
        %v754 = vrcp.pop %v708
        %v755 = vrcp.pop %v711
        %v756 = vrcp.pop %v714
        %v757 = vrcp.pop %v717
        %v758 = vrcp.pop %v720
        %v759 = vrcp.pop %v723
        %v760 = vrcp.pop %v726
        %v761 = vrcp.pop %v729
        %v762 = vrcp.pop %v732
        %v763 = vrcp.pop %v735
        %v764 = vrcp.pop %v738
        %v765 = vrcp.pop %v741
        %v766 = vrcp.pop %v744
        %v767 = vrcp.pop %v747
        %v768 = vrcp.pop %v750
        %v769 = vrcp.pop %v753
        %v770 = vmul.f32 %v675, %v754
        %v771 = vmul.f32 %v677, %v755
        %v772 = vmul.f32 %v679, %v756
        %v773 = vmul.f32 %v681, %v757
        %v774 = vmul.f32 %v683, %v758
        %v775 = vmul.f32 %v685, %v759
        %v776 = vmul.f32 %v687, %v760
        %v777 = vmul.f32 %v689, %v761
        %v778 = vmul.f32 %v691, %v762
        %v779 = vmul.f32 %v693, %v763
        %v780 = vmul.f32 %v695, %v764
        %v781 = vmul.f32 %v697, %v765
        %v782 = vmul.f32 %v699, %v766
        %v783 = vmul.f32 %v701, %v767
        %v784 = vmul.f32 %v703, %v768
        %v785 = vmul.f32 %v705, %v769
        %786 = vrot.lane.b32.xlu0 %v329, 64
        %v787 = vpop.permute.xlu0 %786
        %788 = vrot.lane.b32.xlu0 %v332, 64
        %v789 = vpop.permute.xlu0 %788
        %790 = vrot.lane.b32.xlu0 %v335, 64
        %v791 = vpop.permute.xlu0 %790
        %792 = vrot.lane.b32.xlu0 %v338, 64
        %v793 = vpop.permute.xlu0 %792
        %v799 = vsel %vm609, %v770, 0
        %v802 = vsel %vm609, %v771, 0
        %v805 = vsel %vm609, %v772, 0
        %v808 = vsel %vm609, %v773, 0
        %810 = vmatpush.msra.mxu0 0.0
        %811 = vmatpush.msra.mxu0 0.0
        %812 = vmatpush.msra.mxu0 0.0
        %813 = vmatpush.msra.mxu0 0.0
        %814 = vmatpush.msra.mxu0 0.0
        %815 = vmatpush.msra.mxu0 0.0
        %816 = vmatpush.msra.mxu0 0.0
        %817 = vmatpush.msra.mxu0 0.0
        %818 = vmatpush.msra.mxu0 0.0
        %819 = vmatpush.msra.mxu0 0.0
        %820 = vmatpush.msra.mxu0 0.0
        %821 = vmatpush.msra.mxu0 0.0
        %822 = vmatpush.msra.mxu0 %v793
        %823 = vmatpush.msra.mxu0 %v791
        %824 = vmatpush.msra.mxu0 %v789
        %825 = vmatpush.msra.mxu0 %v787
        %826 = vmatmul.f32.gmra.mxu0 %v799
        %v827 = vpop.f32.mrf.mxu0
        %v828 = vadd.f32 0.0, %v827
        %829 = vmatmul.f32.gmra.mxu0 %v802
        %v830 = vpop.f32.mrf.mxu0
        %v831 = vadd.f32 0.0, %v830
        %832 = vmatmul.f32.gmra.mxu0 %v805
        %v833 = vpop.f32.mrf.mxu0
        %v834 = vadd.f32 0.0, %v833
        %835 = vmatmul.f32.gmra.mxu0 %v808
        %v836 = vpop.f32.mrf.mxu0
        %v837 = vadd.f32 0.0, %v836
        %838 = vdwg.mxu0
        %839 = vrot.lane.b32.xlu0 %v341, 64
        %v840 = vpop.permute.xlu0 %839
        %841 = vrot.lane.b32.xlu0 %v344, 64
        %v842 = vpop.permute.xlu0 %841
        %843 = vrot.lane.b32.xlu0 %v347, 64
        %v844 = vpop.permute.xlu0 %843
        %845 = vrot.lane.b32.xlu0 %v350, 64
        %v846 = vpop.permute.xlu0 %845
        %v852 = vsel %vm609, %v774, 0
        %v855 = vsel %vm609, %v775, 0
        %v858 = vsel %vm609, %v776, 0
        %v861 = vsel %vm609, %v777, 0
        %863 = vmatpush.msra.mxu0 0.0
        %864 = vmatpush.msra.mxu0 0.0
        %865 = vmatpush.msra.mxu0 0.0
        %866 = vmatpush.msra.mxu0 0.0
        %867 = vmatpush.msra.mxu0 0.0
        %868 = vmatpush.msra.mxu0 0.0
        %869 = vmatpush.msra.mxu0 0.0
        %870 = vmatpush.msra.mxu0 0.0
        %871 = vmatpush.msra.mxu0 0.0
        %872 = vmatpush.msra.mxu0 0.0
        %873 = vmatpush.msra.mxu0 0.0
        %874 = vmatpush.msra.mxu0 0.0
        %875 = vmatpush.msra.mxu0 %v846
        %876 = vmatpush.msra.mxu0 %v844
        %877 = vmatpush.msra.mxu0 %v842
        %878 = vmatpush.msra.mxu0 %v840
        %879 = vmatmul.f32.gmra.mxu0 %v852
        %v880 = vpop.f32.mrf.mxu0
        %v881 = vadd.f32 0.0, %v880
        %882 = vmatmul.f32.gmra.mxu0 %v855
        %v883 = vpop.f32.mrf.mxu0
        %v884 = vadd.f32 0.0, %v883
        %885 = vmatmul.f32.gmra.mxu0 %v858
        %v886 = vpop.f32.mrf.mxu0
        %v887 = vadd.f32 0.0, %v886
        %888 = vmatmul.f32.gmra.mxu0 %v861
        %v889 = vpop.f32.mrf.mxu0
        %v890 = vadd.f32 0.0, %v889
        %891 = vdwg.mxu0
        %892 = vrot.lane.b32.xlu0 %v353, 64
        %v893 = vpop.permute.xlu0 %892
        %894 = vrot.lane.b32.xlu0 %v356, 64
        %v895 = vpop.permute.xlu0 %894
        %896 = vrot.lane.b32.xlu0 %v359, 64
        %v897 = vpop.permute.xlu0 %896
        %898 = vrot.lane.b32.xlu0 %v362, 64
        %v899 = vpop.permute.xlu0 %898
        %v905 = vsel %vm609, %v778, 0
        %v908 = vsel %vm609, %v779, 0
        %v911 = vsel %vm609, %v780, 0
        %v914 = vsel %vm609, %v781, 0
        %916 = vmatpush.msra.mxu0 0.0
        %917 = vmatpush.msra.mxu0 0.0
        %918 = vmatpush.msra.mxu0 0.0
        %919 = vmatpush.msra.mxu0 0.0
        %920 = vmatpush.msra.mxu0 0.0
        %921 = vmatpush.msra.mxu0 0.0
        %922 = vmatpush.msra.mxu0 0.0
        %923 = vmatpush.msra.mxu0 0.0
        %924 = vmatpush.msra.mxu0 0.0
        %925 = vmatpush.msra.mxu0 0.0
        %926 = vmatpush.msra.mxu0 0.0
        %927 = vmatpush.msra.mxu0 0.0
        %928 = vmatpush.msra.mxu0 %v899
        %929 = vmatpush.msra.mxu0 %v897
        %930 = vmatpush.msra.mxu0 %v895
        %931 = vmatpush.msra.mxu0 %v893
        %932 = vmatmul.f32.gmra.mxu0 %v905
        %v933 = vpop.f32.mrf.mxu0
        %v934 = vadd.f32 0.0, %v933
        %935 = vmatmul.f32.gmra.mxu0 %v908
        %v936 = vpop.f32.mrf.mxu0
        %v937 = vadd.f32 0.0, %v936
        %938 = vmatmul.f32.gmra.mxu0 %v911
        %v939 = vpop.f32.mrf.mxu0
        %v940 = vadd.f32 0.0, %v939
        %941 = vmatmul.f32.gmra.mxu0 %v914
        %v942 = vpop.f32.mrf.mxu0
        %v943 = vadd.f32 0.0, %v942
        %944 = vdwg.mxu0
        %945 = vrot.lane.b32.xlu0 %v365, 64
        %v946 = vpop.permute.xlu0 %945
        %947 = vrot.lane.b32.xlu0 %v368, 64
        %v948 = vpop.permute.xlu0 %947
        %949 = vrot.lane.b32.xlu0 %v371, 64
        %v950 = vpop.permute.xlu0 %949
        %951 = vrot.lane.b32.xlu0 %v374, 64
        %v952 = vpop.permute.xlu0 %951
        %v958 = vsel %vm609, %v782, 0
        %v961 = vsel %vm609, %v783, 0
        %v964 = vsel %vm609, %v784, 0
        %v967 = vsel %vm609, %v785, 0
        %969 = vmatpush.msra.mxu0 0.0
        %970 = vmatpush.msra.mxu0 0.0
        %971 = vmatpush.msra.mxu0 0.0
        %972 = vmatpush.msra.mxu0 0.0
        %973 = vmatpush.msra.mxu0 0.0
        %974 = vmatpush.msra.mxu0 0.0
        %975 = vmatpush.msra.mxu0 0.0
        %976 = vmatpush.msra.mxu0 0.0
        %977 = vmatpush.msra.mxu0 0.0
        %978 = vmatpush.msra.mxu0 0.0
        %979 = vmatpush.msra.mxu0 0.0
        %980 = vmatpush.msra.mxu0 0.0
        %981 = vmatpush.msra.mxu0 %v952
        %982 = vmatpush.msra.mxu0 %v950
        %983 = vmatpush.msra.mxu0 %v948
        %984 = vmatpush.msra.mxu0 %v946
        %985 = vmatmul.f32.gmra.mxu0 %v958
        %v986 = vpop.f32.mrf.mxu0
        %v987 = vadd.f32 0.0, %v986
        %988 = vmatmul.f32.gmra.mxu0 %v961
        %v989 = vpop.f32.mrf.mxu0
        %v990 = vadd.f32 0.0, %v989
        %991 = vmatmul.f32.gmra.mxu0 %v964
        %v992 = vpop.f32.mrf.mxu0
        %v993 = vadd.f32 0.0, %v992
        %994 = vmatmul.f32.gmra.mxu0 %v967
        %v995 = vpop.f32.mrf.mxu0
        %v996 = vadd.f32 0.0, %v995
        %997 = vdwg.mxu0
        %v998 = vld [vmem:[%s4] sm:$0xff]
        %s999 = scalar_lea.vmem %s1, 32
        %v1000 = vld [vmem:[%s999] sm:$0xff]
        %v1001 = vld [vmem:[%s999 + $0x8] sm:$0xff]
        %v1002 = vld [vmem:[%s999 + $0x10] sm:$0xff]
        %v1003 = vld [vmem:[%s999 + $0x18] sm:$0xff]
        %1004 = vrot.lane.b32.xlu0 %v329, 120
        %v1005 = vpop.permute.xlu0 %1004
        %1006 = vrot.lane.b32.xlu0 %v332, 120
        %v1007 = vpop.permute.xlu0 %1006
        %1008 = vrot.lane.b32.xlu0 %v335, 120
        %v1009 = vpop.permute.xlu0 %1008
        %1010 = vrot.lane.b32.xlu0 %v338, 120
        %v1011 = vpop.permute.xlu0 %1010
        %1012 = vrot.lane.b32.xlu0 %v329, 88
        %v1013 = vpop.permute.xlu0 %1012
        %1014 = vrot.lane.b32.xlu0 %v332, 88
        %v1015 = vpop.permute.xlu0 %1014
        %1016 = vrot.lane.b32.xlu0 %v335, 88
        %v1017 = vpop.permute.xlu0 %1016
        %1018 = vrot.lane.b32.xlu0 %v338, 88
        %v1019 = vpop.permute.xlu0 %1018
        %v1020 = vsel %vm392, %v1005, 0
        %v1022 = vsel %vm392, %v1007, 0
        %v1024 = vsel %vm392, %v1009, 0
        %v1026 = vsel %vm392, %v1011, 0
        %v1028 = vsel %vm392, %v1013, 0
        %v1030 = vsel %vm392, %v1015, 0
        %v1032 = vsel %vm392, %v1017, 0
        %v1034 = vsel %vm392, %v1019, 0
        %1036 = vmatpush.xpose.msra.mxu0 0.0
        %1037 = vmatpush.xpose.msra.mxu0 0.0
        %1038 = vmatpush.xpose.msra.mxu0 0.0
        %1039 = vmatpush.xpose.msra.mxu0 0.0
        %1040 = vmatpush.xpose.msra.mxu0 0.0
        %1041 = vmatpush.xpose.msra.mxu0 0.0
        %1042 = vmatpush.xpose.msra.mxu0 0.0
        %1043 = vmatpush.xpose.msra.mxu0 0.0
        %1044 = vmatpush.xpose.msra.mxu0 0.0
        %1045 = vmatpush.xpose.msra.mxu0 0.0
        %1046 = vmatpush.xpose.msra.mxu0 0.0
        %1047 = vmatpush.xpose.msra.mxu0 0.0
        %1048 = vmatpush.xpose.msra.mxu0 %v1034
        %1049 = vmatpush.xpose.msra.mxu0 %v1032
        %1050 = vmatpush.xpose.msra.mxu0 %v1030
        %1051 = vmatpush.xpose.msra.mxu0 %v1028
        %1052 = vmatmul.f32.gmra.mxu0 %v1020
        %v1053 = vpop.f32.mrf.mxu0
        %v1054 = vadd.f32 %v1000, %v1053
        %1055 = vmatmul.f32.gmra.mxu0 %v1022
        %v1056 = vpop.f32.mrf.mxu0
        %v1057 = vadd.f32 %v1001, %v1056
        %1058 = vmatmul.f32.gmra.mxu0 %v1024
        %v1059 = vpop.f32.mrf.mxu0
        %v1060 = vadd.f32 %v1002, %v1059
        %1061 = vmatmul.f32.gmra.mxu0 %v1026
        %v1062 = vpop.f32.mrf.mxu0
        %v1063 = vadd.f32 %v1003, %v1062
        %1064 = vdwg.mxu0
        %1065 = vrot.lane.b32.xlu0 %v341, 120
        %v1066 = vpop.permute.xlu0 %1065
        %1067 = vrot.lane.b32.xlu0 %v344, 120
        %v1068 = vpop.permute.xlu0 %1067
        %1069 = vrot.lane.b32.xlu0 %v347, 120
        %v1070 = vpop.permute.xlu0 %1069
        %1071 = vrot.lane.b32.xlu0 %v350, 120
        %v1072 = vpop.permute.xlu0 %1071
        %1073 = vrot.lane.b32.xlu0 %v341, 88
        %v1074 = vpop.permute.xlu0 %1073
        %1075 = vrot.lane.b32.xlu0 %v344, 88
        %v1076 = vpop.permute.xlu0 %1075
        %1077 = vrot.lane.b32.xlu0 %v347, 88
        %v1078 = vpop.permute.xlu0 %1077
        %1079 = vrot.lane.b32.xlu0 %v350, 88
        %v1080 = vpop.permute.xlu0 %1079
        %v1081 = vsel %vm392, %v1066, 0
        %v1083 = vsel %vm392, %v1068, 0
        %v1085 = vsel %vm392, %v1070, 0
        %v1087 = vsel %vm392, %v1072, 0
        %v1089 = vsel %vm392, %v1074, 0
        %v1091 = vsel %vm392, %v1076, 0
        %v1093 = vsel %vm392, %v1078, 0
        %v1095 = vsel %vm392, %v1080, 0
        %1097 = vmatpush.xpose.msra.mxu0 0.0
        %1098 = vmatpush.xpose.msra.mxu0 0.0
        %1099 = vmatpush.xpose.msra.mxu0 0.0
        %1100 = vmatpush.xpose.msra.mxu0 0.0
        %1101 = vmatpush.xpose.msra.mxu0 0.0
        %1102 = vmatpush.xpose.msra.mxu0 0.0
        %1103 = vmatpush.xpose.msra.mxu0 0.0
        %1104 = vmatpush.xpose.msra.mxu0 0.0
        %1105 = vmatpush.xpose.msra.mxu0 0.0
        %1106 = vmatpush.xpose.msra.mxu0 0.0
        %1107 = vmatpush.xpose.msra.mxu0 0.0
        %1108 = vmatpush.xpose.msra.mxu0 0.0
        %1109 = vmatpush.xpose.msra.mxu0 %v1095
        %1110 = vmatpush.xpose.msra.mxu0 %v1093
        %1111 = vmatpush.xpose.msra.mxu0 %v1091
        %1112 = vmatpush.xpose.msra.mxu0 %v1089
        %1113 = vmatmul.f32.gmra.mxu0 %v1081
        %v1114 = vpop.f32.mrf.mxu0
        %v1115 = vadd.f32 %v1000, %v1114
        %1116 = vmatmul.f32.gmra.mxu0 %v1083
        %v1117 = vpop.f32.mrf.mxu0
        %v1118 = vadd.f32 %v1001, %v1117
        %1119 = vmatmul.f32.gmra.mxu0 %v1085
        %v1120 = vpop.f32.mrf.mxu0
        %v1121 = vadd.f32 %v1002, %v1120
        %1122 = vmatmul.f32.gmra.mxu0 %v1087
        %v1123 = vpop.f32.mrf.mxu0
        %v1124 = vadd.f32 %v1003, %v1123
        %1125 = vdwg.mxu0
        %1126 = vrot.lane.b32.xlu0 %v353, 120
        %v1127 = vpop.permute.xlu0 %1126
        %1128 = vrot.lane.b32.xlu0 %v356, 120
        %v1129 = vpop.permute.xlu0 %1128
        %1130 = vrot.lane.b32.xlu0 %v359, 120
        %v1131 = vpop.permute.xlu0 %1130
        %1132 = vrot.lane.b32.xlu0 %v362, 120
        %v1133 = vpop.permute.xlu0 %1132
        %1134 = vrot.lane.b32.xlu0 %v353, 88
        %v1135 = vpop.permute.xlu0 %1134
        %1136 = vrot.lane.b32.xlu0 %v356, 88
        %v1137 = vpop.permute.xlu0 %1136
        %1138 = vrot.lane.b32.xlu0 %v359, 88
        %v1139 = vpop.permute.xlu0 %1138
        %1140 = vrot.lane.b32.xlu0 %v362, 88
        %v1141 = vpop.permute.xlu0 %1140
        %v1142 = vsel %vm392, %v1127, 0
        %v1144 = vsel %vm392, %v1129, 0
        %v1146 = vsel %vm392, %v1131, 0
        %v1148 = vsel %vm392, %v1133, 0
        %v1150 = vsel %vm392, %v1135, 0
        %v1152 = vsel %vm392, %v1137, 0
        %v1154 = vsel %vm392, %v1139, 0
        %v1156 = vsel %vm392, %v1141, 0
        %1158 = vmatpush.xpose.msra.mxu0 0.0
        %1159 = vmatpush.xpose.msra.mxu0 0.0
        %1160 = vmatpush.xpose.msra.mxu0 0.0
        %1161 = vmatpush.xpose.msra.mxu0 0.0
        %1162 = vmatpush.xpose.msra.mxu0 0.0
        %1163 = vmatpush.xpose.msra.mxu0 0.0
        %1164 = vmatpush.xpose.msra.mxu0 0.0
        %1165 = vmatpush.xpose.msra.mxu0 0.0
        %1166 = vmatpush.xpose.msra.mxu0 0.0
        %1167 = vmatpush.xpose.msra.mxu0 0.0
        %1168 = vmatpush.xpose.msra.mxu0 0.0
        %1169 = vmatpush.xpose.msra.mxu0 0.0
        %1170 = vmatpush.xpose.msra.mxu0 %v1156
        %1171 = vmatpush.xpose.msra.mxu0 %v1154
        %1172 = vmatpush.xpose.msra.mxu0 %v1152
        %1173 = vmatpush.xpose.msra.mxu0 %v1150
        %1174 = vmatmul.f32.gmra.mxu0 %v1142
        %v1175 = vpop.f32.mrf.mxu0
        %v1176 = vadd.f32 %v1000, %v1175
        %1177 = vmatmul.f32.gmra.mxu0 %v1144
        %v1178 = vpop.f32.mrf.mxu0
        %v1179 = vadd.f32 %v1001, %v1178
        %1180 = vmatmul.f32.gmra.mxu0 %v1146
        %v1181 = vpop.f32.mrf.mxu0
        %v1182 = vadd.f32 %v1002, %v1181
        %1183 = vmatmul.f32.gmra.mxu0 %v1148
        %v1184 = vpop.f32.mrf.mxu0
        %v1185 = vadd.f32 %v1003, %v1184
        %1186 = vdwg.mxu0
        %1187 = vrot.lane.b32.xlu0 %v365, 120
        %v1188 = vpop.permute.xlu0 %1187
        %1189 = vrot.lane.b32.xlu0 %v368, 120
        %v1190 = vpop.permute.xlu0 %1189
        %1191 = vrot.lane.b32.xlu0 %v371, 120
        %v1192 = vpop.permute.xlu0 %1191
        %1193 = vrot.lane.b32.xlu0 %v374, 120
        %v1194 = vpop.permute.xlu0 %1193
        %1195 = vrot.lane.b32.xlu0 %v365, 88
        %v1196 = vpop.permute.xlu0 %1195
        %1197 = vrot.lane.b32.xlu0 %v368, 88
        %v1198 = vpop.permute.xlu0 %1197
        %1199 = vrot.lane.b32.xlu0 %v371, 88
        %v1200 = vpop.permute.xlu0 %1199
        %1201 = vrot.lane.b32.xlu0 %v374, 88
        %v1202 = vpop.permute.xlu0 %1201
        %v1203 = vsel %vm392, %v1188, 0
        %v1205 = vsel %vm392, %v1190, 0
        %v1207 = vsel %vm392, %v1192, 0
        %v1209 = vsel %vm392, %v1194, 0
        %v1211 = vsel %vm392, %v1196, 0
        %v1213 = vsel %vm392, %v1198, 0
        %v1215 = vsel %vm392, %v1200, 0
        %v1217 = vsel %vm392, %v1202, 0
        %1219 = vmatpush.xpose.msra.mxu0 0.0
        %1220 = vmatpush.xpose.msra.mxu0 0.0
        %1221 = vmatpush.xpose.msra.mxu0 0.0
        %1222 = vmatpush.xpose.msra.mxu0 0.0
        %1223 = vmatpush.xpose.msra.mxu0 0.0
        %1224 = vmatpush.xpose.msra.mxu0 0.0
        %1225 = vmatpush.xpose.msra.mxu0 0.0
        %1226 = vmatpush.xpose.msra.mxu0 0.0
        %1227 = vmatpush.xpose.msra.mxu0 0.0
        %1228 = vmatpush.xpose.msra.mxu0 0.0
        %1229 = vmatpush.xpose.msra.mxu0 0.0
        %1230 = vmatpush.xpose.msra.mxu0 0.0
        %1231 = vmatpush.xpose.msra.mxu0 %v1217
        %1232 = vmatpush.xpose.msra.mxu0 %v1215
        %1233 = vmatpush.xpose.msra.mxu0 %v1213
        %1234 = vmatpush.xpose.msra.mxu0 %v1211
        %1235 = vmatmul.f32.gmra.mxu0 %v1203
        %v1236 = vpop.f32.mrf.mxu0
        %v1237 = vadd.f32 %v1000, %v1236
        %1238 = vmatmul.f32.gmra.mxu0 %v1205
        %v1239 = vpop.f32.mrf.mxu0
        %v1240 = vadd.f32 %v1001, %v1239
        %1241 = vmatmul.f32.gmra.mxu0 %v1207
        %v1242 = vpop.f32.mrf.mxu0
        %v1243 = vadd.f32 %v1002, %v1242
        %1244 = vmatmul.f32.gmra.mxu0 %v1209
        %v1245 = vpop.f32.mrf.mxu0
        %v1246 = vadd.f32 %v1003, %v1245
        %1247 = vdwg.mxu0
        %v1248 = vsel %vm609, %v1054, -inf
        %1249 = vmax.xlane.f32.xlu0 %v1248
        %v1250 = vpop.xlane.xlu0 %1249
        %v1251 = vsel %vm609, %v1057, -inf
        %1252 = vmax.xlane.f32.xlu0 %v1251
        %v1253 = vpop.xlane.xlu0 %1252
        %v1254 = vsel %vm609, %v1060, -inf
        %1255 = vmax.xlane.f32.xlu0 %v1254
        %v1256 = vpop.xlane.xlu0 %1255
        %v1257 = vsel %vm609, %v1063, -inf
        %1258 = vmax.xlane.f32.xlu0 %v1257
        %v1259 = vpop.xlane.xlu0 %1258
        %v1260 = vsel %vm609, %v1115, -inf
        %1261 = vmax.xlane.f32.xlu0 %v1260
        %v1262 = vpop.xlane.xlu0 %1261
        %v1263 = vsel %vm609, %v1118, -inf
        %1264 = vmax.xlane.f32.xlu0 %v1263
        %v1265 = vpop.xlane.xlu0 %1264
        %v1266 = vsel %vm609, %v1121, -inf
        %1267 = vmax.xlane.f32.xlu0 %v1266
        %v1268 = vpop.xlane.xlu0 %1267
        %v1269 = vsel %vm609, %v1124, -inf
        %1270 = vmax.xlane.f32.xlu0 %v1269
        %v1271 = vpop.xlane.xlu0 %1270
        %v1272 = vsel %vm609, %v1176, -inf
        %1273 = vmax.xlane.f32.xlu0 %v1272
        %v1274 = vpop.xlane.xlu0 %1273
        %v1275 = vsel %vm609, %v1179, -inf
        %1276 = vmax.xlane.f32.xlu0 %v1275
        %v1277 = vpop.xlane.xlu0 %1276
        %v1278 = vsel %vm609, %v1182, -inf
        %1279 = vmax.xlane.f32.xlu0 %v1278
        %v1280 = vpop.xlane.xlu0 %1279
        %v1281 = vsel %vm609, %v1185, -inf
        %1282 = vmax.xlane.f32.xlu0 %v1281
        %v1283 = vpop.xlane.xlu0 %1282
        %v1284 = vsel %vm609, %v1237, -inf
        %1285 = vmax.xlane.f32.xlu0 %v1284
        %v1286 = vpop.xlane.xlu0 %1285
        %v1287 = vsel %vm609, %v1240, -inf
        %1288 = vmax.xlane.f32.xlu0 %v1287
        %v1289 = vpop.xlane.xlu0 %1288
        %v1290 = vsel %vm609, %v1243, -inf
        %1291 = vmax.xlane.f32.xlu0 %v1290
        %v1292 = vpop.xlane.xlu0 %1291
        %v1293 = vsel %vm609, %v1246, -inf
        %1294 = vmax.xlane.f32.xlu0 %v1293
        %v1295 = vpop.xlane.xlu0 %1294
        %v1296 = vsub.f32 %v1054, %v1250
        %v1297 = vsub.f32 %v1057, %v1253
        %v1298 = vsub.f32 %v1060, %v1256
        %v1299 = vsub.f32 %v1063, %v1259
        %v1300 = vsub.f32 %v1115, %v1262
        %v1301 = vsub.f32 %v1118, %v1265
        %v1302 = vsub.f32 %v1121, %v1268
        %v1303 = vsub.f32 %v1124, %v1271
        %v1304 = vsub.f32 %v1176, %v1274
        %v1305 = vsub.f32 %v1179, %v1277
        %v1306 = vsub.f32 %v1182, %v1280
        %v1307 = vsub.f32 %v1185, %v1283
        %v1308 = vsub.f32 %v1237, %v1286
        %v1309 = vsub.f32 %v1240, %v1289
        %v1310 = vsub.f32 %v1243, %v1292
        %v1311 = vsub.f32 %v1246, %v1295
        %v1312 = vmul.f32 %v1296, 1.442695
        %v1313 = vpow.pop %v1312
        %v1314 = vmul.f32 %v1297, 1.442695
        %v1315 = vpow.pop %v1314
        %v1316 = vmul.f32 %v1298, 1.442695
        %v1317 = vpow.pop %v1316
        %v1318 = vmul.f32 %v1299, 1.442695
        %v1319 = vpow.pop %v1318
        %v1320 = vmul.f32 %v1300, 1.442695
        %v1321 = vpow.pop %v1320
        %v1322 = vmul.f32 %v1301, 1.442695
        %v1323 = vpow.pop %v1322
        %v1324 = vmul.f32 %v1302, 1.442695
        %v1325 = vpow.pop %v1324
        %v1326 = vmul.f32 %v1303, 1.442695
        %v1327 = vpow.pop %v1326
        %v1328 = vmul.f32 %v1304, 1.442695
        %v1329 = vpow.pop %v1328
        %v1330 = vmul.f32 %v1305, 1.442695
        %v1331 = vpow.pop %v1330
        %v1332 = vmul.f32 %v1306, 1.442695
        %v1333 = vpow.pop %v1332
        %v1334 = vmul.f32 %v1307, 1.442695
        %v1335 = vpow.pop %v1334
        %v1336 = vmul.f32 %v1308, 1.442695
        %v1337 = vpow.pop %v1336
        %v1338 = vmul.f32 %v1309, 1.442695
        %v1339 = vpow.pop %v1338
        %v1340 = vmul.f32 %v1310, 1.442695
        %v1341 = vpow.pop %v1340
        %v1342 = vmul.f32 %v1311, 1.442695
        %v1343 = vpow.pop %v1342
        %v1344 = vsel %vm609, %v1313, 0.0
        %1345 = vadd.xlane.f32.xlu0 %v1344
        %v1346 = vpop.xlane.xlu0 %1345
        %v1347 = vsel %vm609, %v1315, 0.0
        %1348 = vadd.xlane.f32.xlu0 %v1347
        %v1349 = vpop.xlane.xlu0 %1348
        %v1350 = vsel %vm609, %v1317, 0.0
        %1351 = vadd.xlane.f32.xlu0 %v1350
        %v1352 = vpop.xlane.xlu0 %1351
        %v1353 = vsel %vm609, %v1319, 0.0
        %1354 = vadd.xlane.f32.xlu0 %v1353
        %v1355 = vpop.xlane.xlu0 %1354
        %v1356 = vsel %vm609, %v1321, 0.0
        %1357 = vadd.xlane.f32.xlu0 %v1356
        %v1358 = vpop.xlane.xlu0 %1357
        %v1359 = vsel %vm609, %v1323, 0.0
        %1360 = vadd.xlane.f32.xlu0 %v1359
        %v1361 = vpop.xlane.xlu0 %1360
        %v1362 = vsel %vm609, %v1325, 0.0
        %1363 = vadd.xlane.f32.xlu0 %v1362
        %v1364 = vpop.xlane.xlu0 %1363
        %v1365 = vsel %vm609, %v1327, 0.0
        %1366 = vadd.xlane.f32.xlu0 %v1365
        %v1367 = vpop.xlane.xlu0 %1366
        %v1368 = vsel %vm609, %v1329, 0.0
        %1369 = vadd.xlane.f32.xlu0 %v1368
        %v1370 = vpop.xlane.xlu0 %1369
        %v1371 = vsel %vm609, %v1331, 0.0
        %1372 = vadd.xlane.f32.xlu0 %v1371
        %v1373 = vpop.xlane.xlu0 %1372
        %v1374 = vsel %vm609, %v1333, 0.0
        %1375 = vadd.xlane.f32.xlu0 %v1374
        %v1376 = vpop.xlane.xlu0 %1375
        %v1377 = vsel %vm609, %v1335, 0.0
        %1378 = vadd.xlane.f32.xlu0 %v1377
        %v1379 = vpop.xlane.xlu0 %1378
        %v1380 = vsel %vm609, %v1337, 0.0
        %1381 = vadd.xlane.f32.xlu0 %v1380
        %v1382 = vpop.xlane.xlu0 %1381
        %v1383 = vsel %vm609, %v1339, 0.0
        %1384 = vadd.xlane.f32.xlu0 %v1383
        %v1385 = vpop.xlane.xlu0 %1384
        %v1386 = vsel %vm609, %v1341, 0.0
        %1387 = vadd.xlane.f32.xlu0 %v1386
        %v1388 = vpop.xlane.xlu0 %1387
        %v1389 = vsel %vm609, %v1343, 0.0
        %1390 = vadd.xlane.f32.xlu0 %v1389
        %v1391 = vpop.xlane.xlu0 %1390
        %v1392 = vrcp.pop %v1346
        %v1393 = vrcp.pop %v1349
        %v1394 = vrcp.pop %v1352
        %v1395 = vrcp.pop %v1355
        %v1396 = vrcp.pop %v1358
        %v1397 = vrcp.pop %v1361
        %v1398 = vrcp.pop %v1364
        %v1399 = vrcp.pop %v1367
        %v1400 = vrcp.pop %v1370
        %v1401 = vrcp.pop %v1373
        %v1402 = vrcp.pop %v1376
        %v1403 = vrcp.pop %v1379
        %v1404 = vrcp.pop %v1382
        %v1405 = vrcp.pop %v1385
        %v1406 = vrcp.pop %v1388
        %v1407 = vrcp.pop %v1391
        %v1408 = vmul.f32 %v1313, %v1392
        %v1409 = vmul.f32 %v1315, %v1393
        %v1410 = vmul.f32 %v1317, %v1394
        %v1411 = vmul.f32 %v1319, %v1395
        %v1412 = vmul.f32 %v1321, %v1396
        %v1413 = vmul.f32 %v1323, %v1397
        %v1414 = vmul.f32 %v1325, %v1398
        %v1415 = vmul.f32 %v1327, %v1399
        %v1416 = vmul.f32 %v1329, %v1400
        %v1417 = vmul.f32 %v1331, %v1401
        %v1418 = vmul.f32 %v1333, %v1402
        %v1419 = vmul.f32 %v1335, %v1403
        %v1420 = vmul.f32 %v1337, %v1404
        %v1421 = vmul.f32 %v1339, %v1405
        %v1422 = vmul.f32 %v1341, %v1406
        %v1423 = vmul.f32 %v1343, %v1407
        %1424 = vrot.lane.b32.xlu0 %v329, 56
        %v1425 = vpop.permute.xlu0 %1424
        %1426 = vrot.lane.b32.xlu0 %v332, 56
        %v1427 = vpop.permute.xlu0 %1426
        %1428 = vrot.lane.b32.xlu0 %v335, 56
        %v1429 = vpop.permute.xlu0 %1428
        %1430 = vrot.lane.b32.xlu0 %v338, 56
        %v1431 = vpop.permute.xlu0 %1430
        %v1437 = vsel %vm609, %v1408, 0
        %v1440 = vsel %vm609, %v1409, 0
        %v1443 = vsel %vm609, %v1410, 0
        %v1446 = vsel %vm609, %v1411, 0
        %1448 = vmatpush.msra.mxu0 0.0
        %1449 = vmatpush.msra.mxu0 0.0
        %1450 = vmatpush.msra.mxu0 0.0
        %1451 = vmatpush.msra.mxu0 0.0
        %1452 = vmatpush.msra.mxu0 0.0
        %1453 = vmatpush.msra.mxu0 0.0
        %1454 = vmatpush.msra.mxu0 0.0
        %1455 = vmatpush.msra.mxu0 0.0
        %1456 = vmatpush.msra.mxu0 0.0
        %1457 = vmatpush.msra.mxu0 0.0
        %1458 = vmatpush.msra.mxu0 0.0
        %1459 = vmatpush.msra.mxu0 0.0
        %1460 = vmatpush.msra.mxu0 %v1431
        %1461 = vmatpush.msra.mxu0 %v1429
        %1462 = vmatpush.msra.mxu0 %v1427
        %1463 = vmatpush.msra.mxu0 %v1425
        %1464 = vmatmul.f32.gmra.mxu0 %v1437
        %v1465 = vpop.f32.mrf.mxu0
        %v1466 = vadd.f32 0.0, %v1465
        %1467 = vmatmul.f32.gmra.mxu0 %v1440
        %v1468 = vpop.f32.mrf.mxu0
        %v1469 = vadd.f32 0.0, %v1468
        %1470 = vmatmul.f32.gmra.mxu0 %v1443
        %v1471 = vpop.f32.mrf.mxu0
        %v1472 = vadd.f32 0.0, %v1471
        %1473 = vmatmul.f32.gmra.mxu0 %v1446
        %v1474 = vpop.f32.mrf.mxu0
        %v1475 = vadd.f32 0.0, %v1474
        %1476 = vdwg.mxu0
        %1477 = vrot.lane.b32.xlu0 %v341, 56
        %v1478 = vpop.permute.xlu0 %1477
        %1479 = vrot.lane.b32.xlu0 %v344, 56
        %v1480 = vpop.permute.xlu0 %1479
        %1481 = vrot.lane.b32.xlu0 %v347, 56
        %v1482 = vpop.permute.xlu0 %1481
        %1483 = vrot.lane.b32.xlu0 %v350, 56
        %v1484 = vpop.permute.xlu0 %1483
        %v1490 = vsel %vm609, %v1412, 0
        %v1493 = vsel %vm609, %v1413, 0
        %v1496 = vsel %vm609, %v1414, 0
        %v1499 = vsel %vm609, %v1415, 0
        %1501 = vmatpush.msra.mxu0 0.0
        %1502 = vmatpush.msra.mxu0 0.0
        %1503 = vmatpush.msra.mxu0 0.0
        %1504 = vmatpush.msra.mxu0 0.0
        %1505 = vmatpush.msra.mxu0 0.0
        %1506 = vmatpush.msra.mxu0 0.0
        %1507 = vmatpush.msra.mxu0 0.0
        %1508 = vmatpush.msra.mxu0 0.0
        %1509 = vmatpush.msra.mxu0 0.0
        %1510 = vmatpush.msra.mxu0 0.0
        %1511 = vmatpush.msra.mxu0 0.0
        %1512 = vmatpush.msra.mxu0 0.0
        %1513 = vmatpush.msra.mxu0 %v1484
        %1514 = vmatpush.msra.mxu0 %v1482
        %1515 = vmatpush.msra.mxu0 %v1480
        %1516 = vmatpush.msra.mxu0 %v1478
        %1517 = vmatmul.f32.gmra.mxu0 %v1490
        %v1518 = vpop.f32.mrf.mxu0
        %v1519 = vadd.f32 0.0, %v1518
        %1520 = vmatmul.f32.gmra.mxu0 %v1493
        %v1521 = vpop.f32.mrf.mxu0
        %v1522 = vadd.f32 0.0, %v1521
        %1523 = vmatmul.f32.gmra.mxu0 %v1496
        %v1524 = vpop.f32.mrf.mxu0
        %v1525 = vadd.f32 0.0, %v1524
        %1526 = vmatmul.f32.gmra.mxu0 %v1499
        %v1527 = vpop.f32.mrf.mxu0
        %v1528 = vadd.f32 0.0, %v1527
        %1529 = vdwg.mxu0
        %1530 = vrot.lane.b32.xlu0 %v353, 56
        %v1531 = vpop.permute.xlu0 %1530
        %1532 = vrot.lane.b32.xlu0 %v356, 56
        %v1533 = vpop.permute.xlu0 %1532
        %1534 = vrot.lane.b32.xlu0 %v359, 56
        %v1535 = vpop.permute.xlu0 %1534
        %1536 = vrot.lane.b32.xlu0 %v362, 56
        %v1537 = vpop.permute.xlu0 %1536
        %v1543 = vsel %vm609, %v1416, 0
        %v1546 = vsel %vm609, %v1417, 0
        %v1549 = vsel %vm609, %v1418, 0
        %v1552 = vsel %vm609, %v1419, 0
        %1554 = vmatpush.msra.mxu0 0.0
        %1555 = vmatpush.msra.mxu0 0.0
        %1556 = vmatpush.msra.mxu0 0.0
        %1557 = vmatpush.msra.mxu0 0.0
        %1558 = vmatpush.msra.mxu0 0.0
        %1559 = vmatpush.msra.mxu0 0.0
        %1560 = vmatpush.msra.mxu0 0.0
        %1561 = vmatpush.msra.mxu0 0.0
        %1562 = vmatpush.msra.mxu0 0.0
        %1563 = vmatpush.msra.mxu0 0.0
        %1564 = vmatpush.msra.mxu0 0.0
        %1565 = vmatpush.msra.mxu0 0.0
        %1566 = vmatpush.msra.mxu0 %v1537
        %1567 = vmatpush.msra.mxu0 %v1535
        %1568 = vmatpush.msra.mxu0 %v1533
        %1569 = vmatpush.msra.mxu0 %v1531
        %1570 = vmatmul.f32.gmra.mxu0 %v1543
        %v1571 = vpop.f32.mrf.mxu0
        %v1572 = vadd.f32 0.0, %v1571
        %1573 = vmatmul.f32.gmra.mxu0 %v1546
        %v1574 = vpop.f32.mrf.mxu0
        %v1575 = vadd.f32 0.0, %v1574
        %1576 = vmatmul.f32.gmra.mxu0 %v1549
        %v1577 = vpop.f32.mrf.mxu0
        %v1578 = vadd.f32 0.0, %v1577
        %1579 = vmatmul.f32.gmra.mxu0 %v1552
        %v1580 = vpop.f32.mrf.mxu0
        %v1581 = vadd.f32 0.0, %v1580
        %1582 = vdwg.mxu0
        %1583 = vrot.lane.b32.xlu0 %v365, 56
        %v1584 = vpop.permute.xlu0 %1583
        %1585 = vrot.lane.b32.xlu0 %v368, 56
        %v1586 = vpop.permute.xlu0 %1585
        %1587 = vrot.lane.b32.xlu0 %v371, 56
        %v1588 = vpop.permute.xlu0 %1587
        %1589 = vrot.lane.b32.xlu0 %v374, 56
        %v1590 = vpop.permute.xlu0 %1589
        %v1596 = vsel %vm609, %v1420, 0
        %v1599 = vsel %vm609, %v1421, 0
        %v1602 = vsel %vm609, %v1422, 0
        %v1605 = vsel %vm609, %v1423, 0
        %1607 = vmatpush.msra.mxu0 0.0
        %1608 = vmatpush.msra.mxu0 0.0
        %1609 = vmatpush.msra.mxu0 0.0
        %1610 = vmatpush.msra.mxu0 0.0
        %1611 = vmatpush.msra.mxu0 0.0
        %1612 = vmatpush.msra.mxu0 0.0
        %1613 = vmatpush.msra.mxu0 0.0
        %1614 = vmatpush.msra.mxu0 0.0
        %1615 = vmatpush.msra.mxu0 0.0
        %1616 = vmatpush.msra.mxu0 0.0
        %1617 = vmatpush.msra.mxu0 0.0
        %1618 = vmatpush.msra.mxu0 0.0
        %1619 = vmatpush.msra.mxu0 %v1590
        %1620 = vmatpush.msra.mxu0 %v1588
        %1621 = vmatpush.msra.mxu0 %v1586
        %1622 = vmatpush.msra.mxu0 %v1584
        %1623 = vmatmul.f32.gmra.mxu0 %v1596
        %v1624 = vpop.f32.mrf.mxu0
        %v1625 = vadd.f32 0.0, %v1624
        %1626 = vmatmul.f32.gmra.mxu0 %v1599
        %v1627 = vpop.f32.mrf.mxu0
        %v1628 = vadd.f32 0.0, %v1627
        %1629 = vmatmul.f32.gmra.mxu0 %v1602
        %v1630 = vpop.f32.mrf.mxu0
        %v1631 = vadd.f32 0.0, %v1630
        %1632 = vmatmul.f32.gmra.mxu0 %v1605
        %v1633 = vpop.f32.mrf.mxu0
        %v1634 = vadd.f32 0.0, %v1633
        %1635 = vdwg.mxu0
        %s1636 = scalar_lea.vmem %s4, 8
        %v1637 = vld [vmem:[%s1636] sm:$0xff]
        %v1639 = vsel %vm392, %v1466, 0
        %v1642 = vsel %vm392, %v1469, 0
        %v1645 = vsel %vm392, %v1472, 0
        %v1648 = vsel %vm392, %v1475, 0
        %v1651 = vsel %vm392, %v1519, 0
        %v1654 = vsel %vm392, %v1522, 0
        %v1657 = vsel %vm392, %v1525, 0
        %v1660 = vsel %vm392, %v1528, 0
        %v1663 = vsel %vm392, %v1572, 0
        %v1666 = vsel %vm392, %v1575, 0
        %v1669 = vsel %vm392, %v1578, 0
        %v1672 = vsel %vm392, %v1581, 0
        %v1675 = vsel %vm392, %v1625, 0
        %v1678 = vsel %vm392, %v1628, 0
        %v1681 = vsel %vm392, %v1631, 0
        %v1684 = vsel %vm392, %v1634, 0
        %1686 = vmatpush.msra.mxu0 0.0
        %1687 = vmatpush.msra.mxu0 0.0
        %1688 = vmatpush.msra.mxu0 0.0
        %1689 = vmatpush.msra.mxu0 0.0
        %1690 = vmatpush.msra.mxu0 0.0
        %1691 = vmatpush.msra.mxu0 0.0
        %1692 = vmatpush.msra.mxu0 0.0
        %1693 = vmatpush.msra.mxu0 0.0
        %1694 = vmatpush.msra.mxu0 0.0
        %1695 = vmatpush.msra.mxu0 0.0
        %1696 = vmatpush.msra.mxu0 0.0
        %1697 = vmatpush.msra.mxu0 0.0
        %1698 = vmatpush.msra.mxu0 0.0
        %1699 = vmatpush.msra.mxu0 0.0
        %1700 = vmatpush.msra.mxu0 0.0
        %1701 = vmatpush.msra.mxu0 %v1637
        %1702 = vmatmul.f32.gmra.mxu0 %v1639
        %v1703 = vpop.f32.mrf.mxu0
        %v1704 = vadd.f32 0.0, %v1703
        %1705 = vmatmul.f32.gmra.mxu0 %v1642
        %v1706 = vpop.f32.mrf.mxu0
        %v1707 = vadd.f32 0.0, %v1706
        %1708 = vmatmul.f32.gmra.mxu0 %v1645
        %v1709 = vpop.f32.mrf.mxu0
        %v1710 = vadd.f32 0.0, %v1709
        %1711 = vmatmul.f32.gmra.mxu0 %v1648
        %v1712 = vpop.f32.mrf.mxu0
        %v1713 = vadd.f32 0.0, %v1712
        %1714 = vmatmul.f32.gmra.mxu0 %v1651
        %v1715 = vpop.f32.mrf.mxu0
        %v1716 = vadd.f32 0.0, %v1715
        %1717 = vmatmul.f32.gmra.mxu0 %v1654
        %v1718 = vpop.f32.mrf.mxu0
        %v1719 = vadd.f32 0.0, %v1718
        %1720 = vmatmul.f32.gmra.mxu0 %v1657
        %v1721 = vpop.f32.mrf.mxu0
        %v1722 = vadd.f32 0.0, %v1721
        %1723 = vmatmul.f32.gmra.mxu0 %v1660
        %v1724 = vpop.f32.mrf.mxu0
        %v1725 = vadd.f32 0.0, %v1724
        %1726 = vmatmul.f32.gmra.mxu0 %v1663
        %v1727 = vpop.f32.mrf.mxu0
        %v1728 = vadd.f32 0.0, %v1727
        %1729 = vmatmul.f32.gmra.mxu0 %v1666
        %v1730 = vpop.f32.mrf.mxu0
        %v1731 = vadd.f32 0.0, %v1730
        %1732 = vmatmul.f32.gmra.mxu0 %v1669
        %v1733 = vpop.f32.mrf.mxu0
        %v1734 = vadd.f32 0.0, %v1733
        %1735 = vmatmul.f32.gmra.mxu0 %v1672
        %v1736 = vpop.f32.mrf.mxu0
        %v1737 = vadd.f32 0.0, %v1736
        %1738 = vmatmul.f32.gmra.mxu0 %v1675
        %v1739 = vpop.f32.mrf.mxu0
        %v1740 = vadd.f32 0.0, %v1739
        %1741 = vmatmul.f32.gmra.mxu0 %v1678
        %v1742 = vpop.f32.mrf.mxu0
        %v1743 = vadd.f32 0.0, %v1742
        %1744 = vmatmul.f32.gmra.mxu0 %v1681
        %v1745 = vpop.f32.mrf.mxu0
        %v1746 = vadd.f32 0.0, %v1745
        %1747 = vmatmul.f32.gmra.mxu0 %v1684
        %v1748 = vpop.f32.mrf.mxu0
        %v1749 = vadd.f32 0.0, %v1748
        %1750 = vdwg.mxu0
        %v1752 = vsel %vm392, %v828, 0
        %v1755 = vsel %vm392, %v831, 0
        %v1758 = vsel %vm392, %v834, 0
        %v1761 = vsel %vm392, %v837, 0
        %v1764 = vsel %vm392, %v881, 0
        %v1767 = vsel %vm392, %v884, 0
        %v1770 = vsel %vm392, %v887, 0
        %v1773 = vsel %vm392, %v890, 0
        %v1776 = vsel %vm392, %v934, 0
        %v1779 = vsel %vm392, %v937, 0
        %v1782 = vsel %vm392, %v940, 0
        %v1785 = vsel %vm392, %v943, 0
        %v1788 = vsel %vm392, %v987, 0
        %v1791 = vsel %vm392, %v990, 0
        %v1794 = vsel %vm392, %v993, 0
        %v1797 = vsel %vm392, %v996, 0
        %1799 = vmatpush.msra.mxu0 0.0
        %1800 = vmatpush.msra.mxu0 0.0
        %1801 = vmatpush.msra.mxu0 0.0
        %1802 = vmatpush.msra.mxu0 0.0
        %1803 = vmatpush.msra.mxu0 0.0
        %1804 = vmatpush.msra.mxu0 0.0
        %1805 = vmatpush.msra.mxu0 0.0
        %1806 = vmatpush.msra.mxu0 0.0
        %1807 = vmatpush.msra.mxu0 0.0
        %1808 = vmatpush.msra.mxu0 0.0
        %1809 = vmatpush.msra.mxu0 0.0
        %1810 = vmatpush.msra.mxu0 0.0
        %1811 = vmatpush.msra.mxu0 0.0
        %1812 = vmatpush.msra.mxu0 0.0
        %1813 = vmatpush.msra.mxu0 0.0
        %1814 = vmatpush.msra.mxu0 %v998
        %1815 = vmatmul.f32.gmra.mxu0 %v1752
        %v1816 = vpop.f32.mrf.mxu0
        %v1817 = vadd.f32 %v1704, %v1816
        %1818 = vmatmul.f32.gmra.mxu0 %v1755
        %v1819 = vpop.f32.mrf.mxu0
        %v1820 = vadd.f32 %v1707, %v1819
        %1821 = vmatmul.f32.gmra.mxu0 %v1758
        %v1822 = vpop.f32.mrf.mxu0
        %v1823 = vadd.f32 %v1710, %v1822
        %1824 = vmatmul.f32.gmra.mxu0 %v1761
        %v1825 = vpop.f32.mrf.mxu0
        %v1826 = vadd.f32 %v1713, %v1825
        %1827 = vmatmul.f32.gmra.mxu0 %v1764
        %v1828 = vpop.f32.mrf.mxu0
        %v1829 = vadd.f32 %v1716, %v1828
        %1830 = vmatmul.f32.gmra.mxu0 %v1767
        %v1831 = vpop.f32.mrf.mxu0
        %v1832 = vadd.f32 %v1719, %v1831
        %1833 = vmatmul.f32.gmra.mxu0 %v1770
        %v1834 = vpop.f32.mrf.mxu0
        %v1835 = vadd.f32 %v1722, %v1834
        %1836 = vmatmul.f32.gmra.mxu0 %v1773
        %v1837 = vpop.f32.mrf.mxu0
        %v1838 = vadd.f32 %v1725, %v1837
        %1839 = vmatmul.f32.gmra.mxu0 %v1776
        %v1840 = vpop.f32.mrf.mxu0
        %v1841 = vadd.f32 %v1728, %v1840
        %1842 = vmatmul.f32.gmra.mxu0 %v1779
        %v1843 = vpop.f32.mrf.mxu0
        %v1844 = vadd.f32 %v1731, %v1843
        %1845 = vmatmul.f32.gmra.mxu0 %v1782
        %v1846 = vpop.f32.mrf.mxu0
        %v1847 = vadd.f32 %v1734, %v1846
        %1848 = vmatmul.f32.gmra.mxu0 %v1785
        %v1849 = vpop.f32.mrf.mxu0
        %v1850 = vadd.f32 %v1737, %v1849
        %1851 = vmatmul.f32.gmra.mxu0 %v1788
        %v1852 = vpop.f32.mrf.mxu0
        %v1853 = vadd.f32 %v1740, %v1852
        %1854 = vmatmul.f32.gmra.mxu0 %v1791
        %v1855 = vpop.f32.mrf.mxu0
        %v1856 = vadd.f32 %v1743, %v1855
        %1857 = vmatmul.f32.gmra.mxu0 %v1794
        %v1858 = vpop.f32.mrf.mxu0
        %v1859 = vadd.f32 %v1746, %v1858
        %1860 = vmatmul.f32.gmra.mxu0 %v1797
        %v1861 = vpop.f32.mrf.mxu0
        %v1862 = vadd.f32 %v1749, %v1861
        %1863 = vdwg.mxu0
        %s1864 = scalar_lea.vmem %s1, 64
        %v1865 = vld [vmem:[%s1864] sm:$0xff]
        %v1866 = vld [vmem:[%s1864 + $0x8] sm:$0xff]
        %v1867 = vld [vmem:[%s1864 + $0x10] sm:$0xff]
        %v1868 = vld [vmem:[%s1864 + $0x18] sm:$0xff]
        %1869 = vrot.lane.b32.xlu0 %v329, 112
        %v1870 = vpop.permute.xlu0 %1869
        %1871 = vrot.lane.b32.xlu0 %v332, 112
        %v1872 = vpop.permute.xlu0 %1871
        %1873 = vrot.lane.b32.xlu0 %v335, 112
        %v1874 = vpop.permute.xlu0 %1873
        %1875 = vrot.lane.b32.xlu0 %v338, 112
        %v1876 = vpop.permute.xlu0 %1875
        %1877 = vrot.lane.b32.xlu0 %v329, 80
        %v1878 = vpop.permute.xlu0 %1877
        %1879 = vrot.lane.b32.xlu0 %v332, 80
        %v1880 = vpop.permute.xlu0 %1879
        %1881 = vrot.lane.b32.xlu0 %v335, 80
        %v1882 = vpop.permute.xlu0 %1881
        %1883 = vrot.lane.b32.xlu0 %v338, 80
        %v1884 = vpop.permute.xlu0 %1883
        %v1885 = vsel %vm392, %v1870, 0
        %v1887 = vsel %vm392, %v1872, 0
        %v1889 = vsel %vm392, %v1874, 0
        %v1891 = vsel %vm392, %v1876, 0
        %v1893 = vsel %vm392, %v1878, 0
        %v1895 = vsel %vm392, %v1880, 0
        %v1897 = vsel %vm392, %v1882, 0
        %v1899 = vsel %vm392, %v1884, 0
        %1901 = vmatpush.xpose.msra.mxu0 0.0
        %1902 = vmatpush.xpose.msra.mxu0 0.0
        %1903 = vmatpush.xpose.msra.mxu0 0.0
        %1904 = vmatpush.xpose.msra.mxu0 0.0
        %1905 = vmatpush.xpose.msra.mxu0 0.0
        %1906 = vmatpush.xpose.msra.mxu0 0.0
        %1907 = vmatpush.xpose.msra.mxu0 0.0
        %1908 = vmatpush.xpose.msra.mxu0 0.0
        %1909 = vmatpush.xpose.msra.mxu0 0.0
        %1910 = vmatpush.xpose.msra.mxu0 0.0
        %1911 = vmatpush.xpose.msra.mxu0 0.0
        %1912 = vmatpush.xpose.msra.mxu0 0.0
        %1913 = vmatpush.xpose.msra.mxu0 %v1899
        %1914 = vmatpush.xpose.msra.mxu0 %v1897
        %1915 = vmatpush.xpose.msra.mxu0 %v1895
        %1916 = vmatpush.xpose.msra.mxu0 %v1893
        %1917 = vmatmul.f32.gmra.mxu0 %v1885
        %v1918 = vpop.f32.mrf.mxu0
        %v1919 = vadd.f32 %v1865, %v1918
        %1920 = vmatmul.f32.gmra.mxu0 %v1887
        %v1921 = vpop.f32.mrf.mxu0
        %v1922 = vadd.f32 %v1866, %v1921
        %1923 = vmatmul.f32.gmra.mxu0 %v1889
        %v1924 = vpop.f32.mrf.mxu0
        %v1925 = vadd.f32 %v1867, %v1924
        %1926 = vmatmul.f32.gmra.mxu0 %v1891
        %v1927 = vpop.f32.mrf.mxu0
        %v1928 = vadd.f32 %v1868, %v1927
        %1929 = vdwg.mxu0
        %1930 = vrot.lane.b32.xlu0 %v341, 112
        %v1931 = vpop.permute.xlu0 %1930
        %1932 = vrot.lane.b32.xlu0 %v344, 112
        %v1933 = vpop.permute.xlu0 %1932
        %1934 = vrot.lane.b32.xlu0 %v347, 112
        %v1935 = vpop.permute.xlu0 %1934
        %1936 = vrot.lane.b32.xlu0 %v350, 112
        %v1937 = vpop.permute.xlu0 %1936
        %1938 = vrot.lane.b32.xlu0 %v341, 80
        %v1939 = vpop.permute.xlu0 %1938
        %1940 = vrot.lane.b32.xlu0 %v344, 80
        %v1941 = vpop.permute.xlu0 %1940
        %1942 = vrot.lane.b32.xlu0 %v347, 80
        %v1943 = vpop.permute.xlu0 %1942
        %1944 = vrot.lane.b32.xlu0 %v350, 80
        %v1945 = vpop.permute.xlu0 %1944
        %v1946 = vsel %vm392, %v1931, 0
        %v1948 = vsel %vm392, %v1933, 0
        %v1950 = vsel %vm392, %v1935, 0
        %v1952 = vsel %vm392, %v1937, 0
        %v1954 = vsel %vm392, %v1939, 0
        %v1956 = vsel %vm392, %v1941, 0
        %v1958 = vsel %vm392, %v1943, 0
        %v1960 = vsel %vm392, %v1945, 0
        %1962 = vmatpush.xpose.msra.mxu0 0.0
        %1963 = vmatpush.xpose.msra.mxu0 0.0
        %1964 = vmatpush.xpose.msra.mxu0 0.0
        %1965 = vmatpush.xpose.msra.mxu0 0.0
        %1966 = vmatpush.xpose.msra.mxu0 0.0
        %1967 = vmatpush.xpose.msra.mxu0 0.0
        %1968 = vmatpush.xpose.msra.mxu0 0.0
        %1969 = vmatpush.xpose.msra.mxu0 0.0
        %1970 = vmatpush.xpose.msra.mxu0 0.0
        %1971 = vmatpush.xpose.msra.mxu0 0.0
        %1972 = vmatpush.xpose.msra.mxu0 0.0
        %1973 = vmatpush.xpose.msra.mxu0 0.0
        %1974 = vmatpush.xpose.msra.mxu0 %v1960
        %1975 = vmatpush.xpose.msra.mxu0 %v1958
        %1976 = vmatpush.xpose.msra.mxu0 %v1956
        %1977 = vmatpush.xpose.msra.mxu0 %v1954
        %1978 = vmatmul.f32.gmra.mxu0 %v1946
        %v1979 = vpop.f32.mrf.mxu0
        %v1980 = vadd.f32 %v1865, %v1979
        %1981 = vmatmul.f32.gmra.mxu0 %v1948
        %v1982 = vpop.f32.mrf.mxu0
        %v1983 = vadd.f32 %v1866, %v1982
        %1984 = vmatmul.f32.gmra.mxu0 %v1950
        %v1985 = vpop.f32.mrf.mxu0
        %v1986 = vadd.f32 %v1867, %v1985
        %1987 = vmatmul.f32.gmra.mxu0 %v1952
        %v1988 = vpop.f32.mrf.mxu0
        %v1989 = vadd.f32 %v1868, %v1988
        %1990 = vdwg.mxu0
        %1991 = vrot.lane.b32.xlu0 %v353, 112
        %v1992 = vpop.permute.xlu0 %1991
        %1993 = vrot.lane.b32.xlu0 %v356, 112
        %v1994 = vpop.permute.xlu0 %1993
        %1995 = vrot.lane.b32.xlu0 %v359, 112
        %v1996 = vpop.permute.xlu0 %1995
        %1997 = vrot.lane.b32.xlu0 %v362, 112
        %v1998 = vpop.permute.xlu0 %1997
        %1999 = vrot.lane.b32.xlu0 %v353, 80
        %v2000 = vpop.permute.xlu0 %1999
        %2001 = vrot.lane.b32.xlu0 %v356, 80
        %v2002 = vpop.permute.xlu0 %2001
        %2003 = vrot.lane.b32.xlu0 %v359, 80
        %v2004 = vpop.permute.xlu0 %2003
        %2005 = vrot.lane.b32.xlu0 %v362, 80
        %v2006 = vpop.permute.xlu0 %2005
        %v2007 = vsel %vm392, %v1992, 0
        %v2009 = vsel %vm392, %v1994, 0
        %v2011 = vsel %vm392, %v1996, 0
        %v2013 = vsel %vm392, %v1998, 0
        %v2015 = vsel %vm392, %v2000, 0
        %v2017 = vsel %vm392, %v2002, 0
        %v2019 = vsel %vm392, %v2004, 0
        %v2021 = vsel %vm392, %v2006, 0
        %2023 = vmatpush.xpose.msra.mxu0 0.0
        %2024 = vmatpush.xpose.msra.mxu0 0.0
        %2025 = vmatpush.xpose.msra.mxu0 0.0
        %2026 = vmatpush.xpose.msra.mxu0 0.0
        %2027 = vmatpush.xpose.msra.mxu0 0.0
        %2028 = vmatpush.xpose.msra.mxu0 0.0
        %2029 = vmatpush.xpose.msra.mxu0 0.0
        %2030 = vmatpush.xpose.msra.mxu0 0.0
        %2031 = vmatpush.xpose.msra.mxu0 0.0
        %2032 = vmatpush.xpose.msra.mxu0 0.0
        %2033 = vmatpush.xpose.msra.mxu0 0.0
        %2034 = vmatpush.xpose.msra.mxu0 0.0
        %2035 = vmatpush.xpose.msra.mxu0 %v2021
        %2036 = vmatpush.xpose.msra.mxu0 %v2019
        %2037 = vmatpush.xpose.msra.mxu0 %v2017
        %2038 = vmatpush.xpose.msra.mxu0 %v2015
        %2039 = vmatmul.f32.gmra.mxu0 %v2007
        %v2040 = vpop.f32.mrf.mxu0
        %v2041 = vadd.f32 %v1865, %v2040
        %2042 = vmatmul.f32.gmra.mxu0 %v2009
        %v2043 = vpop.f32.mrf.mxu0
        %v2044 = vadd.f32 %v1866, %v2043
        %2045 = vmatmul.f32.gmra.mxu0 %v2011
        %v2046 = vpop.f32.mrf.mxu0
        %v2047 = vadd.f32 %v1867, %v2046
        %2048 = vmatmul.f32.gmra.mxu0 %v2013
        %v2049 = vpop.f32.mrf.mxu0
        %v2050 = vadd.f32 %v1868, %v2049
        %2051 = vdwg.mxu0
        %2052 = vrot.lane.b32.xlu0 %v365, 112
        %v2053 = vpop.permute.xlu0 %2052
        %2054 = vrot.lane.b32.xlu0 %v368, 112
        %v2055 = vpop.permute.xlu0 %2054
        %2056 = vrot.lane.b32.xlu0 %v371, 112
        %v2057 = vpop.permute.xlu0 %2056
        %2058 = vrot.lane.b32.xlu0 %v374, 112
        %v2059 = vpop.permute.xlu0 %2058
        %2060 = vrot.lane.b32.xlu0 %v365, 80
        %v2061 = vpop.permute.xlu0 %2060
        %2062 = vrot.lane.b32.xlu0 %v368, 80
        %v2063 = vpop.permute.xlu0 %2062
        %2064 = vrot.lane.b32.xlu0 %v371, 80
        %v2065 = vpop.permute.xlu0 %2064
        %2066 = vrot.lane.b32.xlu0 %v374, 80
        %v2067 = vpop.permute.xlu0 %2066
        %v2068 = vsel %vm392, %v2053, 0
        %v2070 = vsel %vm392, %v2055, 0
        %v2072 = vsel %vm392, %v2057, 0
        %v2074 = vsel %vm392, %v2059, 0
        %v2076 = vsel %vm392, %v2061, 0
        %v2078 = vsel %vm392, %v2063, 0
        %v2080 = vsel %vm392, %v2065, 0
        %v2082 = vsel %vm392, %v2067, 0
        %2084 = vmatpush.xpose.msra.mxu0 0.0
        %2085 = vmatpush.xpose.msra.mxu0 0.0
        %2086 = vmatpush.xpose.msra.mxu0 0.0
        %2087 = vmatpush.xpose.msra.mxu0 0.0
        %2088 = vmatpush.xpose.msra.mxu0 0.0
        %2089 = vmatpush.xpose.msra.mxu0 0.0
        %2090 = vmatpush.xpose.msra.mxu0 0.0
        %2091 = vmatpush.xpose.msra.mxu0 0.0
        %2092 = vmatpush.xpose.msra.mxu0 0.0
        %2093 = vmatpush.xpose.msra.mxu0 0.0
        %2094 = vmatpush.xpose.msra.mxu0 0.0
        %2095 = vmatpush.xpose.msra.mxu0 0.0
        %2096 = vmatpush.xpose.msra.mxu0 %v2082
        %2097 = vmatpush.xpose.msra.mxu0 %v2080
        %2098 = vmatpush.xpose.msra.mxu0 %v2078
        %2099 = vmatpush.xpose.msra.mxu0 %v2076
        %2100 = vmatmul.f32.gmra.mxu0 %v2068
        %v2101 = vpop.f32.mrf.mxu0
        %v2102 = vadd.f32 %v1865, %v2101
        %2103 = vmatmul.f32.gmra.mxu0 %v2070
        %v2104 = vpop.f32.mrf.mxu0
        %v2105 = vadd.f32 %v1866, %v2104
        %2106 = vmatmul.f32.gmra.mxu0 %v2072
        %v2107 = vpop.f32.mrf.mxu0
        %v2108 = vadd.f32 %v1867, %v2107
        %2109 = vmatmul.f32.gmra.mxu0 %v2074
        %v2110 = vpop.f32.mrf.mxu0
        %v2111 = vadd.f32 %v1868, %v2110
        %2112 = vdwg.mxu0
        %v2113 = vsel %vm609, %v1919, -inf
        %2114 = vmax.xlane.f32.xlu0 %v2113
        %v2115 = vpop.xlane.xlu0 %2114
        %v2116 = vsel %vm609, %v1922, -inf
        %2117 = vmax.xlane.f32.xlu0 %v2116
        %v2118 = vpop.xlane.xlu0 %2117
        %v2119 = vsel %vm609, %v1925, -inf
        %2120 = vmax.xlane.f32.xlu0 %v2119
        %v2121 = vpop.xlane.xlu0 %2120
        %v2122 = vsel %vm609, %v1928, -inf
        %2123 = vmax.xlane.f32.xlu0 %v2122
        %v2124 = vpop.xlane.xlu0 %2123
        %v2125 = vsel %vm609, %v1980, -inf
        %2126 = vmax.xlane.f32.xlu0 %v2125
        %v2127 = vpop.xlane.xlu0 %2126
        %v2128 = vsel %vm609, %v1983, -inf
        %2129 = vmax.xlane.f32.xlu0 %v2128
        %v2130 = vpop.xlane.xlu0 %2129
        %v2131 = vsel %vm609, %v1986, -inf
        %2132 = vmax.xlane.f32.xlu0 %v2131
        %v2133 = vpop.xlane.xlu0 %2132
        %v2134 = vsel %vm609, %v1989, -inf
        %2135 = vmax.xlane.f32.xlu0 %v2134
        %v2136 = vpop.xlane.xlu0 %2135
        %v2137 = vsel %vm609, %v2041, -inf
        %2138 = vmax.xlane.f32.xlu0 %v2137
        %v2139 = vpop.xlane.xlu0 %2138
        %v2140 = vsel %vm609, %v2044, -inf
        %2141 = vmax.xlane.f32.xlu0 %v2140
        %v2142 = vpop.xlane.xlu0 %2141
        %v2143 = vsel %vm609, %v2047, -inf
        %2144 = vmax.xlane.f32.xlu0 %v2143
        %v2145 = vpop.xlane.xlu0 %2144
        %v2146 = vsel %vm609, %v2050, -inf
        %2147 = vmax.xlane.f32.xlu0 %v2146
        %v2148 = vpop.xlane.xlu0 %2147
        %v2149 = vsel %vm609, %v2102, -inf
        %2150 = vmax.xlane.f32.xlu0 %v2149
        %v2151 = vpop.xlane.xlu0 %2150
        %v2152 = vsel %vm609, %v2105, -inf
        %2153 = vmax.xlane.f32.xlu0 %v2152
        %v2154 = vpop.xlane.xlu0 %2153
        %v2155 = vsel %vm609, %v2108, -inf
        %2156 = vmax.xlane.f32.xlu0 %v2155
        %v2157 = vpop.xlane.xlu0 %2156
        %v2158 = vsel %vm609, %v2111, -inf
        %2159 = vmax.xlane.f32.xlu0 %v2158
        %v2160 = vpop.xlane.xlu0 %2159
        %v2161 = vsub.f32 %v1919, %v2115
        %v2162 = vsub.f32 %v1922, %v2118
        %v2163 = vsub.f32 %v1925, %v2121
        %v2164 = vsub.f32 %v1928, %v2124
        %v2165 = vsub.f32 %v1980, %v2127
        %v2166 = vsub.f32 %v1983, %v2130
        %v2167 = vsub.f32 %v1986, %v2133
        %v2168 = vsub.f32 %v1989, %v2136
        %v2169 = vsub.f32 %v2041, %v2139
        %v2170 = vsub.f32 %v2044, %v2142
        %v2171 = vsub.f32 %v2047, %v2145
        %v2172 = vsub.f32 %v2050, %v2148
        %v2173 = vsub.f32 %v2102, %v2151
        %v2174 = vsub.f32 %v2105, %v2154
        %v2175 = vsub.f32 %v2108, %v2157
        %v2176 = vsub.f32 %v2111, %v2160
        %v2177 = vmul.f32 %v2161, 1.442695
        %v2178 = vpow.pop %v2177
        %v2179 = vmul.f32 %v2162, 1.442695
        %v2180 = vpow.pop %v2179
        %v2181 = vmul.f32 %v2163, 1.442695
        %v2182 = vpow.pop %v2181
        %v2183 = vmul.f32 %v2164, 1.442695
        %v2184 = vpow.pop %v2183
        %v2185 = vmul.f32 %v2165, 1.442695
        %v2186 = vpow.pop %v2185
        %v2187 = vmul.f32 %v2166, 1.442695
        %v2188 = vpow.pop %v2187
        %v2189 = vmul.f32 %v2167, 1.442695
        %v2190 = vpow.pop %v2189
        %v2191 = vmul.f32 %v2168, 1.442695
        %v2192 = vpow.pop %v2191
        %v2193 = vmul.f32 %v2169, 1.442695
        %v2194 = vpow.pop %v2193
        %v2195 = vmul.f32 %v2170, 1.442695
        %v2196 = vpow.pop %v2195
        %v2197 = vmul.f32 %v2171, 1.442695
        %v2198 = vpow.pop %v2197
        %v2199 = vmul.f32 %v2172, 1.442695
        %v2200 = vpow.pop %v2199
        %v2201 = vmul.f32 %v2173, 1.442695
        %v2202 = vpow.pop %v2201
        %v2203 = vmul.f32 %v2174, 1.442695
        %v2204 = vpow.pop %v2203
        %v2205 = vmul.f32 %v2175, 1.442695
        %v2206 = vpow.pop %v2205
        %v2207 = vmul.f32 %v2176, 1.442695
        %v2208 = vpow.pop %v2207
        %v2209 = vsel %vm609, %v2178, 0.0
        %2210 = vadd.xlane.f32.xlu0 %v2209
        %v2211 = vpop.xlane.xlu0 %2210
        %v2212 = vsel %vm609, %v2180, 0.0
        %2213 = vadd.xlane.f32.xlu0 %v2212
        %v2214 = vpop.xlane.xlu0 %2213
        %v2215 = vsel %vm609, %v2182, 0.0
        %2216 = vadd.xlane.f32.xlu0 %v2215
        %v2217 = vpop.xlane.xlu0 %2216
        %v2218 = vsel %vm609, %v2184, 0.0
        %2219 = vadd.xlane.f32.xlu0 %v2218
        %v2220 = vpop.xlane.xlu0 %2219
        %v2221 = vsel %vm609, %v2186, 0.0
        %2222 = vadd.xlane.f32.xlu0 %v2221
        %v2223 = vpop.xlane.xlu0 %2222
        %v2224 = vsel %vm609, %v2188, 0.0
        %2225 = vadd.xlane.f32.xlu0 %v2224
        %v2226 = vpop.xlane.xlu0 %2225
        %v2227 = vsel %vm609, %v2190, 0.0
        %2228 = vadd.xlane.f32.xlu0 %v2227
        %v2229 = vpop.xlane.xlu0 %2228
        %v2230 = vsel %vm609, %v2192, 0.0
        %2231 = vadd.xlane.f32.xlu0 %v2230
        %v2232 = vpop.xlane.xlu0 %2231
        %v2233 = vsel %vm609, %v2194, 0.0
        %2234 = vadd.xlane.f32.xlu0 %v2233
        %v2235 = vpop.xlane.xlu0 %2234
        %v2236 = vsel %vm609, %v2196, 0.0
        %2237 = vadd.xlane.f32.xlu0 %v2236
        %v2238 = vpop.xlane.xlu0 %2237
        %v2239 = vsel %vm609, %v2198, 0.0
        %2240 = vadd.xlane.f32.xlu0 %v2239
        %v2241 = vpop.xlane.xlu0 %2240
        %v2242 = vsel %vm609, %v2200, 0.0
        %2243 = vadd.xlane.f32.xlu0 %v2242
        %v2244 = vpop.xlane.xlu0 %2243
        %v2245 = vsel %vm609, %v2202, 0.0
        %2246 = vadd.xlane.f32.xlu0 %v2245
        %v2247 = vpop.xlane.xlu0 %2246
        %v2248 = vsel %vm609, %v2204, 0.0
        %2249 = vadd.xlane.f32.xlu0 %v2248
        %v2250 = vpop.xlane.xlu0 %2249
        %v2251 = vsel %vm609, %v2206, 0.0
        %2252 = vadd.xlane.f32.xlu0 %v2251
        %v2253 = vpop.xlane.xlu0 %2252
        %v2254 = vsel %vm609, %v2208, 0.0
        %2255 = vadd.xlane.f32.xlu0 %v2254
        %v2256 = vpop.xlane.xlu0 %2255
        %v2257 = vrcp.pop %v2211
        %v2258 = vrcp.pop %v2214
        %v2259 = vrcp.pop %v2217
        %v2260 = vrcp.pop %v2220
        %v2261 = vrcp.pop %v2223
        %v2262 = vrcp.pop %v2226
        %v2263 = vrcp.pop %v2229
        %v2264 = vrcp.pop %v2232
        %v2265 = vrcp.pop %v2235
        %v2266 = vrcp.pop %v2238
        %v2267 = vrcp.pop %v2241
        %v2268 = vrcp.pop %v2244
        %v2269 = vrcp.pop %v2247
        %v2270 = vrcp.pop %v2250
        %v2271 = vrcp.pop %v2253
        %v2272 = vrcp.pop %v2256
        %v2273 = vmul.f32 %v2178, %v2257
        %v2274 = vmul.f32 %v2180, %v2258
        %v2275 = vmul.f32 %v2182, %v2259
        %v2276 = vmul.f32 %v2184, %v2260
        %v2277 = vmul.f32 %v2186, %v2261
        %v2278 = vmul.f32 %v2188, %v2262
        %v2279 = vmul.f32 %v2190, %v2263
        %v2280 = vmul.f32 %v2192, %v2264
        %v2281 = vmul.f32 %v2194, %v2265
        %v2282 = vmul.f32 %v2196, %v2266
        %v2283 = vmul.f32 %v2198, %v2267
        %v2284 = vmul.f32 %v2200, %v2268
        %v2285 = vmul.f32 %v2202, %v2269
        %v2286 = vmul.f32 %v2204, %v2270
        %v2287 = vmul.f32 %v2206, %v2271
        %v2288 = vmul.f32 %v2208, %v2272
        %2289 = vrot.lane.b32.xlu0 %v329, 48
        %v2290 = vpop.permute.xlu0 %2289
        %2291 = vrot.lane.b32.xlu0 %v332, 48
        %v2292 = vpop.permute.xlu0 %2291
        %2293 = vrot.lane.b32.xlu0 %v335, 48
        %v2294 = vpop.permute.xlu0 %2293
        %2295 = vrot.lane.b32.xlu0 %v338, 48
        %v2296 = vpop.permute.xlu0 %2295
        %v2302 = vsel %vm609, %v2273, 0
        %v2305 = vsel %vm609, %v2274, 0
        %v2308 = vsel %vm609, %v2275, 0
        %v2311 = vsel %vm609, %v2276, 0
        %2313 = vmatpush.msra.mxu0 0.0
        %2314 = vmatpush.msra.mxu0 0.0
        %2315 = vmatpush.msra.mxu0 0.0
        %2316 = vmatpush.msra.mxu0 0.0
        %2317 = vmatpush.msra.mxu0 0.0
        %2318 = vmatpush.msra.mxu0 0.0
        %2319 = vmatpush.msra.mxu0 0.0
        %2320 = vmatpush.msra.mxu0 0.0
        %2321 = vmatpush.msra.mxu0 0.0
        %2322 = vmatpush.msra.mxu0 0.0
        %2323 = vmatpush.msra.mxu0 0.0
        %2324 = vmatpush.msra.mxu0 0.0
        %2325 = vmatpush.msra.mxu0 %v2296
        %2326 = vmatpush.msra.mxu0 %v2294
        %2327 = vmatpush.msra.mxu0 %v2292
        %2328 = vmatpush.msra.mxu0 %v2290
        %2329 = vmatmul.f32.gmra.mxu0 %v2302
        %v2330 = vpop.f32.mrf.mxu0
        %v2331 = vadd.f32 0.0, %v2330
        %2332 = vmatmul.f32.gmra.mxu0 %v2305
        %v2333 = vpop.f32.mrf.mxu0
        %v2334 = vadd.f32 0.0, %v2333
        %2335 = vmatmul.f32.gmra.mxu0 %v2308
        %v2336 = vpop.f32.mrf.mxu0
        %v2337 = vadd.f32 0.0, %v2336
        %2338 = vmatmul.f32.gmra.mxu0 %v2311
        %v2339 = vpop.f32.mrf.mxu0
        %v2340 = vadd.f32 0.0, %v2339
        %2341 = vdwg.mxu0
        %2342 = vrot.lane.b32.xlu0 %v341, 48
        %v2343 = vpop.permute.xlu0 %2342
        %2344 = vrot.lane.b32.xlu0 %v344, 48
        %v2345 = vpop.permute.xlu0 %2344
        %2346 = vrot.lane.b32.xlu0 %v347, 48
        %v2347 = vpop.permute.xlu0 %2346
        %2348 = vrot.lane.b32.xlu0 %v350, 48
        %v2349 = vpop.permute.xlu0 %2348
        %v2355 = vsel %vm609, %v2277, 0
        %v2358 = vsel %vm609, %v2278, 0
        %v2361 = vsel %vm609, %v2279, 0
        %v2364 = vsel %vm609, %v2280, 0
        %2366 = vmatpush.msra.mxu0 0.0
        %2367 = vmatpush.msra.mxu0 0.0
        %2368 = vmatpush.msra.mxu0 0.0
        %2369 = vmatpush.msra.mxu0 0.0
        %2370 = vmatpush.msra.mxu0 0.0
        %2371 = vmatpush.msra.mxu0 0.0
        %2372 = vmatpush.msra.mxu0 0.0
        %2373 = vmatpush.msra.mxu0 0.0
        %2374 = vmatpush.msra.mxu0 0.0
        %2375 = vmatpush.msra.mxu0 0.0
        %2376 = vmatpush.msra.mxu0 0.0
        %2377 = vmatpush.msra.mxu0 0.0
        %2378 = vmatpush.msra.mxu0 %v2349
        %2379 = vmatpush.msra.mxu0 %v2347
        %2380 = vmatpush.msra.mxu0 %v2345
        %2381 = vmatpush.msra.mxu0 %v2343
        %2382 = vmatmul.f32.gmra.mxu0 %v2355
        %v2383 = vpop.f32.mrf.mxu0
        %v2384 = vadd.f32 0.0, %v2383
        %2385 = vmatmul.f32.gmra.mxu0 %v2358
        %v2386 = vpop.f32.mrf.mxu0
        %v2387 = vadd.f32 0.0, %v2386
        %2388 = vmatmul.f32.gmra.mxu0 %v2361
        %v2389 = vpop.f32.mrf.mxu0
        %v2390 = vadd.f32 0.0, %v2389
        %2391 = vmatmul.f32.gmra.mxu0 %v2364
        %v2392 = vpop.f32.mrf.mxu0
        %v2393 = vadd.f32 0.0, %v2392
        %2394 = vdwg.mxu0
        %2395 = vrot.lane.b32.xlu0 %v353, 48
        %v2396 = vpop.permute.xlu0 %2395
        %2397 = vrot.lane.b32.xlu0 %v356, 48
        %v2398 = vpop.permute.xlu0 %2397
        %2399 = vrot.lane.b32.xlu0 %v359, 48
        %v2400 = vpop.permute.xlu0 %2399
        %2401 = vrot.lane.b32.xlu0 %v362, 48
        %v2402 = vpop.permute.xlu0 %2401
        %v2408 = vsel %vm609, %v2281, 0
        %v2411 = vsel %vm609, %v2282, 0
        %v2414 = vsel %vm609, %v2283, 0
        %v2417 = vsel %vm609, %v2284, 0
        %2419 = vmatpush.msra.mxu0 0.0
        %2420 = vmatpush.msra.mxu0 0.0
        %2421 = vmatpush.msra.mxu0 0.0
        %2422 = vmatpush.msra.mxu0 0.0
        %2423 = vmatpush.msra.mxu0 0.0
        %2424 = vmatpush.msra.mxu0 0.0
        %2425 = vmatpush.msra.mxu0 0.0
        %2426 = vmatpush.msra.mxu0 0.0
        %2427 = vmatpush.msra.mxu0 0.0
        %2428 = vmatpush.msra.mxu0 0.0
        %2429 = vmatpush.msra.mxu0 0.0
        %2430 = vmatpush.msra.mxu0 0.0
        %2431 = vmatpush.msra.mxu0 %v2402
        %2432 = vmatpush.msra.mxu0 %v2400
        %2433 = vmatpush.msra.mxu0 %v2398
        %2434 = vmatpush.msra.mxu0 %v2396
        %2435 = vmatmul.f32.gmra.mxu0 %v2408
        %v2436 = vpop.f32.mrf.mxu0
        %v2437 = vadd.f32 0.0, %v2436
        %2438 = vmatmul.f32.gmra.mxu0 %v2411
        %v2439 = vpop.f32.mrf.mxu0
        %v2440 = vadd.f32 0.0, %v2439
        %2441 = vmatmul.f32.gmra.mxu0 %v2414
        %v2442 = vpop.f32.mrf.mxu0
        %v2443 = vadd.f32 0.0, %v2442
        %2444 = vmatmul.f32.gmra.mxu0 %v2417
        %v2445 = vpop.f32.mrf.mxu0
        %v2446 = vadd.f32 0.0, %v2445
        %2447 = vdwg.mxu0
        %2448 = vrot.lane.b32.xlu0 %v365, 48
        %v2449 = vpop.permute.xlu0 %2448
        %2450 = vrot.lane.b32.xlu0 %v368, 48
        %v2451 = vpop.permute.xlu0 %2450
        %2452 = vrot.lane.b32.xlu0 %v371, 48
        %v2453 = vpop.permute.xlu0 %2452
        %2454 = vrot.lane.b32.xlu0 %v374, 48
        %v2455 = vpop.permute.xlu0 %2454
        %v2461 = vsel %vm609, %v2285, 0
        %v2464 = vsel %vm609, %v2286, 0
        %v2467 = vsel %vm609, %v2287, 0
        %v2470 = vsel %vm609, %v2288, 0
        %2472 = vmatpush.msra.mxu0 0.0
        %2473 = vmatpush.msra.mxu0 0.0
        %2474 = vmatpush.msra.mxu0 0.0
        %2475 = vmatpush.msra.mxu0 0.0
        %2476 = vmatpush.msra.mxu0 0.0
        %2477 = vmatpush.msra.mxu0 0.0
        %2478 = vmatpush.msra.mxu0 0.0
        %2479 = vmatpush.msra.mxu0 0.0
        %2480 = vmatpush.msra.mxu0 0.0
        %2481 = vmatpush.msra.mxu0 0.0
        %2482 = vmatpush.msra.mxu0 0.0
        %2483 = vmatpush.msra.mxu0 0.0
        %2484 = vmatpush.msra.mxu0 %v2455
        %2485 = vmatpush.msra.mxu0 %v2453
        %2486 = vmatpush.msra.mxu0 %v2451
        %2487 = vmatpush.msra.mxu0 %v2449
        %2488 = vmatmul.f32.gmra.mxu0 %v2461
        %v2489 = vpop.f32.mrf.mxu0
        %v2490 = vadd.f32 0.0, %v2489
        %2491 = vmatmul.f32.gmra.mxu0 %v2464
        %v2492 = vpop.f32.mrf.mxu0
        %v2493 = vadd.f32 0.0, %v2492
        %2494 = vmatmul.f32.gmra.mxu0 %v2467
        %v2495 = vpop.f32.mrf.mxu0
        %v2496 = vadd.f32 0.0, %v2495
        %2497 = vmatmul.f32.gmra.mxu0 %v2470
        %v2498 = vpop.f32.mrf.mxu0
        %v2499 = vadd.f32 0.0, %v2498
        %2500 = vdwg.mxu0
        %s2501 = scalar_lea.vmem %s4, 16
        %v2502 = vld [vmem:[%s2501] sm:$0xff]
        %v2504 = vsel %vm392, %v2331, 0
        %v2507 = vsel %vm392, %v2334, 0
        %v2510 = vsel %vm392, %v2337, 0
        %v2513 = vsel %vm392, %v2340, 0
        %v2516 = vsel %vm392, %v2384, 0
        %v2519 = vsel %vm392, %v2387, 0
        %v2522 = vsel %vm392, %v2390, 0
        %v2525 = vsel %vm392, %v2393, 0
        %v2528 = vsel %vm392, %v2437, 0
        %v2531 = vsel %vm392, %v2440, 0
        %v2534 = vsel %vm392, %v2443, 0
        %v2537 = vsel %vm392, %v2446, 0
        %v2540 = vsel %vm392, %v2490, 0
        %v2543 = vsel %vm392, %v2493, 0
        %v2546 = vsel %vm392, %v2496, 0
        %v2549 = vsel %vm392, %v2499, 0
        %2551 = vmatpush.msra.mxu0 0.0
        %2552 = vmatpush.msra.mxu0 0.0
        %2553 = vmatpush.msra.mxu0 0.0
        %2554 = vmatpush.msra.mxu0 0.0
        %2555 = vmatpush.msra.mxu0 0.0
        %2556 = vmatpush.msra.mxu0 0.0
        %2557 = vmatpush.msra.mxu0 0.0
        %2558 = vmatpush.msra.mxu0 0.0
        %2559 = vmatpush.msra.mxu0 0.0
        %2560 = vmatpush.msra.mxu0 0.0
        %2561 = vmatpush.msra.mxu0 0.0
        %2562 = vmatpush.msra.mxu0 0.0
        %2563 = vmatpush.msra.mxu0 0.0
        %2564 = vmatpush.msra.mxu0 0.0
        %2565 = vmatpush.msra.mxu0 0.0
        %2566 = vmatpush.msra.mxu0 %v2502
        %2567 = vmatmul.f32.gmra.mxu0 %v2504
        %v2568 = vpop.f32.mrf.mxu0
        %v2569 = vadd.f32 0.0, %v2568
        %2570 = vmatmul.f32.gmra.mxu0 %v2507
        %v2571 = vpop.f32.mrf.mxu0
        %v2572 = vadd.f32 0.0, %v2571
        %2573 = vmatmul.f32.gmra.mxu0 %v2510
        %v2574 = vpop.f32.mrf.mxu0
        %v2575 = vadd.f32 0.0, %v2574
        %2576 = vmatmul.f32.gmra.mxu0 %v2513
        %v2577 = vpop.f32.mrf.mxu0
        %v2578 = vadd.f32 0.0, %v2577
        %2579 = vmatmul.f32.gmra.mxu0 %v2516
        %v2580 = vpop.f32.mrf.mxu0
        %v2581 = vadd.f32 0.0, %v2580
        %2582 = vmatmul.f32.gmra.mxu0 %v2519
        %v2583 = vpop.f32.mrf.mxu0
        %v2584 = vadd.f32 0.0, %v2583
        %2585 = vmatmul.f32.gmra.mxu0 %v2522
        %v2586 = vpop.f32.mrf.mxu0
        %v2587 = vadd.f32 0.0, %v2586
        %2588 = vmatmul.f32.gmra.mxu0 %v2525
        %v2589 = vpop.f32.mrf.mxu0
        %v2590 = vadd.f32 0.0, %v2589
        %2591 = vmatmul.f32.gmra.mxu0 %v2528
        %v2592 = vpop.f32.mrf.mxu0
        %v2593 = vadd.f32 0.0, %v2592
        %2594 = vmatmul.f32.gmra.mxu0 %v2531
        %v2595 = vpop.f32.mrf.mxu0
        %v2596 = vadd.f32 0.0, %v2595
        %2597 = vmatmul.f32.gmra.mxu0 %v2534
        %v2598 = vpop.f32.mrf.mxu0
        %v2599 = vadd.f32 0.0, %v2598
        %2600 = vmatmul.f32.gmra.mxu0 %v2537
        %v2601 = vpop.f32.mrf.mxu0
        %v2602 = vadd.f32 0.0, %v2601
        %2603 = vmatmul.f32.gmra.mxu0 %v2540
        %v2604 = vpop.f32.mrf.mxu0
        %v2605 = vadd.f32 0.0, %v2604
        %2606 = vmatmul.f32.gmra.mxu0 %v2543
        %v2607 = vpop.f32.mrf.mxu0
        %v2608 = vadd.f32 0.0, %v2607
        %2609 = vmatmul.f32.gmra.mxu0 %v2546
        %v2610 = vpop.f32.mrf.mxu0
        %v2611 = vadd.f32 0.0, %v2610
        %2612 = vmatmul.f32.gmra.mxu0 %v2549
        %v2613 = vpop.f32.mrf.mxu0
        %v2614 = vadd.f32 0.0, %v2613
        %2615 = vdwg.mxu0
        %v2616 = vadd.f32 %v1817, %v2569
        %v2617 = vadd.f32 %v1820, %v2572
        %v2618 = vadd.f32 %v1823, %v2575
        %v2619 = vadd.f32 %v1826, %v2578
        %v2620 = vadd.f32 %v1829, %v2581
        %v2621 = vadd.f32 %v1832, %v2584
        %v2622 = vadd.f32 %v1835, %v2587
        %v2623 = vadd.f32 %v1838, %v2590
        %v2624 = vadd.f32 %v1841, %v2593
        %v2625 = vadd.f32 %v1844, %v2596
        %v2626 = vadd.f32 %v1847, %v2599
        %v2627 = vadd.f32 %v1850, %v2602
        %v2628 = vadd.f32 %v1853, %v2605
        %v2629 = vadd.f32 %v1856, %v2608
        %v2630 = vadd.f32 %v1859, %v2611
        %v2631 = vadd.f32 %v1862, %v2614
        %s2632 = scalar_lea.vmem %s1, 96
        %v2633 = vld [vmem:[%s2632] sm:$0xff]
        %v2634 = vld [vmem:[%s2632 + $0x8] sm:$0xff]
        %v2635 = vld [vmem:[%s2632 + $0x10] sm:$0xff]
        %v2636 = vld [vmem:[%s2632 + $0x18] sm:$0xff]
        %2637 = vrot.lane.b32.xlu0 %v329, 104
        %v2638 = vpop.permute.xlu0 %2637
        %2639 = vrot.lane.b32.xlu0 %v332, 104
        %v2640 = vpop.permute.xlu0 %2639
        %2641 = vrot.lane.b32.xlu0 %v335, 104
        %v2642 = vpop.permute.xlu0 %2641
        %2643 = vrot.lane.b32.xlu0 %v338, 104
        %v2644 = vpop.permute.xlu0 %2643
        %2645 = vrot.lane.b32.xlu0 %v329, 72
        %v2646 = vpop.permute.xlu0 %2645
        %2647 = vrot.lane.b32.xlu0 %v332, 72
        %v2648 = vpop.permute.xlu0 %2647
        %2649 = vrot.lane.b32.xlu0 %v335, 72
        %v2650 = vpop.permute.xlu0 %2649
        %2651 = vrot.lane.b32.xlu0 %v338, 72
        %v2652 = vpop.permute.xlu0 %2651
        %v2653 = vsel %vm392, %v2638, 0
        %v2655 = vsel %vm392, %v2640, 0
        %v2657 = vsel %vm392, %v2642, 0
        %v2659 = vsel %vm392, %v2644, 0
        %v2661 = vsel %vm392, %v2646, 0
        %v2663 = vsel %vm392, %v2648, 0
        %v2665 = vsel %vm392, %v2650, 0
        %v2667 = vsel %vm392, %v2652, 0
        %2669 = vmatpush.xpose.msra.mxu0 0.0
        %2670 = vmatpush.xpose.msra.mxu0 0.0
        %2671 = vmatpush.xpose.msra.mxu0 0.0
        %2672 = vmatpush.xpose.msra.mxu0 0.0
        %2673 = vmatpush.xpose.msra.mxu0 0.0
        %2674 = vmatpush.xpose.msra.mxu0 0.0
        %2675 = vmatpush.xpose.msra.mxu0 0.0
        %2676 = vmatpush.xpose.msra.mxu0 0.0
        %2677 = vmatpush.xpose.msra.mxu0 0.0
        %2678 = vmatpush.xpose.msra.mxu0 0.0
        %2679 = vmatpush.xpose.msra.mxu0 0.0
        %2680 = vmatpush.xpose.msra.mxu0 0.0
        %2681 = vmatpush.xpose.msra.mxu0 %v2667
        %2682 = vmatpush.xpose.msra.mxu0 %v2665
        %2683 = vmatpush.xpose.msra.mxu0 %v2663
        %2684 = vmatpush.xpose.msra.mxu0 %v2661
        %2685 = vmatmul.f32.gmra.mxu0 %v2653
        %v2686 = vpop.f32.mrf.mxu0
        %v2687 = vadd.f32 %v2633, %v2686
        %2688 = vmatmul.f32.gmra.mxu0 %v2655
        %v2689 = vpop.f32.mrf.mxu0
        %v2690 = vadd.f32 %v2634, %v2689
        %2691 = vmatmul.f32.gmra.mxu0 %v2657
        %v2692 = vpop.f32.mrf.mxu0
        %v2693 = vadd.f32 %v2635, %v2692
        %2694 = vmatmul.f32.gmra.mxu0 %v2659
        %v2695 = vpop.f32.mrf.mxu0
        %v2696 = vadd.f32 %v2636, %v2695
        %2697 = vdwg.mxu0
        %2698 = vrot.lane.b32.xlu0 %v341, 104
        %v2699 = vpop.permute.xlu0 %2698
        %2700 = vrot.lane.b32.xlu0 %v344, 104
        %v2701 = vpop.permute.xlu0 %2700
        %2702 = vrot.lane.b32.xlu0 %v347, 104
        %v2703 = vpop.permute.xlu0 %2702
        %2704 = vrot.lane.b32.xlu0 %v350, 104
        %v2705 = vpop.permute.xlu0 %2704
        %2706 = vrot.lane.b32.xlu0 %v341, 72
        %v2707 = vpop.permute.xlu0 %2706
        %2708 = vrot.lane.b32.xlu0 %v344, 72
        %v2709 = vpop.permute.xlu0 %2708
        %2710 = vrot.lane.b32.xlu0 %v347, 72
        %v2711 = vpop.permute.xlu0 %2710
        %2712 = vrot.lane.b32.xlu0 %v350, 72
        %v2713 = vpop.permute.xlu0 %2712
        %v2714 = vsel %vm392, %v2699, 0
        %v2716 = vsel %vm392, %v2701, 0
        %v2718 = vsel %vm392, %v2703, 0
        %v2720 = vsel %vm392, %v2705, 0
        %v2722 = vsel %vm392, %v2707, 0
        %v2724 = vsel %vm392, %v2709, 0
        %v2726 = vsel %vm392, %v2711, 0
        %v2728 = vsel %vm392, %v2713, 0
        %2730 = vmatpush.xpose.msra.mxu0 0.0
        %2731 = vmatpush.xpose.msra.mxu0 0.0
        %2732 = vmatpush.xpose.msra.mxu0 0.0
        %2733 = vmatpush.xpose.msra.mxu0 0.0
        %2734 = vmatpush.xpose.msra.mxu0 0.0
        %2735 = vmatpush.xpose.msra.mxu0 0.0
        %2736 = vmatpush.xpose.msra.mxu0 0.0
        %2737 = vmatpush.xpose.msra.mxu0 0.0
        %2738 = vmatpush.xpose.msra.mxu0 0.0
        %2739 = vmatpush.xpose.msra.mxu0 0.0
        %2740 = vmatpush.xpose.msra.mxu0 0.0
        %2741 = vmatpush.xpose.msra.mxu0 0.0
        %2742 = vmatpush.xpose.msra.mxu0 %v2728
        %2743 = vmatpush.xpose.msra.mxu0 %v2726
        %2744 = vmatpush.xpose.msra.mxu0 %v2724
        %2745 = vmatpush.xpose.msra.mxu0 %v2722
        %2746 = vmatmul.f32.gmra.mxu0 %v2714
        %v2747 = vpop.f32.mrf.mxu0
        %v2748 = vadd.f32 %v2633, %v2747
        %2749 = vmatmul.f32.gmra.mxu0 %v2716
        %v2750 = vpop.f32.mrf.mxu0
        %v2751 = vadd.f32 %v2634, %v2750
        %2752 = vmatmul.f32.gmra.mxu0 %v2718
        %v2753 = vpop.f32.mrf.mxu0
        %v2754 = vadd.f32 %v2635, %v2753
        %2755 = vmatmul.f32.gmra.mxu0 %v2720
        %v2756 = vpop.f32.mrf.mxu0
        %v2757 = vadd.f32 %v2636, %v2756
        %2758 = vdwg.mxu0
        %2759 = vrot.lane.b32.xlu0 %v353, 104
        %v2760 = vpop.permute.xlu0 %2759
        %2761 = vrot.lane.b32.xlu0 %v356, 104
        %v2762 = vpop.permute.xlu0 %2761
        %2763 = vrot.lane.b32.xlu0 %v359, 104
        %v2764 = vpop.permute.xlu0 %2763
        %2765 = vrot.lane.b32.xlu0 %v362, 104
        %v2766 = vpop.permute.xlu0 %2765
        %2767 = vrot.lane.b32.xlu0 %v353, 72
        %v2768 = vpop.permute.xlu0 %2767
        %2769 = vrot.lane.b32.xlu0 %v356, 72
        %v2770 = vpop.permute.xlu0 %2769
        %2771 = vrot.lane.b32.xlu0 %v359, 72
        %v2772 = vpop.permute.xlu0 %2771
        %2773 = vrot.lane.b32.xlu0 %v362, 72
        %v2774 = vpop.permute.xlu0 %2773
        %v2775 = vsel %vm392, %v2760, 0
        %v2777 = vsel %vm392, %v2762, 0
        %v2779 = vsel %vm392, %v2764, 0
        %v2781 = vsel %vm392, %v2766, 0
        %v2783 = vsel %vm392, %v2768, 0
        %v2785 = vsel %vm392, %v2770, 0
        %v2787 = vsel %vm392, %v2772, 0
        %v2789 = vsel %vm392, %v2774, 0
        %2791 = vmatpush.xpose.msra.mxu0 0.0
        %2792 = vmatpush.xpose.msra.mxu0 0.0
        %2793 = vmatpush.xpose.msra.mxu0 0.0
        %2794 = vmatpush.xpose.msra.mxu0 0.0
        %2795 = vmatpush.xpose.msra.mxu0 0.0
        %2796 = vmatpush.xpose.msra.mxu0 0.0
        %2797 = vmatpush.xpose.msra.mxu0 0.0
        %2798 = vmatpush.xpose.msra.mxu0 0.0
        %2799 = vmatpush.xpose.msra.mxu0 0.0
        %2800 = vmatpush.xpose.msra.mxu0 0.0
        %2801 = vmatpush.xpose.msra.mxu0 0.0
        %2802 = vmatpush.xpose.msra.mxu0 0.0
        %2803 = vmatpush.xpose.msra.mxu0 %v2789
        %2804 = vmatpush.xpose.msra.mxu0 %v2787
        %2805 = vmatpush.xpose.msra.mxu0 %v2785
        %2806 = vmatpush.xpose.msra.mxu0 %v2783
        %2807 = vmatmul.f32.gmra.mxu0 %v2775
        %v2808 = vpop.f32.mrf.mxu0
        %v2809 = vadd.f32 %v2633, %v2808
        %2810 = vmatmul.f32.gmra.mxu0 %v2777
        %v2811 = vpop.f32.mrf.mxu0
        %v2812 = vadd.f32 %v2634, %v2811
        %2813 = vmatmul.f32.gmra.mxu0 %v2779
        %v2814 = vpop.f32.mrf.mxu0
        %v2815 = vadd.f32 %v2635, %v2814
        %2816 = vmatmul.f32.gmra.mxu0 %v2781
        %v2817 = vpop.f32.mrf.mxu0
        %v2818 = vadd.f32 %v2636, %v2817
        %2819 = vdwg.mxu0
        %2820 = vrot.lane.b32.xlu0 %v365, 104
        %v2821 = vpop.permute.xlu0 %2820
        %2822 = vrot.lane.b32.xlu0 %v368, 104
        %v2823 = vpop.permute.xlu0 %2822
        %2824 = vrot.lane.b32.xlu0 %v371, 104
        %v2825 = vpop.permute.xlu0 %2824
        %2826 = vrot.lane.b32.xlu0 %v374, 104
        %v2827 = vpop.permute.xlu0 %2826
        %2828 = vrot.lane.b32.xlu0 %v365, 72
        %v2829 = vpop.permute.xlu0 %2828
        %2830 = vrot.lane.b32.xlu0 %v368, 72
        %v2831 = vpop.permute.xlu0 %2830
        %2832 = vrot.lane.b32.xlu0 %v371, 72
        %v2833 = vpop.permute.xlu0 %2832
        %2834 = vrot.lane.b32.xlu0 %v374, 72
        %v2835 = vpop.permute.xlu0 %2834
        %v2836 = vsel %vm392, %v2821, 0
        %v2838 = vsel %vm392, %v2823, 0
        %v2840 = vsel %vm392, %v2825, 0
        %v2842 = vsel %vm392, %v2827, 0
        %v2844 = vsel %vm392, %v2829, 0
        %v2846 = vsel %vm392, %v2831, 0
        %v2848 = vsel %vm392, %v2833, 0
        %v2850 = vsel %vm392, %v2835, 0
        %2852 = vmatpush.xpose.msra.mxu0 0.0
        %2853 = vmatpush.xpose.msra.mxu0 0.0
        %2854 = vmatpush.xpose.msra.mxu0 0.0
        %2855 = vmatpush.xpose.msra.mxu0 0.0
        %2856 = vmatpush.xpose.msra.mxu0 0.0
        %2857 = vmatpush.xpose.msra.mxu0 0.0
        %2858 = vmatpush.xpose.msra.mxu0 0.0
        %2859 = vmatpush.xpose.msra.mxu0 0.0
        %2860 = vmatpush.xpose.msra.mxu0 0.0
        %2861 = vmatpush.xpose.msra.mxu0 0.0
        %2862 = vmatpush.xpose.msra.mxu0 0.0
        %2863 = vmatpush.xpose.msra.mxu0 0.0
        %2864 = vmatpush.xpose.msra.mxu0 %v2850
        %2865 = vmatpush.xpose.msra.mxu0 %v2848
        %2866 = vmatpush.xpose.msra.mxu0 %v2846
        %2867 = vmatpush.xpose.msra.mxu0 %v2844
        %2868 = vmatmul.f32.gmra.mxu0 %v2836
        %v2869 = vpop.f32.mrf.mxu0
        %v2870 = vadd.f32 %v2633, %v2869
        %2871 = vmatmul.f32.gmra.mxu0 %v2838
        %v2872 = vpop.f32.mrf.mxu0
        %v2873 = vadd.f32 %v2634, %v2872
        %2874 = vmatmul.f32.gmra.mxu0 %v2840
        %v2875 = vpop.f32.mrf.mxu0
        %v2876 = vadd.f32 %v2635, %v2875
        %2877 = vmatmul.f32.gmra.mxu0 %v2842
        %v2878 = vpop.f32.mrf.mxu0
        %v2879 = vadd.f32 %v2636, %v2878
        %2880 = vdwg.mxu0
        %v2881 = vsel %vm609, %v2687, -inf
        %2882 = vmax.xlane.f32.xlu0 %v2881
        %v2883 = vpop.xlane.xlu0 %2882
        %v2884 = vsel %vm609, %v2690, -inf
        %2885 = vmax.xlane.f32.xlu0 %v2884
        %v2886 = vpop.xlane.xlu0 %2885
        %v2887 = vsel %vm609, %v2693, -inf
        %2888 = vmax.xlane.f32.xlu0 %v2887
        %v2889 = vpop.xlane.xlu0 %2888
        %v2890 = vsel %vm609, %v2696, -inf
        %2891 = vmax.xlane.f32.xlu0 %v2890
        %v2892 = vpop.xlane.xlu0 %2891
        %v2893 = vsel %vm609, %v2748, -inf
        %2894 = vmax.xlane.f32.xlu0 %v2893
        %v2895 = vpop.xlane.xlu0 %2894
        %v2896 = vsel %vm609, %v2751, -inf
        %2897 = vmax.xlane.f32.xlu0 %v2896
        %v2898 = vpop.xlane.xlu0 %2897
        %v2899 = vsel %vm609, %v2754, -inf
        %2900 = vmax.xlane.f32.xlu0 %v2899
        %v2901 = vpop.xlane.xlu0 %2900
        %v2902 = vsel %vm609, %v2757, -inf
        %2903 = vmax.xlane.f32.xlu0 %v2902
        %v2904 = vpop.xlane.xlu0 %2903
        %v2905 = vsel %vm609, %v2809, -inf
        %2906 = vmax.xlane.f32.xlu0 %v2905
        %v2907 = vpop.xlane.xlu0 %2906
        %v2908 = vsel %vm609, %v2812, -inf
        %2909 = vmax.xlane.f32.xlu0 %v2908
        %v2910 = vpop.xlane.xlu0 %2909
        %v2911 = vsel %vm609, %v2815, -inf
        %2912 = vmax.xlane.f32.xlu0 %v2911
        %v2913 = vpop.xlane.xlu0 %2912
        %v2914 = vsel %vm609, %v2818, -inf
        %2915 = vmax.xlane.f32.xlu0 %v2914
        %v2916 = vpop.xlane.xlu0 %2915
        %v2917 = vsel %vm609, %v2870, -inf
        %2918 = vmax.xlane.f32.xlu0 %v2917
        %v2919 = vpop.xlane.xlu0 %2918
        %v2920 = vsel %vm609, %v2873, -inf
        %2921 = vmax.xlane.f32.xlu0 %v2920
        %v2922 = vpop.xlane.xlu0 %2921
        %v2923 = vsel %vm609, %v2876, -inf
        %2924 = vmax.xlane.f32.xlu0 %v2923
        %v2925 = vpop.xlane.xlu0 %2924
        %v2926 = vsel %vm609, %v2879, -inf
        %2927 = vmax.xlane.f32.xlu0 %v2926
        %v2928 = vpop.xlane.xlu0 %2927
        %v2929 = vsub.f32 %v2687, %v2883
        %v2930 = vsub.f32 %v2690, %v2886
        %v2931 = vsub.f32 %v2693, %v2889
        %v2932 = vsub.f32 %v2696, %v2892
        %v2933 = vsub.f32 %v2748, %v2895
        %v2934 = vsub.f32 %v2751, %v2898
        %v2935 = vsub.f32 %v2754, %v2901
        %v2936 = vsub.f32 %v2757, %v2904
        %v2937 = vsub.f32 %v2809, %v2907
        %v2938 = vsub.f32 %v2812, %v2910
        %v2939 = vsub.f32 %v2815, %v2913
        %v2940 = vsub.f32 %v2818, %v2916
        %v2941 = vsub.f32 %v2870, %v2919
        %v2942 = vsub.f32 %v2873, %v2922
        %v2943 = vsub.f32 %v2876, %v2925
        %v2944 = vsub.f32 %v2879, %v2928
        %v2945 = vmul.f32 %v2929, 1.442695
        %v2946 = vpow.pop %v2945
        %v2947 = vmul.f32 %v2930, 1.442695
        %v2948 = vpow.pop %v2947
        %v2949 = vmul.f32 %v2931, 1.442695
        %v2950 = vpow.pop %v2949
        %v2951 = vmul.f32 %v2932, 1.442695
        %v2952 = vpow.pop %v2951
        %v2953 = vmul.f32 %v2933, 1.442695
        %v2954 = vpow.pop %v2953
        %v2955 = vmul.f32 %v2934, 1.442695
        %v2956 = vpow.pop %v2955
        %v2957 = vmul.f32 %v2935, 1.442695
        %v2958 = vpow.pop %v2957
        %v2959 = vmul.f32 %v2936, 1.442695
        %v2960 = vpow.pop %v2959
        %v2961 = vmul.f32 %v2937, 1.442695
        %v2962 = vpow.pop %v2961
        %v2963 = vmul.f32 %v2938, 1.442695
        %v2964 = vpow.pop %v2963
        %v2965 = vmul.f32 %v2939, 1.442695
        %v2966 = vpow.pop %v2965
        %v2967 = vmul.f32 %v2940, 1.442695
        %v2968 = vpow.pop %v2967
        %v2969 = vmul.f32 %v2941, 1.442695
        %v2970 = vpow.pop %v2969
        %v2971 = vmul.f32 %v2942, 1.442695
        %v2972 = vpow.pop %v2971
        %v2973 = vmul.f32 %v2943, 1.442695
        %v2974 = vpow.pop %v2973
        %v2975 = vmul.f32 %v2944, 1.442695
        %v2976 = vpow.pop %v2975
        %v2977 = vsel %vm609, %v2946, 0.0
        %2978 = vadd.xlane.f32.xlu0 %v2977
        %v2979 = vpop.xlane.xlu0 %2978
        %v2980 = vsel %vm609, %v2948, 0.0
        %2981 = vadd.xlane.f32.xlu0 %v2980
        %v2982 = vpop.xlane.xlu0 %2981
        %v2983 = vsel %vm609, %v2950, 0.0
        %2984 = vadd.xlane.f32.xlu0 %v2983
        %v2985 = vpop.xlane.xlu0 %2984
        %v2986 = vsel %vm609, %v2952, 0.0
        %2987 = vadd.xlane.f32.xlu0 %v2986
        %v2988 = vpop.xlane.xlu0 %2987
        %v2989 = vsel %vm609, %v2954, 0.0
        %2990 = vadd.xlane.f32.xlu0 %v2989
        %v2991 = vpop.xlane.xlu0 %2990
        %v2992 = vsel %vm609, %v2956, 0.0
        %2993 = vadd.xlane.f32.xlu0 %v2992
        %v2994 = vpop.xlane.xlu0 %2993
        %v2995 = vsel %vm609, %v2958, 0.0
        %2996 = vadd.xlane.f32.xlu0 %v2995
        %v2997 = vpop.xlane.xlu0 %2996
        %v2998 = vsel %vm609, %v2960, 0.0
        %2999 = vadd.xlane.f32.xlu0 %v2998
        %v3000 = vpop.xlane.xlu0 %2999
        %v3001 = vsel %vm609, %v2962, 0.0
        %3002 = vadd.xlane.f32.xlu0 %v3001
        %v3003 = vpop.xlane.xlu0 %3002
        %v3004 = vsel %vm609, %v2964, 0.0
        %3005 = vadd.xlane.f32.xlu0 %v3004
        %v3006 = vpop.xlane.xlu0 %3005
        %v3007 = vsel %vm609, %v2966, 0.0
        %3008 = vadd.xlane.f32.xlu0 %v3007
        %v3009 = vpop.xlane.xlu0 %3008
        %v3010 = vsel %vm609, %v2968, 0.0
        %3011 = vadd.xlane.f32.xlu0 %v3010
        %v3012 = vpop.xlane.xlu0 %3011
        %v3013 = vsel %vm609, %v2970, 0.0
        %3014 = vadd.xlane.f32.xlu0 %v3013
        %v3015 = vpop.xlane.xlu0 %3014
        %v3016 = vsel %vm609, %v2972, 0.0
        %3017 = vadd.xlane.f32.xlu0 %v3016
        %v3018 = vpop.xlane.xlu0 %3017
        %v3019 = vsel %vm609, %v2974, 0.0
        %3020 = vadd.xlane.f32.xlu0 %v3019
        %v3021 = vpop.xlane.xlu0 %3020
        %v3022 = vsel %vm609, %v2976, 0.0
        %3023 = vadd.xlane.f32.xlu0 %v3022
        %v3024 = vpop.xlane.xlu0 %3023
        %v3025 = vrcp.pop %v2979
        %v3026 = vrcp.pop %v2982
        %v3027 = vrcp.pop %v2985
        %v3028 = vrcp.pop %v2988
        %v3029 = vrcp.pop %v2991
        %v3030 = vrcp.pop %v2994
        %v3031 = vrcp.pop %v2997
        %v3032 = vrcp.pop %v3000
        %v3033 = vrcp.pop %v3003
        %v3034 = vrcp.pop %v3006
        %v3035 = vrcp.pop %v3009
        %v3036 = vrcp.pop %v3012
        %v3037 = vrcp.pop %v3015
        %v3038 = vrcp.pop %v3018
        %v3039 = vrcp.pop %v3021
        %v3040 = vrcp.pop %v3024
        %v3041 = vmul.f32 %v2946, %v3025
        %v3042 = vmul.f32 %v2948, %v3026
        %v3043 = vmul.f32 %v2950, %v3027
        %v3044 = vmul.f32 %v2952, %v3028
        %v3045 = vmul.f32 %v2954, %v3029
        %v3046 = vmul.f32 %v2956, %v3030
        %v3047 = vmul.f32 %v2958, %v3031
        %v3048 = vmul.f32 %v2960, %v3032
        %v3049 = vmul.f32 %v2962, %v3033
        %v3050 = vmul.f32 %v2964, %v3034
        %v3051 = vmul.f32 %v2966, %v3035
        %v3052 = vmul.f32 %v2968, %v3036
        %v3053 = vmul.f32 %v2970, %v3037
        %v3054 = vmul.f32 %v2972, %v3038
        %v3055 = vmul.f32 %v2974, %v3039
        %v3056 = vmul.f32 %v2976, %v3040
        %3057 = vrot.lane.b32.xlu0 %v329, 40
        %v3058 = vpop.permute.xlu0 %3057
        %3059 = vrot.lane.b32.xlu0 %v332, 40
        %v3060 = vpop.permute.xlu0 %3059
        %3061 = vrot.lane.b32.xlu0 %v335, 40
        %v3062 = vpop.permute.xlu0 %3061
        %3063 = vrot.lane.b32.xlu0 %v338, 40
        %v3064 = vpop.permute.xlu0 %3063
        %v3070 = vsel %vm609, %v3041, 0
        %v3073 = vsel %vm609, %v3042, 0
        %v3076 = vsel %vm609, %v3043, 0
        %v3079 = vsel %vm609, %v3044, 0
        %3081 = vmatpush.msra.mxu0 0.0
        %3082 = vmatpush.msra.mxu0 0.0
        %3083 = vmatpush.msra.mxu0 0.0
        %3084 = vmatpush.msra.mxu0 0.0
        %3085 = vmatpush.msra.mxu0 0.0
        %3086 = vmatpush.msra.mxu0 0.0
        %3087 = vmatpush.msra.mxu0 0.0
        %3088 = vmatpush.msra.mxu0 0.0
        %3089 = vmatpush.msra.mxu0 0.0
        %3090 = vmatpush.msra.mxu0 0.0
        %3091 = vmatpush.msra.mxu0 0.0
        %3092 = vmatpush.msra.mxu0 0.0
        %3093 = vmatpush.msra.mxu0 %v3064
        %3094 = vmatpush.msra.mxu0 %v3062
        %3095 = vmatpush.msra.mxu0 %v3060
        %3096 = vmatpush.msra.mxu0 %v3058
        %3097 = vmatmul.f32.gmra.mxu0 %v3070
        %v3098 = vpop.f32.mrf.mxu0
        %v3099 = vadd.f32 0.0, %v3098
        %3100 = vmatmul.f32.gmra.mxu0 %v3073
        %v3101 = vpop.f32.mrf.mxu0
        %v3102 = vadd.f32 0.0, %v3101
        %3103 = vmatmul.f32.gmra.mxu0 %v3076
        %v3104 = vpop.f32.mrf.mxu0
        %v3105 = vadd.f32 0.0, %v3104
        %3106 = vmatmul.f32.gmra.mxu0 %v3079
        %v3107 = vpop.f32.mrf.mxu0
        %v3108 = vadd.f32 0.0, %v3107
        %3109 = vdwg.mxu0
        %3110 = vrot.lane.b32.xlu0 %v341, 40
        %v3111 = vpop.permute.xlu0 %3110
        %3112 = vrot.lane.b32.xlu0 %v344, 40
        %v3113 = vpop.permute.xlu0 %3112
        %3114 = vrot.lane.b32.xlu0 %v347, 40
        %v3115 = vpop.permute.xlu0 %3114
        %3116 = vrot.lane.b32.xlu0 %v350, 40
        %v3117 = vpop.permute.xlu0 %3116
        %v3123 = vsel %vm609, %v3045, 0
        %v3126 = vsel %vm609, %v3046, 0
        %v3129 = vsel %vm609, %v3047, 0
        %v3132 = vsel %vm609, %v3048, 0
        %3134 = vmatpush.msra.mxu0 0.0
        %3135 = vmatpush.msra.mxu0 0.0
        %3136 = vmatpush.msra.mxu0 0.0
        %3137 = vmatpush.msra.mxu0 0.0
        %3138 = vmatpush.msra.mxu0 0.0
        %3139 = vmatpush.msra.mxu0 0.0
        %3140 = vmatpush.msra.mxu0 0.0
        %3141 = vmatpush.msra.mxu0 0.0
        %3142 = vmatpush.msra.mxu0 0.0
        %3143 = vmatpush.msra.mxu0 0.0
        %3144 = vmatpush.msra.mxu0 0.0
        %3145 = vmatpush.msra.mxu0 0.0
        %3146 = vmatpush.msra.mxu0 %v3117
        %3147 = vmatpush.msra.mxu0 %v3115
        %3148 = vmatpush.msra.mxu0 %v3113
        %3149 = vmatpush.msra.mxu0 %v3111
        %3150 = vmatmul.f32.gmra.mxu0 %v3123
        %v3151 = vpop.f32.mrf.mxu0
        %v3152 = vadd.f32 0.0, %v3151
        %3153 = vmatmul.f32.gmra.mxu0 %v3126
        %v3154 = vpop.f32.mrf.mxu0
        %v3155 = vadd.f32 0.0, %v3154
        %3156 = vmatmul.f32.gmra.mxu0 %v3129
        %v3157 = vpop.f32.mrf.mxu0
        %v3158 = vadd.f32 0.0, %v3157
        %3159 = vmatmul.f32.gmra.mxu0 %v3132
        %v3160 = vpop.f32.mrf.mxu0
        %v3161 = vadd.f32 0.0, %v3160
        %3162 = vdwg.mxu0
        %3163 = vrot.lane.b32.xlu0 %v353, 40
        %v3164 = vpop.permute.xlu0 %3163
        %3165 = vrot.lane.b32.xlu0 %v356, 40
        %v3166 = vpop.permute.xlu0 %3165
        %3167 = vrot.lane.b32.xlu0 %v359, 40
        %v3168 = vpop.permute.xlu0 %3167
        %3169 = vrot.lane.b32.xlu0 %v362, 40
        %v3170 = vpop.permute.xlu0 %3169
        %v3176 = vsel %vm609, %v3049, 0
        %v3179 = vsel %vm609, %v3050, 0
        %v3182 = vsel %vm609, %v3051, 0
        %v3185 = vsel %vm609, %v3052, 0
        %3187 = vmatpush.msra.mxu0 0.0
        %3188 = vmatpush.msra.mxu0 0.0
        %3189 = vmatpush.msra.mxu0 0.0
        %3190 = vmatpush.msra.mxu0 0.0
        %3191 = vmatpush.msra.mxu0 0.0
        %3192 = vmatpush.msra.mxu0 0.0
        %3193 = vmatpush.msra.mxu0 0.0
        %3194 = vmatpush.msra.mxu0 0.0
        %3195 = vmatpush.msra.mxu0 0.0
        %3196 = vmatpush.msra.mxu0 0.0
        %3197 = vmatpush.msra.mxu0 0.0
        %3198 = vmatpush.msra.mxu0 0.0
        %3199 = vmatpush.msra.mxu0 %v3170
        %3200 = vmatpush.msra.mxu0 %v3168
        %3201 = vmatpush.msra.mxu0 %v3166
        %3202 = vmatpush.msra.mxu0 %v3164
        %3203 = vmatmul.f32.gmra.mxu0 %v3176
        %v3204 = vpop.f32.mrf.mxu0
        %v3205 = vadd.f32 0.0, %v3204
        %3206 = vmatmul.f32.gmra.mxu0 %v3179
        %v3207 = vpop.f32.mrf.mxu0
        %v3208 = vadd.f32 0.0, %v3207
        %3209 = vmatmul.f32.gmra.mxu0 %v3182
        %v3210 = vpop.f32.mrf.mxu0
        %v3211 = vadd.f32 0.0, %v3210
        %3212 = vmatmul.f32.gmra.mxu0 %v3185
        %v3213 = vpop.f32.mrf.mxu0
        %v3214 = vadd.f32 0.0, %v3213
        %3215 = vdwg.mxu0
        %3216 = vrot.lane.b32.xlu0 %v365, 40
        %v3217 = vpop.permute.xlu0 %3216
        %3218 = vrot.lane.b32.xlu0 %v368, 40
        %v3219 = vpop.permute.xlu0 %3218
        %3220 = vrot.lane.b32.xlu0 %v371, 40
        %v3221 = vpop.permute.xlu0 %3220
        %3222 = vrot.lane.b32.xlu0 %v374, 40
        %v3223 = vpop.permute.xlu0 %3222
        %v3229 = vsel %vm609, %v3053, 0
        %v3232 = vsel %vm609, %v3054, 0
        %v3235 = vsel %vm609, %v3055, 0
        %v3238 = vsel %vm609, %v3056, 0
        %3240 = vmatpush.msra.mxu0 0.0
        %3241 = vmatpush.msra.mxu0 0.0
        %3242 = vmatpush.msra.mxu0 0.0
        %3243 = vmatpush.msra.mxu0 0.0
        %3244 = vmatpush.msra.mxu0 0.0
        %3245 = vmatpush.msra.mxu0 0.0
        %3246 = vmatpush.msra.mxu0 0.0
        %3247 = vmatpush.msra.mxu0 0.0
        %3248 = vmatpush.msra.mxu0 0.0
        %3249 = vmatpush.msra.mxu0 0.0
        %3250 = vmatpush.msra.mxu0 0.0
        %3251 = vmatpush.msra.mxu0 0.0
        %3252 = vmatpush.msra.mxu0 %v3223
        %3253 = vmatpush.msra.mxu0 %v3221
        %3254 = vmatpush.msra.mxu0 %v3219
        %3255 = vmatpush.msra.mxu0 %v3217
        %3256 = vmatmul.f32.gmra.mxu0 %v3229
        %v3257 = vpop.f32.mrf.mxu0
        %v3258 = vadd.f32 0.0, %v3257
        %3259 = vmatmul.f32.gmra.mxu0 %v3232
        %v3260 = vpop.f32.mrf.mxu0
        %v3261 = vadd.f32 0.0, %v3260
        %3262 = vmatmul.f32.gmra.mxu0 %v3235
        %v3263 = vpop.f32.mrf.mxu0
        %v3264 = vadd.f32 0.0, %v3263
        %3265 = vmatmul.f32.gmra.mxu0 %v3238
        %v3266 = vpop.f32.mrf.mxu0
        %v3267 = vadd.f32 0.0, %v3266
        %3268 = vdwg.mxu0
        %s3269 = scalar_lea.vmem %s4, 24
        %v3270 = vld [vmem:[%s3269] sm:$0xff]
        %v3272 = vsel %vm392, %v3099, 0
        %v3275 = vsel %vm392, %v3102, 0
        %v3278 = vsel %vm392, %v3105, 0
        %v3281 = vsel %vm392, %v3108, 0
        %v3284 = vsel %vm392, %v3152, 0
        %v3287 = vsel %vm392, %v3155, 0
        %v3290 = vsel %vm392, %v3158, 0
        %v3293 = vsel %vm392, %v3161, 0
        %v3296 = vsel %vm392, %v3205, 0
        %v3299 = vsel %vm392, %v3208, 0
        %v3302 = vsel %vm392, %v3211, 0
        %v3305 = vsel %vm392, %v3214, 0
        %v3308 = vsel %vm392, %v3258, 0
        %v3311 = vsel %vm392, %v3261, 0
        %v3314 = vsel %vm392, %v3264, 0
        %v3317 = vsel %vm392, %v3267, 0
        %3319 = vmatpush.msra.mxu0 0.0
        %3320 = vmatpush.msra.mxu0 0.0
        %3321 = vmatpush.msra.mxu0 0.0
        %3322 = vmatpush.msra.mxu0 0.0
        %3323 = vmatpush.msra.mxu0 0.0
        %3324 = vmatpush.msra.mxu0 0.0
        %3325 = vmatpush.msra.mxu0 0.0
        %3326 = vmatpush.msra.mxu0 0.0
        %3327 = vmatpush.msra.mxu0 0.0
        %3328 = vmatpush.msra.mxu0 0.0
        %3329 = vmatpush.msra.mxu0 0.0
        %3330 = vmatpush.msra.mxu0 0.0
        %3331 = vmatpush.msra.mxu0 0.0
        %3332 = vmatpush.msra.mxu0 0.0
        %3333 = vmatpush.msra.mxu0 0.0
        %3334 = vmatpush.msra.mxu0 %v3270
        %3335 = vmatmul.f32.gmra.mxu0 %v3272
        %v3336 = vpop.f32.mrf.mxu0
        %v3337 = vadd.f32 0.0, %v3336
        %3338 = vmatmul.f32.gmra.mxu0 %v3275
        %v3339 = vpop.f32.mrf.mxu0
        %v3340 = vadd.f32 0.0, %v3339
        %3341 = vmatmul.f32.gmra.mxu0 %v3278
        %v3342 = vpop.f32.mrf.mxu0
        %v3343 = vadd.f32 0.0, %v3342
        %3344 = vmatmul.f32.gmra.mxu0 %v3281
        %v3345 = vpop.f32.mrf.mxu0
        %v3346 = vadd.f32 0.0, %v3345
        %3347 = vmatmul.f32.gmra.mxu0 %v3284
        %v3348 = vpop.f32.mrf.mxu0
        %v3349 = vadd.f32 0.0, %v3348
        %3350 = vmatmul.f32.gmra.mxu0 %v3287
        %v3351 = vpop.f32.mrf.mxu0
        %v3352 = vadd.f32 0.0, %v3351
        %3353 = vmatmul.f32.gmra.mxu0 %v3290
        %v3354 = vpop.f32.mrf.mxu0
        %v3355 = vadd.f32 0.0, %v3354
        %3356 = vmatmul.f32.gmra.mxu0 %v3293
        %v3357 = vpop.f32.mrf.mxu0
        %v3358 = vadd.f32 0.0, %v3357
        %3359 = vmatmul.f32.gmra.mxu0 %v3296
        %v3360 = vpop.f32.mrf.mxu0
        %v3361 = vadd.f32 0.0, %v3360
        %3362 = vmatmul.f32.gmra.mxu0 %v3299
        %v3363 = vpop.f32.mrf.mxu0
        %v3364 = vadd.f32 0.0, %v3363
        %3365 = vmatmul.f32.gmra.mxu0 %v3302
        %v3366 = vpop.f32.mrf.mxu0
        %v3367 = vadd.f32 0.0, %v3366
        %3368 = vmatmul.f32.gmra.mxu0 %v3305
        %v3369 = vpop.f32.mrf.mxu0
        %v3370 = vadd.f32 0.0, %v3369
        %3371 = vmatmul.f32.gmra.mxu0 %v3308
        %v3372 = vpop.f32.mrf.mxu0
        %v3373 = vadd.f32 0.0, %v3372
        %3374 = vmatmul.f32.gmra.mxu0 %v3311
        %v3375 = vpop.f32.mrf.mxu0
        %v3376 = vadd.f32 0.0, %v3375
        %3377 = vmatmul.f32.gmra.mxu0 %v3314
        %v3378 = vpop.f32.mrf.mxu0
        %v3379 = vadd.f32 0.0, %v3378
        %3380 = vmatmul.f32.gmra.mxu0 %v3317
        %v3381 = vpop.f32.mrf.mxu0
        %v3382 = vadd.f32 0.0, %v3381
        %3383 = vdwg.mxu0
        %v3384 = vadd.f32 %v2616, %v3337
        %v3385 = vadd.f32 %v2617, %v3340
        %v3386 = vadd.f32 %v2618, %v3343
        %v3387 = vadd.f32 %v2619, %v3346
        %v3388 = vadd.f32 %v2620, %v3349
        %v3389 = vadd.f32 %v2621, %v3352
        %v3390 = vadd.f32 %v2622, %v3355
        %v3391 = vadd.f32 %v2623, %v3358
        %v3392 = vadd.f32 %v2624, %v3361
        %v3393 = vadd.f32 %v2625, %v3364
        %v3394 = vadd.f32 %v2626, %v3367
        %v3395 = vadd.f32 %v2627, %v3370
        %v3396 = vadd.f32 %v2628, %v3373
        %v3397 = vadd.f32 %v2629, %v3376
        %v3398 = vadd.f32 %v2630, %v3379
        %v3399 = vadd.f32 %v2631, %v3382
        %v3400 = vld [vmem:[%s5] sm:$0x1]
        %v3402 = vperm.slane %v3400, 0
        %v3404 = vadd.f32 %v3384, %v3402
        %v3405 = vadd.f32 %v3385, %v3402
        %v3406 = vadd.f32 %v3386, %v3402
        %v3407 = vadd.f32 %v3387, %v3402
        %v3408 = vadd.f32 %v3388, %v3402
        %v3409 = vadd.f32 %v3389, %v3402
        %v3410 = vadd.f32 %v3390, %v3402
        %v3411 = vadd.f32 %v3391, %v3402
        %v3412 = vadd.f32 %v3392, %v3402
        %v3413 = vadd.f32 %v3393, %v3402
        %v3414 = vadd.f32 %v3394, %v3402
        %v3415 = vadd.f32 %v3395, %v3402
        %v3416 = vadd.f32 %v3396, %v3402
        %v3417 = vadd.f32 %v3397, %v3402
        %v3418 = vadd.f32 %v3398, %v3402
        %v3419 = vadd.f32 %v3399, %v3402
        %3420 = vst [vmem:[%s272] sm:$0xff] %v3404
        %3421 = vst [vmem:[%s272 + $0x8] sm:$0xff] %v3405
        %3422 = vst [vmem:[%s272 + $0x10] sm:$0xff] %v3406
        %3423 = vst [vmem:[%s272 + $0x18] sm:$0xff] %v3407
        %3424 = vst [vmem:[%s272 + $0x20] sm:$0xff] %v3408
        %3425 = vst [vmem:[%s272 + $0x28] sm:$0xff] %v3409
        %3426 = vst [vmem:[%s272 + $0x30] sm:$0xff] %v3410
        %3427 = vst [vmem:[%s272 + $0x38] sm:$0xff] %v3411
        %3428 = vst [vmem:[%s272 + $0x40] sm:$0xff] %v3412
        %3429 = vst [vmem:[%s272 + $0x48] sm:$0xff] %v3413
        %3430 = vst [vmem:[%s272 + $0x50] sm:$0xff] %v3414
        %3431 = vst [vmem:[%s272 + $0x58] sm:$0xff] %v3415
        %3432 = vst [vmem:[%s272 + $0x60] sm:$0xff] %v3416
        %3433 = vst [vmem:[%s272 + $0x68] sm:$0xff] %v3417
        %3434 = vst [vmem:[%s272 + $0x70] sm:$0xff] %v3418
        %3435 = vst [vmem:[%s272 + $0x78] sm:$0xff] %v3419
        %s3436 = sand.u32 %s162, 1
        %s3437 = scalar_lea.sflag [#allocation4], %s3436
        %s3438 = sand.u32 %s162, 1
        %s3439 = smul.addr %s3438, 128
        %s3440 = scalar_lea.vmem [#allocation5], %s3439
        // Predicated region
        $region49: #{tpu_custom_call.1} parent=43 // pred_check
          %p3441 = pneg %p172
        $region50: #{tpu_custom_call.1} parent=43 // pred_check_branch
          %3443 = sbr.rel (%p3441) target = $region52
        $region51: #{tpu_custom_call.1} parent=43 // pred_region
          %s3444 = smul.u32 4, %s23
          %3446 = vsyncadd %s3437, 0
          %s3447 = smul.addr %s3444, 4
          %s3448 = smul.addr %s3447, 8
          %s3449 = scalar_lea.hbm %s6, %s3448
          %s3450 = sshll.u32 %s3440, 4
          %s3451 = int_to_ptr.vmem [resolvable:$true] %s3450
          %s3452 = sshll.u32 %s3449, 4
          %s3453 = int_to_ptr.hbm [resolvable:$true] %s3452
          %3458 = dma.vmem_to_hbm [thread:$0]  %s3451, 2048, %s3453, %s3437, 128, 128, 8
        $region52: #{tpu_custom_call.1} parent=43 // pred_fallthru
          _
      $region44: #{tpu_custom_call.1} parent=5 // pred_fallthru
        _
      %p3459 = scmp.le.s32.totalorder 2, %s18
      // Predicated region
      $region53: #{tpu_custom_call.1} parent=5 // pred_check
        %p3460 = pneg %p3459
      $region54: #{tpu_custom_call.1} parent=5 // pred_check_branch
        %3462 = sbr.rel (%p3460) target = $region56
      $region55: #{tpu_custom_call.1} parent=5 // pred_region
        %s3463 = ssub.s32 %s18, 2
        // Predicated region
        $region57: #{tpu_custom_call.1} parent=55 // pred_check
          %p3464 = pneg %p178
        $region58: #{tpu_custom_call.1} parent=55 // pred_check_branch
          %3466 = sbr.rel (%p3464) target = $region60
        $region59: #{tpu_custom_call.1} parent=55 // pred_region
          %s3467 = sand.u32 %s163, 1
          %s3468 = scalar_lea.sflag [#allocation4], %s3467
          %s3469 = sand.u32 %s163, 1
          %s3470 = smul.addr %s3469, 128
          %s3471 = scalar_lea.vmem [#allocation5], %s3470
          %3473 = dma.done %s3468, 2048
        $region60: #{tpu_custom_call.1} parent=55 // pred_fallthru
          _
      $region56: #{tpu_custom_call.1} parent=5 // pred_fallthru
        _
    $region6: #{tpu_custom_call.1} parent=1 // loop_footer
      %s22 = sadd.s32 1, %s18
    $region7: #{tpu_custom_call.1} parent=1 // loop_footer_branch
      %17 = sbr.rel target = $region3
    $region8: #{tpu_custom_call.1} parent=1 // loop_exit
      _
    %3474 = vsyncpa [#allocation3], 1
    %s3475 = scalar_lea.sflag [#allocation3], 1
    %3476 = vsyncpa %s3475, 1
    %3477 = vsyncpa [#allocation4], 1
    %s3478 = scalar_lea.sflag [#allocation4], 1
    %3479 = vsyncpa %s3478, 1

</llo_original>
